<compile_context>
chip_gen: v6e
topology: v6e:2x2x1
jax: 0.10.0
libtpu: 0.0.40
codegen_flags: <defaults>
</compile_context>

<pallas_src>
import jax
import jax.numpy as jnp
import numpy as np
from jax import lax
from jax.experimental import pallas as pl
from jax.experimental.pallas import tpu as pltpu

DILATIONS = (1, 2, 3, 4)          # branch k uses dilation = padding = k + 1
MAXOFF = max(DILATIONS)           # largest spatial tap offset (= 4)


def _make_psa_kernel(Cout, H, W, pad_v):
    HW = H * W

    def kernel(x_ref, w_ref, fc1_ref, fc2_ref, out_ref):
        # x_ref:   (1, Cin, (H + 2*pad_v) * W) bf16 -- vertically zero-padded input,
        #          flattened so HW is the lane axis.
        # w_ref:   (4, 9, Cout, Cin) bf16 -- conv weights (branch, tap=3*ky+kx, out, in)
        # fc1_ref: (Hid, Cout) f32, fc2_ref: (Cout, Hid) f32 -- shared SE weights
        # out_ref: (1, 4*Cout, HW) f32 -- NCHW channel blocks in reversed branch order
        xflat = x_ref[0]                      # (Cin, PHW) bf16, loaded once
        w = w_ref[...]                        # (4, 9, Cout, Cin) bf16

        # lane -> image column index, for masking horizontally out-of-bounds taps.
        col = lax.broadcasted_iota(jnp.int32, (1, HW), 1) % W
        masks = {}

        def col_mask(dx):
            if dx not in masks:
                masks[dx] = jnp.logical_and(col + dx >= 0, col + dx < W)
            return masks[dx]

        # 4 dilated 3x3 convs: 9 accumulated (Cout,Cin)@(Cin,HW) bf16 MXU matmuls
        # per branch, f32 accumulation.  At production channel counts (Cout>=64,
        # Cin>=64) these matmuls fill the MXU; at toy sizes the kernel is
        # overhead-bound regardless.
        feats = []
        for k, d in enumerate(DILATIONS):
            acc = jnp.zeros((Cout, HW), jnp.float32)
            for ky in range(3):
                for kx in range(3):
                    dy, dx = (ky - 1) * d, (kx - 1) * d
                    base = (dy + pad_v) * W + dx          # static, in-bounds by construction
                    tap = xflat[:, base:base + HW]        # (Cin, HW) static lane slice
                    part = jnp.dot(w[k, 3 * ky + kx], tap,
                                   preferred_element_type=jnp.float32)
                    if dx != 0:                           # zero horizontally OOB columns (f32 VPU)
                        part = jnp.where(col_mask(dx), part, 0.0)
                    acc = acc + part
            feats.append(acc)                             # (Cout, HW) f32

        # Batched SE attention (shared fc1/fc2 across branches), all f32.
        pmax = jnp.concatenate(
            [jnp.max(f, axis=-1, keepdims=True) for f in feats], axis=-1)            # (Cout, 4)
        pavg = jnp.concatenate(
            [jnp.sum(f, axis=-1, keepdims=True) for f in feats], axis=-1) * (1.0 / HW)
        hmax = jnp.maximum(jnp.dot(fc1_ref[...], pmax,
                                   preferred_element_type=jnp.float32), 0.0)          # (Hid, 4)
        havg = jnp.maximum(jnp.dot(fc1_ref[...], pavg,
                                   preferred_element_type=jnp.float32), 0.0)
        # fc2 is linear with no bias: fc2(hmax) + fc2(havg) == fc2(hmax + havg)
        se = jnp.dot(fc2_ref[...], hmax + havg, preferred_element_type=jnp.float32)   # (Cout, 4)
        sg = jax.nn.sigmoid(se)
        sg = sg - jnp.max(sg, axis=-1, keepdims=True)     # softmax over the 4 branches
        ex = jnp.exp(sg)
        att = ex / jnp.sum(ex, axis=-1, keepdims=True)    # (Cout, 4)

        # Scale + store: branch k -> channel block 3-k (PyTorch's reversed concat),
        # lane-dense full-width unmasked stores.
        for k in range(4):
            j = 3 - k
            out_ref[0, j * Cout:(j + 1) * Cout, :] = feats[k] * att[:, k:k + 1]

    return kernel


def psa_module_pallas(x, wconv, fc1_w, fc2_w):
    """x: (B, Cin, H, W) f32.  wconv: (4, 3, 3, Cin, Cout) (HWIO per branch).
    fc1_w: (Hid, Cout), fc2_w: (Cout, Hid) (torch nn.Linear .weight layouts, no bias).
    Returns (B, 4*Cout, H, W) f32, matching PSAModule.forward (NCHW)."""
    B, Cin, H, W = x.shape
    Cout = wconv.shape[-1]
    Hid = fc1_w.shape[0]
    HW = H * W
    # Vertical zero padding: MAXOFF rows for the conv itself plus enough extra rows so
    # that every tap's flat slice [base, base+HW) stays inside the padded buffer.
    pad_v = MAXOFF + (MAXOFF + W - 1) // W
    PHW = (H + 2 * pad_v) * W

    # Pad rows only (columns handled by in-kernel masking), flatten HW, cast the MXU
    # operand to bf16 (f32 accumulation happens in-kernel).
    xflat = jnp.pad(x.astype(jnp.float32), ((0, 0), (0, 0), (pad_v, pad_v), (0, 0)))
    xflat = xflat.reshape(B, Cin, PHW).astype(jnp.bfloat16)

    # (4, 3, 3, Cin, Cout) -> (4, 9, Cout, Cin); tap index t = 3*ky + kx.
    w = jnp.transpose(wconv.reshape(4, 9, Cin, Cout), (0, 1, 3, 2)).astype(jnp.bfloat16)

    # TODO(synk): for realistic H*W / Cin, tile the HW axis (with vertical halo rows) to
    # bound per-step VMEM on v7x (64 MiB) and to provide a second "parallel" grid axis
    # when B == 1 (megacore).
    out = pl.pallas_call(
        _make_psa_kernel(Cout, H, W, pad_v),
        out_shape=jax.ShapeDtypeStruct((B, 4 * Cout, HW), jnp.float32),
        grid_spec=pltpu.PrefetchScalarGridSpec(
            num_scalar_prefetch=0,
            grid=(B,),
            in_specs=[
                pl.BlockSpec((1, Cin, PHW), lambda b: (b, 0, 0)),
                pl.BlockSpec((4, 9, Cout, Cin), lambda b: (0, 0, 0, 0)),
                pl.BlockSpec((Hid, Cout), lambda b: (0, 0)),
                pl.BlockSpec((Cout, Hid), lambda b: (0, 0)),
            ],
            out_specs=pl.BlockSpec((1, 4 * Cout, HW), lambda b: (b, 0, 0)),
        ),
        compiler_params=pltpu.CompilerParams(
            dimension_semantics=("parallel",)),   # shard batch across TensorCores (v7x)
    )(xflat, w, fc1_w.astype(jnp.float32), fc2_w.astype(jnp.float32))

    # Channel order already matches the PyTorch tail; free row-major reshape to NCHW.
    return out.reshape(B, 4 * Cout, H, W)


def psa_module_reference(x, wconv, fc1_w, fc2_w):
    """Pure-JAX reference mirroring PSAModule.forward.  Conv operands are cast to bf16
    (with f32 accumulation) to be numerically consistent with the kernel's MXU precision;
    everything else is f32."""
    B, Cin, H, W = x.shape
    Cout = wconv.shape[-1]
    x_nhwc = jnp.transpose(x, (0, 2, 3, 1)).astype(jnp.bfloat16)
    w_b = wconv.astype(jnp.bfloat16)
    hi = lax.Precision.HIGHEST

    branches = []
    for k, d in enumerate(DILATIONS):
        y = lax.conv_general_dilated(
            x_nhwc, w_b[k], window_strides=(1, 1),
            padding=[(d, d), (d, d)], rhs_dilation=(d, d),
            dimension_numbers=("NHWC", "HWIO", "NHWC"),
            preferred_element_type=jnp.float32)
        branches.append(y)                                  # (B, H, W, Cout) f32

    atts = []
    for y in branches:
        mp = jnp.max(y, axis=(1, 2))                        # (B, Cout)
        ap = jnp.mean(y, axis=(1, 2))
        hm = jnp.maximum(jnp.matmul(mp, fc1_w.T, precision=hi), 0.0)
        ha = jnp.maximum(jnp.matmul(ap, fc1_w.T, precision=hi), 0.0)
        se = jnp.matmul(hm, fc2_w.T, precision=hi) + jnp.matmul(ha, fc2_w.T, precision=hi)
        atts.append(jax.nn.sigmoid(se))                     # (B, Cout)
    att = jax.nn.softmax(jnp.stack(atts, axis=1), axis=1)   # (B, 4, Cout)

    feats = jnp.stack(branches, axis=1)                     # (B, 4, H, W, Cout)
    fw = feats * att[:, :, None, None, :]
    fw = fw[:, ::-1]                                        # PyTorch tail's reversed concat
    return jnp.transpose(fw, (0, 1, 4, 2, 3)).reshape(B, 4 * Cout, H, W)


if __name__ == "__main__":
    # Small shapes consistent with the module: inplanes=8, planes=32 -> split_channel=8
    B, Cin, H, W = 2, 8, 16, 16
    planes = 32
    Cout = planes // 4          # split_channel = 8
    Hid = Cout // 4             # SE hidden = 2

    key = jax.random.PRNGKey(0)
    kx, kw, k1, k2 = jax.random.split(key, 4)
    x = jax.random.normal(kx, (B, Cin, H, W), dtype=jnp.float32)
    # deterministic synthetic parameters (Conv2d weights HWIO per branch,
    # Linear weights in torch layout, no biases anywhere)
    wconv = jax.random.normal(kw, (4, 3, 3, Cin, Cout), dtype=jnp.float32) * 0.1
    fc1_w = jax.random.normal(k1, (Hid, Cout), dtype=jnp.float32) * 0.3
    fc2_w = jax.random.normal(k2, (Cout, Hid), dtype=jnp.float32) * 0.3

    out = jax.block_until_ready(psa_module_pallas(x, wconv, fc1_w, fc2_w))
    ref = jax.block_until_ready(psa_module_reference(x, wconv, fc1_w, fc2_w))

    assert out.shape == (B, planes, H, W), out.shape
    # Both kernel and reference use bf16 MXU operands with f32 accumulation, so the
    # remaining differences are accumulation order + transcendental approximation only.
    np.testing.assert_allclose(np.asarray(out), np.asarray(ref), rtol=2e-3, atol=2e-3)
    print("KERNEL_OK")
</pallas_src>

<mosaic_0001>
module attributes {stable_mosaic.version = 11 : i64} {
  func.func @kernel(%arg0: i32, %arg1: memref<1x8x416xbf16, #tpu.memory_space<vmem>>, %arg2: memref<4x9x8x8xbf16, #tpu.memory_space<vmem>>, %arg3: memref<2x8xf32, #tpu.memory_space<vmem>>, %arg4: memref<8x2xf32, #tpu.memory_space<vmem>>, %arg5: memref<1x32x256xf32, #tpu.memory_space<vmem>>) attributes {dimension_semantics = [#tpu.dimension_semantics<parallel>], iteration_bounds = array<i64: 2>, scalar_prefetch = 0 : i64, scratch_operands = 0 : i64, tpu.core_type = #tpu.core_type<tc>, window_params = [{transform_indices = @transform_0, window_bounds = array<i64: 1, 8, 416>}, {pipeline_mode = #tpu.pipeline_mode<synchronous>, transform_indices = @transform_1, window_bounds = array<i64: 4, 9, 8, 8>}, {pipeline_mode = #tpu.pipeline_mode<synchronous>, transform_indices = @transform_2, window_bounds = array<i64: 2, 8>}, {pipeline_mode = #tpu.pipeline_mode<synchronous>, transform_indices = @transform_3, window_bounds = array<i64: 8, 2>}, {transform_indices = @transform_4, window_bounds = array<i64: 1, 32, 256>}]} {
    %c0 = arith.constant 0 : index
    %c0_0 = arith.constant 0 : index
    %c0_1 = arith.constant 0 : index
    %0 = vector.load %arg1[%c0, %c0_0, %c0_1] : memref<1x8x416xbf16, #tpu.memory_space<vmem>>, vector<1x8x416xbf16>
    %1 = vector.shape_cast %0 : vector<1x8x416xbf16> to vector<8x416xbf16>
    %c0_2 = arith.constant 0 : index
    %c0_3 = arith.constant 0 : index
    %c0_4 = arith.constant 0 : index
    %c0_5 = arith.constant 0 : index
    %2 = vector.load %arg2[%c0_2, %c0_3, %c0_4, %c0_5] : memref<4x9x8x8xbf16, #tpu.memory_space<vmem>>, vector<4x9x8x8xbf16>
    %3 = tpu.iota {dimensions = array<i32: 1>} : vector<1x256xi32>
    %c16_i32 = arith.constant 16 : i32
    %c0_i32 = arith.constant 0 : i32
    %4 = arith.cmpi eq, %c16_i32, %c0_i32 : i32
    %c1_i32 = arith.constant 1 : i32
    %5 = arith.select %4, %c1_i32, %c16_i32 : i32
    %6 = vector.broadcast %5 : i32 to vector<1x256xi32>
    %7 = arith.remsi %3, %6 : vector<1x256xi32>
    %c0_i32_6 = arith.constant 0 : i32
    %8 = vector.broadcast %c0_i32_6 : i32 to vector<1x256xi32>
    %9 = arith.cmpi ne, %7, %8 : vector<1x256xi32>
    %c0_i32_7 = arith.constant 0 : i32
    %10 = vector.broadcast %c0_i32_7 : i32 to vector<1x256xi32>
    %11 = arith.cmpi slt, %7, %10 : vector<1x256xi32>
    %c0_i32_8 = arith.constant 0 : i32
    %12 = arith.cmpi slt, %5, %c0_i32_8 : i32
    %13 = vector.broadcast %12 : i1 to vector<1x256xi1>
    %14 = vector.broadcast %13 : vector<1x256xi1> to vector<1x256xi1>
    %15 = arith.xori %11, %14 : vector<1x256xi1>
    %16 = arith.andi %15, %9 : vector<1x256xi1>
    %17 = vector.broadcast %5 : i32 to vector<1x256xi32>
    %18 = arith.addi %7, %17 : vector<1x256xi32>
    %19 = arith.select %16, %18, %7 : vector<1x256xi1>, vector<1x256xi32>
    %cst = arith.constant 0.000000e+00 : f32
    %20 = vector.broadcast %cst : f32 to vector<8x256xf32>
    %21 = vector.extract_strided_slice %1 {offsets = [0, 63], sizes = [8, 256], strides = [1, 1]} : vector<8x416xbf16> to vector<8x256xbf16>
    %22 = vector.extract_strided_slice %2 {offsets = [0, 0, 0, 0], sizes = [1, 1, 8, 8], strides = [1, 1, 1, 1]} : vector<4x9x8x8xbf16> to vector<1x1x8x8xbf16>
    %23 = vector.shape_cast %22 : vector<1x1x8x8xbf16> to vector<8x8xbf16>
    %cst_9 = arith.constant dense<0.000000e+00> : vector<8x256xf32>
    %24 = tpu.matmul %23, %21, %cst_9 {dimension_numbers = #tpu.dot_dimension_numbers<[1], [0], [0], [1], [0, 0, 1, 1], [], []>} : vector<8x8xbf16>, vector<8x256xbf16>, vector<8x256xf32> -> vector<8x256xf32>
    %c-1_i32 = arith.constant -1 : i32
    %25 = vector.broadcast %c-1_i32 : i32 to vector<1x256xi32>
    %26 = arith.addi %19, %25 : vector<1x256xi32>
    %c0_i32_10 = arith.constant 0 : i32
    %27 = vector.broadcast %c0_i32_10 : i32 to vector<1x256xi32>
    %28 = arith.cmpi sge, %26, %27 : vector<1x256xi32>
    %c-1_i32_11 = arith.constant -1 : i32
    %29 = vector.broadcast %c-1_i32_11 : i32 to vector<1x256xi32>
    %30 = arith.addi %19, %29 : vector<1x256xi32>
    %c16_i32_12 = arith.constant 16 : i32
    %31 = vector.broadcast %c16_i32_12 : i32 to vector<1x256xi32>
    %32 = arith.cmpi slt, %30, %31 : vector<1x256xi32>
    %33 = arith.andi %28, %32 : vector<1x256xi1>
    %cst_13 = arith.constant 0.000000e+00 : f32
    %34 = vector.shape_cast %33 : vector<1x256xi1> to vector<1x256xi1>
    %35 = vector.broadcast %34 : vector<1x256xi1> to vector<8x256xi1>
    %36 = vector.broadcast %cst_13 : f32 to vector<8x256xf32>
    %37 = arith.select %35, %24, %36 : vector<8x256xi1>, vector<8x256xf32>
    %38 = arith.addf %20, %37 : vector<8x256xf32>
    %39 = vector.extract_strided_slice %1 {offsets = [0, 64], sizes = [8, 256], strides = [1, 1]} : vector<8x416xbf16> to vector<8x256xbf16>
    %40 = vector.extract_strided_slice %2 {offsets = [0, 1, 0, 0], sizes = [1, 1, 8, 8], strides = [1, 1, 1, 1]} : vector<4x9x8x8xbf16> to vector<1x1x8x8xbf16>
    %41 = vector.shape_cast %40 : vector<1x1x8x8xbf16> to vector<8x8xbf16>
    %cst_14 = arith.constant dense<0.000000e+00> : vector<8x256xf32>
    %42 = tpu.matmul %41, %39, %cst_14 {dimension_numbers = #tpu.dot_dimension_numbers<[1], [0], [0], [1], [0, 0, 1, 1], [], []>} : vector<8x8xbf16>, vector<8x256xbf16>, vector<8x256xf32> -> vector<8x256xf32>
    %43 = arith.addf %38, %42 : vector<8x256xf32>
    %44 = vector.extract_strided_slice %1 {offsets = [0, 65], sizes = [8, 256], strides = [1, 1]} : vector<8x416xbf16> to vector<8x256xbf16>
    %45 = vector.extract_strided_slice %2 {offsets = [0, 2, 0, 0], sizes = [1, 1, 8, 8], strides = [1, 1, 1, 1]} : vector<4x9x8x8xbf16> to vector<1x1x8x8xbf16>
    %46 = vector.shape_cast %45 : vector<1x1x8x8xbf16> to vector<8x8xbf16>
    %cst_15 = arith.constant dense<0.000000e+00> : vector<8x256xf32>
    %47 = tpu.matmul %46, %44, %cst_15 {dimension_numbers = #tpu.dot_dimension_numbers<[1], [0], [0], [1], [0, 0, 1, 1], [], []>} : vector<8x8xbf16>, vector<8x256xbf16>, vector<8x256xf32> -> vector<8x256xf32>
    %c1_i32_16 = arith.constant 1 : i32
    %48 = vector.broadcast %c1_i32_16 : i32 to vector<1x256xi32>
    %49 = arith.addi %19, %48 : vector<1x256xi32>
    %c0_i32_17 = arith.constant 0 : i32
    %50 = vector.broadcast %c0_i32_17 : i32 to vector<1x256xi32>
    %51 = arith.cmpi sge, %49, %50 : vector<1x256xi32>
    %c1_i32_18 = arith.constant 1 : i32
    %52 = vector.broadcast %c1_i32_18 : i32 to vector<1x256xi32>
    %53 = arith.addi %19, %52 : vector<1x256xi32>
    %c16_i32_19 = arith.constant 16 : i32
    %54 = vector.broadcast %c16_i32_19 : i32 to vector<1x256xi32>
    %55 = arith.cmpi slt, %53, %54 : vector<1x256xi32>
    %56 = arith.andi %51, %55 : vector<1x256xi1>
    %cst_20 = arith.constant 0.000000e+00 : f32
    %57 = vector.shape_cast %56 : vector<1x256xi1> to vector<1x256xi1>
    %58 = vector.broadcast %57 : vector<1x256xi1> to vector<8x256xi1>
    %59 = vector.broadcast %cst_20 : f32 to vector<8x256xf32>
    %60 = arith.select %58, %47, %59 : vector<8x256xi1>, vector<8x256xf32>
    %61 = arith.addf %43, %60 : vector<8x256xf32>
    %62 = vector.extract_strided_slice %1 {offsets = [0, 79], sizes = [8, 256], strides = [1, 1]} : vector<8x416xbf16> to vector<8x256xbf16>
    %63 = vector.extract_strided_slice %2 {offsets = [0, 3, 0, 0], sizes = [1, 1, 8, 8], strides = [1, 1, 1, 1]} : vector<4x9x8x8xbf16> to vector<1x1x8x8xbf16>
    %64 = vector.shape_cast %63 : vector<1x1x8x8xbf16> to vector<8x8xbf16>
    %cst_21 = arith.constant dense<0.000000e+00> : vector<8x256xf32>
    %65 = tpu.matmul %64, %62, %cst_21 {dimension_numbers = #tpu.dot_dimension_numbers<[1], [0], [0], [1], [0, 0, 1, 1], [], []>} : vector<8x8xbf16>, vector<8x256xbf16>, vector<8x256xf32> -> vector<8x256xf32>
    %cst_22 = arith.constant 0.000000e+00 : f32
    %66 = vector.shape_cast %33 : vector<1x256xi1> to vector<1x256xi1>
    %67 = vector.broadcast %66 : vector<1x256xi1> to vector<8x256xi1>
    %68 = vector.broadcast %cst_22 : f32 to vector<8x256xf32>
    %69 = arith.select %67, %65, %68 : vector<8x256xi1>, vector<8x256xf32>
    %70 = arith.addf %61, %69 : vector<8x256xf32>
    %71 = vector.extract_strided_slice %1 {offsets = [0, 80], sizes = [8, 256], strides = [1, 1]} : vector<8x416xbf16> to vector<8x256xbf16>
    %72 = vector.extract_strided_slice %2 {offsets = [0, 4, 0, 0], sizes = [1, 1, 8, 8], strides = [1, 1, 1, 1]} : vector<4x9x8x8xbf16> to vector<1x1x8x8xbf16>
    %73 = vector.shape_cast %72 : vector<1x1x8x8xbf16> to vector<8x8xbf16>
    %cst_23 = arith.constant dense<0.000000e+00> : vector<8x256xf32>
    %74 = tpu.matmul %73, %71, %cst_23 {dimension_numbers = #tpu.dot_dimension_numbers<[1], [0], [0], [1], [0, 0, 1, 1], [], []>} : vector<8x8xbf16>, vector<8x256xbf16>, vector<8x256xf32> -> vector<8x256xf32>
    %75 = arith.addf %70, %74 : vector<8x256xf32>
    %76 = vector.extract_strided_slice %1 {offsets = [0, 81], sizes = [8, 256], strides = [1, 1]} : vector<8x416xbf16> to vector<8x256xbf16>
    %77 = vector.extract_strided_slice %2 {offsets = [0, 5, 0, 0], sizes = [1, 1, 8, 8], strides = [1, 1, 1, 1]} : vector<4x9x8x8xbf16> to vector<1x1x8x8xbf16>
    %78 = vector.shape_cast %77 : vector<1x1x8x8xbf16> to vector<8x8xbf16>
    %cst_24 = arith.constant dense<0.000000e+00> : vector<8x256xf32>
    %79 = tpu.matmul %78, %76, %cst_24 {dimension_numbers = #tpu.dot_dimension_numbers<[1], [0], [0], [1], [0, 0, 1, 1], [], []>} : vector<8x8xbf16>, vector<8x256xbf16>, vector<8x256xf32> -> vector<8x256xf32>
    %cst_25 = arith.constant 0.000000e+00 : f32
    %80 = vector.shape_cast %56 : vector<1x256xi1> to vector<1x256xi1>
    %81 = vector.broadcast %80 : vector<1x256xi1> to vector<8x256xi1>
    %82 = vector.broadcast %cst_25 : f32 to vector<8x256xf32>
    %83 = arith.select %81, %79, %82 : vector<8x256xi1>, vector<8x256xf32>
    %84 = arith.addf %75, %83 : vector<8x256xf32>
    %85 = vector.extract_strided_slice %1 {offsets = [0, 95], sizes = [8, 256], strides = [1, 1]} : vector<8x416xbf16> to vector<8x256xbf16>
    %86 = vector.extract_strided_slice %2 {offsets = [0, 6, 0, 0], sizes = [1, 1, 8, 8], strides = [1, 1, 1, 1]} : vector<4x9x8x8xbf16> to vector<1x1x8x8xbf16>
    %87 = vector.shape_cast %86 : vector<1x1x8x8xbf16> to vector<8x8xbf16>
    %cst_26 = arith.constant dense<0.000000e+00> : vector<8x256xf32>
    %88 = tpu.matmul %87, %85, %cst_26 {dimension_numbers = #tpu.dot_dimension_numbers<[1], [0], [0], [1], [0, 0, 1, 1], [], []>} : vector<8x8xbf16>, vector<8x256xbf16>, vector<8x256xf32> -> vector<8x256xf32>
    %cst_27 = arith.constant 0.000000e+00 : f32
    %89 = vector.shape_cast %33 : vector<1x256xi1> to vector<1x256xi1>
    %90 = vector.broadcast %89 : vector<1x256xi1> to vector<8x256xi1>
    %91 = vector.broadcast %cst_27 : f32 to vector<8x256xf32>
    %92 = arith.select %90, %88, %91 : vector<8x256xi1>, vector<8x256xf32>
    %93 = arith.addf %84, %92 : vector<8x256xf32>
    %94 = vector.extract_strided_slice %1 {offsets = [0, 96], sizes = [8, 256], strides = [1, 1]} : vector<8x416xbf16> to vector<8x256xbf16>
    %95 = vector.extract_strided_slice %2 {offsets = [0, 7, 0, 0], sizes = [1, 1, 8, 8], strides = [1, 1, 1, 1]} : vector<4x9x8x8xbf16> to vector<1x1x8x8xbf16>
    %96 = vector.shape_cast %95 : vector<1x1x8x8xbf16> to vector<8x8xbf16>
    %cst_28 = arith.constant dense<0.000000e+00> : vector<8x256xf32>
    %97 = tpu.matmul %96, %94, %cst_28 {dimension_numbers = #tpu.dot_dimension_numbers<[1], [0], [0], [1], [0, 0, 1, 1], [], []>} : vector<8x8xbf16>, vector<8x256xbf16>, vector<8x256xf32> -> vector<8x256xf32>
    %98 = arith.addf %93, %97 : vector<8x256xf32>
    %99 = vector.extract_strided_slice %1 {offsets = [0, 97], sizes = [8, 256], strides = [1, 1]} : vector<8x416xbf16> to vector<8x256xbf16>
    %100 = vector.extract_strided_slice %2 {offsets = [0, 8, 0, 0], sizes = [1, 1, 8, 8], strides = [1, 1, 1, 1]} : vector<4x9x8x8xbf16> to vector<1x1x8x8xbf16>
    %101 = vector.shape_cast %100 : vector<1x1x8x8xbf16> to vector<8x8xbf16>
    %cst_29 = arith.constant dense<0.000000e+00> : vector<8x256xf32>
    %102 = tpu.matmul %101, %99, %cst_29 {dimension_numbers = #tpu.dot_dimension_numbers<[1], [0], [0], [1], [0, 0, 1, 1], [], []>} : vector<8x8xbf16>, vector<8x256xbf16>, vector<8x256xf32> -> vector<8x256xf32>
    %cst_30 = arith.constant 0.000000e+00 : f32
    %103 = vector.shape_cast %56 : vector<1x256xi1> to vector<1x256xi1>
    %104 = vector.broadcast %103 : vector<1x256xi1> to vector<8x256xi1>
    %105 = vector.broadcast %cst_30 : f32 to vector<8x256xf32>
    %106 = arith.select %104, %102, %105 : vector<8x256xi1>, vector<8x256xf32>
    %107 = arith.addf %98, %106 : vector<8x256xf32>
    %cst_31 = arith.constant 0.000000e+00 : f32
    %108 = vector.broadcast %cst_31 : f32 to vector<8x256xf32>
    %109 = vector.extract_strided_slice %1 {offsets = [0, 46], sizes = [8, 256], strides = [1, 1]} : vector<8x416xbf16> to vector<8x256xbf16>
    %110 = vector.extract_strided_slice %2 {offsets = [1, 0, 0, 0], sizes = [1, 1, 8, 8], strides = [1, 1, 1, 1]} : vector<4x9x8x8xbf16> to vector<1x1x8x8xbf16>
    %111 = vector.shape_cast %110 : vector<1x1x8x8xbf16> to vector<8x8xbf16>
    %cst_32 = arith.constant dense<0.000000e+00> : vector<8x256xf32>
    %112 = tpu.matmul %111, %109, %cst_32 {dimension_numbers = #tpu.dot_dimension_numbers<[1], [0], [0], [1], [0, 0, 1, 1], [], []>} : vector<8x8xbf16>, vector<8x256xbf16>, vector<8x256xf32> -> vector<8x256xf32>
    %c-2_i32 = arith.constant -2 : i32
    %113 = vector.broadcast %c-2_i32 : i32 to vector<1x256xi32>
    %114 = arith.addi %19, %113 : vector<1x256xi32>
    %c0_i32_33 = arith.constant 0 : i32
    %115 = vector.broadcast %c0_i32_33 : i32 to vector<1x256xi32>
    %116 = arith.cmpi sge, %114, %115 : vector<1x256xi32>
    %c-2_i32_34 = arith.constant -2 : i32
    %117 = vector.broadcast %c-2_i32_34 : i32 to vector<1x256xi32>
    %118 = arith.addi %19, %117 : vector<1x256xi32>
    %c16_i32_35 = arith.constant 16 : i32
    %119 = vector.broadcast %c16_i32_35 : i32 to vector<1x256xi32>
    %120 = arith.cmpi slt, %118, %119 : vector<1x256xi32>
    %121 = arith.andi %116, %120 : vector<1x256xi1>
    %cst_36 = arith.constant 0.000000e+00 : f32
    %122 = vector.shape_cast %121 : vector<1x256xi1> to vector<1x256xi1>
    %123 = vector.broadcast %122 : vector<1x256xi1> to vector<8x256xi1>
    %124 = vector.broadcast %cst_36 : f32 to vector<8x256xf32>
    %125 = arith.select %123, %112, %124 : vector<8x256xi1>, vector<8x256xf32>
    %126 = arith.addf %108, %125 : vector<8x256xf32>
    %127 = vector.extract_strided_slice %1 {offsets = [0, 48], sizes = [8, 256], strides = [1, 1]} : vector<8x416xbf16> to vector<8x256xbf16>
    %128 = vector.extract_strided_slice %2 {offsets = [1, 1, 0, 0], sizes = [1, 1, 8, 8], strides = [1, 1, 1, 1]} : vector<4x9x8x8xbf16> to vector<1x1x8x8xbf16>
    %129 = vector.shape_cast %128 : vector<1x1x8x8xbf16> to vector<8x8xbf16>
    %cst_37 = arith.constant dense<0.000000e+00> : vector<8x256xf32>
    %130 = tpu.matmul %129, %127, %cst_37 {dimension_numbers = #tpu.dot_dimension_numbers<[1], [0], [0], [1], [0, 0, 1, 1], [], []>} : vector<8x8xbf16>, vector<8x256xbf16>, vector<8x256xf32> -> vector<8x256xf32>
    %131 = arith.addf %126, %130 : vector<8x256xf32>
    %132 = vector.extract_strided_slice %1 {offsets = [0, 50], sizes = [8, 256], strides = [1, 1]} : vector<8x416xbf16> to vector<8x256xbf16>
    %133 = vector.extract_strided_slice %2 {offsets = [1, 2, 0, 0], sizes = [1, 1, 8, 8], strides = [1, 1, 1, 1]} : vector<4x9x8x8xbf16> to vector<1x1x8x8xbf16>
    %134 = vector.shape_cast %133 : vector<1x1x8x8xbf16> to vector<8x8xbf16>
    %cst_38 = arith.constant dense<0.000000e+00> : vector<8x256xf32>
    %135 = tpu.matmul %134, %132, %cst_38 {dimension_numbers = #tpu.dot_dimension_numbers<[1], [0], [0], [1], [0, 0, 1, 1], [], []>} : vector<8x8xbf16>, vector<8x256xbf16>, vector<8x256xf32> -> vector<8x256xf32>
    %c2_i32 = arith.constant 2 : i32
    %136 = vector.broadcast %c2_i32 : i32 to vector<1x256xi32>
    %137 = arith.addi %19, %136 : vector<1x256xi32>
    %c0_i32_39 = arith.constant 0 : i32
    %138 = vector.broadcast %c0_i32_39 : i32 to vector<1x256xi32>
    %139 = arith.cmpi sge, %137, %138 : vector<1x256xi32>
    %c2_i32_40 = arith.constant 2 : i32
    %140 = vector.broadcast %c2_i32_40 : i32 to vector<1x256xi32>
    %141 = arith.addi %19, %140 : vector<1x256xi32>
    %c16_i32_41 = arith.constant 16 : i32
    %142 = vector.broadcast %c16_i32_41 : i32 to vector<1x256xi32>
    %143 = arith.cmpi slt, %141, %142 : vector<1x256xi32>
    %144 = arith.andi %139, %143 : vector<1x256xi1>
    %cst_42 = arith.constant 0.000000e+00 : f32
    %145 = vector.shape_cast %144 : vector<1x256xi1> to vector<1x256xi1>
    %146 = vector.broadcast %145 : vector<1x256xi1> to vector<8x256xi1>
    %147 = vector.broadcast %cst_42 : f32 to vector<8x256xf32>
    %148 = arith.select %146, %135, %147 : vector<8x256xi1>, vector<8x256xf32>
    %149 = arith.addf %131, %148 : vector<8x256xf32>
    %150 = vector.extract_strided_slice %1 {offsets = [0, 78], sizes = [8, 256], strides = [1, 1]} : vector<8x416xbf16> to vector<8x256xbf16>
    %151 = vector.extract_strided_slice %2 {offsets = [1, 3, 0, 0], sizes = [1, 1, 8, 8], strides = [1, 1, 1, 1]} : vector<4x9x8x8xbf16> to vector<1x1x8x8xbf16>
    %152 = vector.shape_cast %151 : vector<1x1x8x8xbf16> to vector<8x8xbf16>
    %cst_43 = arith.constant dense<0.000000e+00> : vector<8x256xf32>
    %153 = tpu.matmul %152, %150, %cst_43 {dimension_numbers = #tpu.dot_dimension_numbers<[1], [0], [0], [1], [0, 0, 1, 1], [], []>} : vector<8x8xbf16>, vector<8x256xbf16>, vector<8x256xf32> -> vector<8x256xf32>
    %cst_44 = arith.constant 0.000000e+00 : f32
    %154 = vector.shape_cast %121 : vector<1x256xi1> to vector<1x256xi1>
    %155 = vector.broadcast %154 : vector<1x256xi1> to vector<8x256xi1>
    %156 = vector.broadcast %cst_44 : f32 to vector<8x256xf32>
    %157 = arith.select %155, %153, %156 : vector<8x256xi1>, vector<8x256xf32>
    %158 = arith.addf %149, %157 : vector<8x256xf32>
    %159 = vector.extract_strided_slice %1 {offsets = [0, 80], sizes = [8, 256], strides = [1, 1]} : vector<8x416xbf16> to vector<8x256xbf16>
    %160 = vector.extract_strided_slice %2 {offsets = [1, 4, 0, 0], sizes = [1, 1, 8, 8], strides = [1, 1, 1, 1]} : vector<4x9x8x8xbf16> to vector<1x1x8x8xbf16>
    %161 = vector.shape_cast %160 : vector<1x1x8x8xbf16> to vector<8x8xbf16>
    %cst_45 = arith.constant dense<0.000000e+00> : vector<8x256xf32>
    %162 = tpu.matmul %161, %159, %cst_45 {dimension_numbers = #tpu.dot_dimension_numbers<[1], [0], [0], [1], [0, 0, 1, 1], [], []>} : vector<8x8xbf16>, vector<8x256xbf16>, vector<8x256xf32> -> vector<8x256xf32>
    %163 = arith.addf %158, %162 : vector<8x256xf32>
    %164 = vector.extract_strided_slice %1 {offsets = [0, 82], sizes = [8, 256], strides = [1, 1]} : vector<8x416xbf16> to vector<8x256xbf16>
    %165 = vector.extract_strided_slice %2 {offsets = [1, 5, 0, 0], sizes = [1, 1, 8, 8], strides = [1, 1, 1, 1]} : vector<4x9x8x8xbf16> to vector<1x1x8x8xbf16>
    %166 = vector.shape_cast %165 : vector<1x1x8x8xbf16> to vector<8x8xbf16>
    %cst_46 = arith.constant dense<0.000000e+00> : vector<8x256xf32>
    %167 = tpu.matmul %166, %164, %cst_46 {dimension_numbers = #tpu.dot_dimension_numbers<[1], [0], [0], [1], [0, 0, 1, 1], [], []>} : vector<8x8xbf16>, vector<8x256xbf16>, vector<8x256xf32> -> vector<8x256xf32>
    %cst_47 = arith.constant 0.000000e+00 : f32
    %168 = vector.shape_cast %144 : vector<1x256xi1> to vector<1x256xi1>
    %169 = vector.broadcast %168 : vector<1x256xi1> to vector<8x256xi1>
    %170 = vector.broadcast %cst_47 : f32 to vector<8x256xf32>
    %171 = arith.select %169, %167, %170 : vector<8x256xi1>, vector<8x256xf32>
    %172 = arith.addf %163, %171 : vector<8x256xf32>
    %173 = vector.extract_strided_slice %1 {offsets = [0, 110], sizes = [8, 256], strides = [1, 1]} : vector<8x416xbf16> to vector<8x256xbf16>
    %174 = vector.extract_strided_slice %2 {offsets = [1, 6, 0, 0], sizes = [1, 1, 8, 8], strides = [1, 1, 1, 1]} : vector<4x9x8x8xbf16> to vector<1x1x8x8xbf16>
    %175 = vector.shape_cast %174 : vector<1x1x8x8xbf16> to vector<8x8xbf16>
    %cst_48 = arith.constant dense<0.000000e+00> : vector<8x256xf32>
    %176 = tpu.matmul %175, %173, %cst_48 {dimension_numbers = #tpu.dot_dimension_numbers<[1], [0], [0], [1], [0, 0, 1, 1], [], []>} : vector<8x8xbf16>, vector<8x256xbf16>, vector<8x256xf32> -> vector<8x256xf32>
    %cst_49 = arith.constant 0.000000e+00 : f32
    %177 = vector.shape_cast %121 : vector<1x256xi1> to vector<1x256xi1>
    %178 = vector.broadcast %177 : vector<1x256xi1> to vector<8x256xi1>
    %179 = vector.broadcast %cst_49 : f32 to vector<8x256xf32>
    %180 = arith.select %178, %176, %179 : vector<8x256xi1>, vector<8x256xf32>
    %181 = arith.addf %172, %180 : vector<8x256xf32>
    %182 = vector.extract_strided_slice %1 {offsets = [0, 112], sizes = [8, 256], strides = [1, 1]} : vector<8x416xbf16> to vector<8x256xbf16>
    %183 = vector.extract_strided_slice %2 {offsets = [1, 7, 0, 0], sizes = [1, 1, 8, 8], strides = [1, 1, 1, 1]} : vector<4x9x8x8xbf16> to vector<1x1x8x8xbf16>
    %184 = vector.shape_cast %183 : vector<1x1x8x8xbf16> to vector<8x8xbf16>
    %cst_50 = arith.constant dense<0.000000e+00> : vector<8x256xf32>
    %185 = tpu.matmul %184, %182, %cst_50 {dimension_numbers = #tpu.dot_dimension_numbers<[1], [0], [0], [1], [0, 0, 1, 1], [], []>} : vector<8x8xbf16>, vector<8x256xbf16>, vector<8x256xf32> -> vector<8x256xf32>
    %186 = arith.addf %181, %185 : vector<8x256xf32>
    %187 = vector.extract_strided_slice %1 {offsets = [0, 114], sizes = [8, 256], strides = [1, 1]} : vector<8x416xbf16> to vector<8x256xbf16>
    %188 = vector.extract_strided_slice %2 {offsets = [1, 8, 0, 0], sizes = [1, 1, 8, 8], strides = [1, 1, 1, 1]} : vector<4x9x8x8xbf16> to vector<1x1x8x8xbf16>
    %189 = vector.shape_cast %188 : vector<1x1x8x8xbf16> to vector<8x8xbf16>
    %cst_51 = arith.constant dense<0.000000e+00> : vector<8x256xf32>
    %190 = tpu.matmul %189, %187, %cst_51 {dimension_numbers = #tpu.dot_dimension_numbers<[1], [0], [0], [1], [0, 0, 1, 1], [], []>} : vector<8x8xbf16>, vector<8x256xbf16>, vector<8x256xf32> -> vector<8x256xf32>
    %cst_52 = arith.constant 0.000000e+00 : f32
    %191 = vector.shape_cast %144 : vector<1x256xi1> to vector<1x256xi1>
    %192 = vector.broadcast %191 : vector<1x256xi1> to vector<8x256xi1>
    %193 = vector.broadcast %cst_52 : f32 to vector<8x256xf32>
    %194 = arith.select %192, %190, %193 : vector<8x256xi1>, vector<8x256xf32>
    %195 = arith.addf %186, %194 : vector<8x256xf32>
    %cst_53 = arith.constant 0.000000e+00 : f32
    %196 = vector.broadcast %cst_53 : f32 to vector<8x256xf32>
    %197 = vector.extract_strided_slice %1 {offsets = [0, 29], sizes = [8, 256], strides = [1, 1]} : vector<8x416xbf16> to vector<8x256xbf16>
    %198 = vector.extract_strided_slice %2 {offsets = [2, 0, 0, 0], sizes = [1, 1, 8, 8], strides = [1, 1, 1, 1]} : vector<4x9x8x8xbf16> to vector<1x1x8x8xbf16>
    %199 = vector.shape_cast %198 : vector<1x1x8x8xbf16> to vector<8x8xbf16>
    %cst_54 = arith.constant dense<0.000000e+00> : vector<8x256xf32>
    %200 = tpu.matmul %199, %197, %cst_54 {dimension_numbers = #tpu.dot_dimension_numbers<[1], [0], [0], [1], [0, 0, 1, 1], [], []>} : vector<8x8xbf16>, vector<8x256xbf16>, vector<8x256xf32> -> vector<8x256xf32>
    %c-3_i32 = arith.constant -3 : i32
    %201 = vector.broadcast %c-3_i32 : i32 to vector<1x256xi32>
    %202 = arith.addi %19, %201 : vector<1x256xi32>
    %c0_i32_55 = arith.constant 0 : i32
    %203 = vector.broadcast %c0_i32_55 : i32 to vector<1x256xi32>
    %204 = arith.cmpi sge, %202, %203 : vector<1x256xi32>
    %c-3_i32_56 = arith.constant -3 : i32
    %205 = vector.broadcast %c-3_i32_56 : i32 to vector<1x256xi32>
    %206 = arith.addi %19, %205 : vector<1x256xi32>
    %c16_i32_57 = arith.constant 16 : i32
    %207 = vector.broadcast %c16_i32_57 : i32 to vector<1x256xi32>
    %208 = arith.cmpi slt, %206, %207 : vector<1x256xi32>
    %209 = arith.andi %204, %208 : vector<1x256xi1>
    %cst_58 = arith.constant 0.000000e+00 : f32
    %210 = vector.shape_cast %209 : vector<1x256xi1> to vector<1x256xi1>
    %211 = vector.broadcast %210 : vector<1x256xi1> to vector<8x256xi1>
    %212 = vector.broadcast %cst_58 : f32 to vector<8x256xf32>
    %213 = arith.select %211, %200, %212 : vector<8x256xi1>, vector<8x256xf32>
    %214 = arith.addf %196, %213 : vector<8x256xf32>
    %215 = vector.extract_strided_slice %1 {offsets = [0, 32], sizes = [8, 256], strides = [1, 1]} : vector<8x416xbf16> to vector<8x256xbf16>
    %216 = vector.extract_strided_slice %2 {offsets = [2, 1, 0, 0], sizes = [1, 1, 8, 8], strides = [1, 1, 1, 1]} : vector<4x9x8x8xbf16> to vector<1x1x8x8xbf16>
    %217 = vector.shape_cast %216 : vector<1x1x8x8xbf16> to vector<8x8xbf16>
    %cst_59 = arith.constant dense<0.000000e+00> : vector<8x256xf32>
    %218 = tpu.matmul %217, %215, %cst_59 {dimension_numbers = #tpu.dot_dimension_numbers<[1], [0], [0], [1], [0, 0, 1, 1], [], []>} : vector<8x8xbf16>, vector<8x256xbf16>, vector<8x256xf32> -> vector<8x256xf32>
    %219 = arith.addf %214, %218 : vector<8x256xf32>
    %220 = vector.extract_strided_slice %1 {offsets = [0, 35], sizes = [8, 256], strides = [1, 1]} : vector<8x416xbf16> to vector<8x256xbf16>
    %221 = vector.extract_strided_slice %2 {offsets = [2, 2, 0, 0], sizes = [1, 1, 8, 8], strides = [1, 1, 1, 1]} : vector<4x9x8x8xbf16> to vector<1x1x8x8xbf16>
    %222 = vector.shape_cast %221 : vector<1x1x8x8xbf16> to vector<8x8xbf16>
    %cst_60 = arith.constant dense<0.000000e+00> : vector<8x256xf32>
    %223 = tpu.matmul %222, %220, %cst_60 {dimension_numbers = #tpu.dot_dimension_numbers<[1], [0], [0], [1], [0, 0, 1, 1], [], []>} : vector<8x8xbf16>, vector<8x256xbf16>, vector<8x256xf32> -> vector<8x256xf32>
    %c3_i32 = arith.constant 3 : i32
    %224 = vector.broadcast %c3_i32 : i32 to vector<1x256xi32>
    %225 = arith.addi %19, %224 : vector<1x256xi32>
    %c0_i32_61 = arith.constant 0 : i32
    %226 = vector.broadcast %c0_i32_61 : i32 to vector<1x256xi32>
    %227 = arith.cmpi sge, %225, %226 : vector<1x256xi32>
    %c3_i32_62 = arith.constant 3 : i32
    %228 = vector.broadcast %c3_i32_62 : i32 to vector<1x256xi32>
    %229 = arith.addi %19, %228 : vector<1x256xi32>
    %c16_i32_63 = arith.constant 16 : i32
    %230 = vector.broadcast %c16_i32_63 : i32 to vector<1x256xi32>
    %231 = arith.cmpi slt, %229, %230 : vector<1x256xi32>
    %232 = arith.andi %227, %231 : vector<1x256xi1>
    %cst_64 = arith.constant 0.000000e+00 : f32
    %233 = vector.shape_cast %232 : vector<1x256xi1> to vector<1x256xi1>
    %234 = vector.broadcast %233 : vector<1x256xi1> to vector<8x256xi1>
    %235 = vector.broadcast %cst_64 : f32 to vector<8x256xf32>
    %236 = arith.select %234, %223, %235 : vector<8x256xi1>, vector<8x256xf32>
    %237 = arith.addf %219, %236 : vector<8x256xf32>
    %238 = vector.extract_strided_slice %1 {offsets = [0, 77], sizes = [8, 256], strides = [1, 1]} : vector<8x416xbf16> to vector<8x256xbf16>
    %239 = vector.extract_strided_slice %2 {offsets = [2, 3, 0, 0], sizes = [1, 1, 8, 8], strides = [1, 1, 1, 1]} : vector<4x9x8x8xbf16> to vector<1x1x8x8xbf16>
    %240 = vector.shape_cast %239 : vector<1x1x8x8xbf16> to vector<8x8xbf16>
    %cst_65 = arith.constant dense<0.000000e+00> : vector<8x256xf32>
    %241 = tpu.matmul %240, %238, %cst_65 {dimension_numbers = #tpu.dot_dimension_numbers<[1], [0], [0], [1], [0, 0, 1, 1], [], []>} : vector<8x8xbf16>, vector<8x256xbf16>, vector<8x256xf32> -> vector<8x256xf32>
    %cst_66 = arith.constant 0.000000e+00 : f32
    %242 = vector.shape_cast %209 : vector<1x256xi1> to vector<1x256xi1>
    %243 = vector.broadcast %242 : vector<1x256xi1> to vector<8x256xi1>
    %244 = vector.broadcast %cst_66 : f32 to vector<8x256xf32>
    %245 = arith.select %243, %241, %244 : vector<8x256xi1>, vector<8x256xf32>
    %246 = arith.addf %237, %245 : vector<8x256xf32>
    %247 = vector.extract_strided_slice %1 {offsets = [0, 80], sizes = [8, 256], strides = [1, 1]} : vector<8x416xbf16> to vector<8x256xbf16>
    %248 = vector.extract_strided_slice %2 {offsets = [2, 4, 0, 0], sizes = [1, 1, 8, 8], strides = [1, 1, 1, 1]} : vector<4x9x8x8xbf16> to vector<1x1x8x8xbf16>
    %249 = vector.shape_cast %248 : vector<1x1x8x8xbf16> to vector<8x8xbf16>
    %cst_67 = arith.constant dense<0.000000e+00> : vector<8x256xf32>
    %250 = tpu.matmul %249, %247, %cst_67 {dimension_numbers = #tpu.dot_dimension_numbers<[1], [0], [0], [1], [0, 0, 1, 1], [], []>} : vector<8x8xbf16>, vector<8x256xbf16>, vector<8x256xf32> -> vector<8x256xf32>
    %251 = arith.addf %246, %250 : vector<8x256xf32>
    %252 = vector.extract_strided_slice %1 {offsets = [0, 83], sizes = [8, 256], strides = [1, 1]} : vector<8x416xbf16> to vector<8x256xbf16>
    %253 = vector.extract_strided_slice %2 {offsets = [2, 5, 0, 0], sizes = [1, 1, 8, 8], strides = [1, 1, 1, 1]} : vector<4x9x8x8xbf16> to vector<1x1x8x8xbf16>
    %254 = vector.shape_cast %253 : vector<1x1x8x8xbf16> to vector<8x8xbf16>
    %cst_68 = arith.constant dense<0.000000e+00> : vector<8x256xf32>
    %255 = tpu.matmul %254, %252, %cst_68 {dimension_numbers = #tpu.dot_dimension_numbers<[1], [0], [0], [1], [0, 0, 1, 1], [], []>} : vector<8x8xbf16>, vector<8x256xbf16>, vector<8x256xf32> -> vector<8x256xf32>
    %cst_69 = arith.constant 0.000000e+00 : f32
    %256 = vector.shape_cast %232 : vector<1x256xi1> to vector<1x256xi1>
    %257 = vector.broadcast %256 : vector<1x256xi1> to vector<8x256xi1>
    %258 = vector.broadcast %cst_69 : f32 to vector<8x256xf32>
    %259 = arith.select %257, %255, %258 : vector<8x256xi1>, vector<8x256xf32>
    %260 = arith.addf %251, %259 : vector<8x256xf32>
    %261 = vector.extract_strided_slice %1 {offsets = [0, 125], sizes = [8, 256], strides = [1, 1]} : vector<8x416xbf16> to vector<8x256xbf16>
    %262 = vector.extract_strided_slice %2 {offsets = [2, 6, 0, 0], sizes = [1, 1, 8, 8], strides = [1, 1, 1, 1]} : vector<4x9x8x8xbf16> to vector<1x1x8x8xbf16>
    %263 = vector.shape_cast %262 : vector<1x1x8x8xbf16> to vector<8x8xbf16>
    %cst_70 = arith.constant dense<0.000000e+00> : vector<8x256xf32>
    %264 = tpu.matmul %263, %261, %cst_70 {dimension_numbers = #tpu.dot_dimension_numbers<[1], [0], [0], [1], [0, 0, 1, 1], [], []>} : vector<8x8xbf16>, vector<8x256xbf16>, vector<8x256xf32> -> vector<8x256xf32>
    %cst_71 = arith.constant 0.000000e+00 : f32
    %265 = vector.shape_cast %209 : vector<1x256xi1> to vector<1x256xi1>
    %266 = vector.broadcast %265 : vector<1x256xi1> to vector<8x256xi1>
    %267 = vector.broadcast %cst_71 : f32 to vector<8x256xf32>
    %268 = arith.select %266, %264, %267 : vector<8x256xi1>, vector<8x256xf32>
    %269 = arith.addf %260, %268 : vector<8x256xf32>
    %270 = vector.extract_strided_slice %1 {offsets = [0, 128], sizes = [8, 256], strides = [1, 1]} : vector<8x416xbf16> to vector<8x256xbf16>
    %271 = vector.extract_strided_slice %2 {offsets = [2, 7, 0, 0], sizes = [1, 1, 8, 8], strides = [1, 1, 1, 1]} : vector<4x9x8x8xbf16> to vector<1x1x8x8xbf16>
    %272 = vector.shape_cast %271 : vector<1x1x8x8xbf16> to vector<8x8xbf16>
    %cst_72 = arith.constant dense<0.000000e+00> : vector<8x256xf32>
    %273 = tpu.matmul %272, %270, %cst_72 {dimension_numbers = #tpu.dot_dimension_numbers<[1], [0], [0], [1], [0, 0, 1, 1], [], []>} : vector<8x8xbf16>, vector<8x256xbf16>, vector<8x256xf32> -> vector<8x256xf32>
    %274 = arith.addf %269, %273 : vector<8x256xf32>
    %275 = vector.extract_strided_slice %1 {offsets = [0, 131], sizes = [8, 256], strides = [1, 1]} : vector<8x416xbf16> to vector<8x256xbf16>
    %276 = vector.extract_strided_slice %2 {offsets = [2, 8, 0, 0], sizes = [1, 1, 8, 8], strides = [1, 1, 1, 1]} : vector<4x9x8x8xbf16> to vector<1x1x8x8xbf16>
    %277 = vector.shape_cast %276 : vector<1x1x8x8xbf16> to vector<8x8xbf16>
    %cst_73 = arith.constant dense<0.000000e+00> : vector<8x256xf32>
    %278 = tpu.matmul %277, %275, %cst_73 {dimension_numbers = #tpu.dot_dimension_numbers<[1], [0], [0], [1], [0, 0, 1, 1], [], []>} : vector<8x8xbf16>, vector<8x256xbf16>, vector<8x256xf32> -> vector<8x256xf32>
    %cst_74 = arith.constant 0.000000e+00 : f32
    %279 = vector.shape_cast %232 : vector<1x256xi1> to vector<1x256xi1>
    %280 = vector.broadcast %279 : vector<1x256xi1> to vector<8x256xi1>
    %281 = vector.broadcast %cst_74 : f32 to vector<8x256xf32>
    %282 = arith.select %280, %278, %281 : vector<8x256xi1>, vector<8x256xf32>
    %283 = arith.addf %274, %282 : vector<8x256xf32>
    %cst_75 = arith.constant 0.000000e+00 : f32
    %284 = vector.broadcast %cst_75 : f32 to vector<8x256xf32>
    %285 = vector.extract_strided_slice %1 {offsets = [0, 12], sizes = [8, 256], strides = [1, 1]} : vector<8x416xbf16> to vector<8x256xbf16>
    %286 = vector.extract_strided_slice %2 {offsets = [3, 0, 0, 0], sizes = [1, 1, 8, 8], strides = [1, 1, 1, 1]} : vector<4x9x8x8xbf16> to vector<1x1x8x8xbf16>
    %287 = vector.shape_cast %286 : vector<1x1x8x8xbf16> to vector<8x8xbf16>
    %cst_76 = arith.constant dense<0.000000e+00> : vector<8x256xf32>
    %288 = tpu.matmul %287, %285, %cst_76 {dimension_numbers = #tpu.dot_dimension_numbers<[1], [0], [0], [1], [0, 0, 1, 1], [], []>} : vector<8x8xbf16>, vector<8x256xbf16>, vector<8x256xf32> -> vector<8x256xf32>
    %c-4_i32 = arith.constant -4 : i32
    %289 = vector.broadcast %c-4_i32 : i32 to vector<1x256xi32>
    %290 = arith.addi %19, %289 : vector<1x256xi32>
    %c0_i32_77 = arith.constant 0 : i32
    %291 = vector.broadcast %c0_i32_77 : i32 to vector<1x256xi32>
    %292 = arith.cmpi sge, %290, %291 : vector<1x256xi32>
    %c-4_i32_78 = arith.constant -4 : i32
    %293 = vector.broadcast %c-4_i32_78 : i32 to vector<1x256xi32>
    %294 = arith.addi %19, %293 : vector<1x256xi32>
    %c16_i32_79 = arith.constant 16 : i32
    %295 = vector.broadcast %c16_i32_79 : i32 to vector<1x256xi32>
    %296 = arith.cmpi slt, %294, %295 : vector<1x256xi32>
    %297 = arith.andi %292, %296 : vector<1x256xi1>
    %cst_80 = arith.constant 0.000000e+00 : f32
    %298 = vector.shape_cast %297 : vector<1x256xi1> to vector<1x256xi1>
    %299 = vector.broadcast %298 : vector<1x256xi1> to vector<8x256xi1>
    %300 = vector.broadcast %cst_80 : f32 to vector<8x256xf32>
    %301 = arith.select %299, %288, %300 : vector<8x256xi1>, vector<8x256xf32>
    %302 = arith.addf %284, %301 : vector<8x256xf32>
    %303 = vector.extract_strided_slice %1 {offsets = [0, 16], sizes = [8, 256], strides = [1, 1]} : vector<8x416xbf16> to vector<8x256xbf16>
    %304 = vector.extract_strided_slice %2 {offsets = [3, 1, 0, 0], sizes = [1, 1, 8, 8], strides = [1, 1, 1, 1]} : vector<4x9x8x8xbf16> to vector<1x1x8x8xbf16>
    %305 = vector.shape_cast %304 : vector<1x1x8x8xbf16> to vector<8x8xbf16>
    %cst_81 = arith.constant dense<0.000000e+00> : vector<8x256xf32>
    %306 = tpu.matmul %305, %303, %cst_81 {dimension_numbers = #tpu.dot_dimension_numbers<[1], [0], [0], [1], [0, 0, 1, 1], [], []>} : vector<8x8xbf16>, vector<8x256xbf16>, vector<8x256xf32> -> vector<8x256xf32>
    %307 = arith.addf %302, %306 : vector<8x256xf32>
    %308 = vector.extract_strided_slice %1 {offsets = [0, 20], sizes = [8, 256], strides = [1, 1]} : vector<8x416xbf16> to vector<8x256xbf16>
    %309 = vector.extract_strided_slice %2 {offsets = [3, 2, 0, 0], sizes = [1, 1, 8, 8], strides = [1, 1, 1, 1]} : vector<4x9x8x8xbf16> to vector<1x1x8x8xbf16>
    %310 = vector.shape_cast %309 : vector<1x1x8x8xbf16> to vector<8x8xbf16>
    %cst_82 = arith.constant dense<0.000000e+00> : vector<8x256xf32>
    %311 = tpu.matmul %310, %308, %cst_82 {dimension_numbers = #tpu.dot_dimension_numbers<[1], [0], [0], [1], [0, 0, 1, 1], [], []>} : vector<8x8xbf16>, vector<8x256xbf16>, vector<8x256xf32> -> vector<8x256xf32>
    %c4_i32 = arith.constant 4 : i32
    %312 = vector.broadcast %c4_i32 : i32 to vector<1x256xi32>
    %313 = arith.addi %19, %312 : vector<1x256xi32>
    %c0_i32_83 = arith.constant 0 : i32
    %314 = vector.broadcast %c0_i32_83 : i32 to vector<1x256xi32>
    %315 = arith.cmpi sge, %313, %314 : vector<1x256xi32>
    %c4_i32_84 = arith.constant 4 : i32
    %316 = vector.broadcast %c4_i32_84 : i32 to vector<1x256xi32>
    %317 = arith.addi %19, %316 : vector<1x256xi32>
    %c16_i32_85 = arith.constant 16 : i32
    %318 = vector.broadcast %c16_i32_85 : i32 to vector<1x256xi32>
    %319 = arith.cmpi slt, %317, %318 : vector<1x256xi32>
    %320 = arith.andi %315, %319 : vector<1x256xi1>
    %cst_86 = arith.constant 0.000000e+00 : f32
    %321 = vector.shape_cast %320 : vector<1x256xi1> to vector<1x256xi1>
    %322 = vector.broadcast %321 : vector<1x256xi1> to vector<8x256xi1>
    %323 = vector.broadcast %cst_86 : f32 to vector<8x256xf32>
    %324 = arith.select %322, %311, %323 : vector<8x256xi1>, vector<8x256xf32>
    %325 = arith.addf %307, %324 : vector<8x256xf32>
    %326 = vector.extract_strided_slice %1 {offsets = [0, 76], sizes = [8, 256], strides = [1, 1]} : vector<8x416xbf16> to vector<8x256xbf16>
    %327 = vector.extract_strided_slice %2 {offsets = [3, 3, 0, 0], sizes = [1, 1, 8, 8], strides = [1, 1, 1, 1]} : vector<4x9x8x8xbf16> to vector<1x1x8x8xbf16>
    %328 = vector.shape_cast %327 : vector<1x1x8x8xbf16> to vector<8x8xbf16>
    %cst_87 = arith.constant dense<0.000000e+00> : vector<8x256xf32>
    %329 = tpu.matmul %328, %326, %cst_87 {dimension_numbers = #tpu.dot_dimension_numbers<[1], [0], [0], [1], [0, 0, 1, 1], [], []>} : vector<8x8xbf16>, vector<8x256xbf16>, vector<8x256xf32> -> vector<8x256xf32>
    %cst_88 = arith.constant 0.000000e+00 : f32
    %330 = vector.shape_cast %297 : vector<1x256xi1> to vector<1x256xi1>
    %331 = vector.broadcast %330 : vector<1x256xi1> to vector<8x256xi1>
    %332 = vector.broadcast %cst_88 : f32 to vector<8x256xf32>
    %333 = arith.select %331, %329, %332 : vector<8x256xi1>, vector<8x256xf32>
    %334 = arith.addf %325, %333 : vector<8x256xf32>
    %335 = vector.extract_strided_slice %1 {offsets = [0, 80], sizes = [8, 256], strides = [1, 1]} : vector<8x416xbf16> to vector<8x256xbf16>
    %336 = vector.extract_strided_slice %2 {offsets = [3, 4, 0, 0], sizes = [1, 1, 8, 8], strides = [1, 1, 1, 1]} : vector<4x9x8x8xbf16> to vector<1x1x8x8xbf16>
    %337 = vector.shape_cast %336 : vector<1x1x8x8xbf16> to vector<8x8xbf16>
    %cst_89 = arith.constant dense<0.000000e+00> : vector<8x256xf32>
    %338 = tpu.matmul %337, %335, %cst_89 {dimension_numbers = #tpu.dot_dimension_numbers<[1], [0], [0], [1], [0, 0, 1, 1], [], []>} : vector<8x8xbf16>, vector<8x256xbf16>, vector<8x256xf32> -> vector<8x256xf32>
    %339 = arith.addf %334, %338 : vector<8x256xf32>
    %340 = vector.extract_strided_slice %1 {offsets = [0, 84], sizes = [8, 256], strides = [1, 1]} : vector<8x416xbf16> to vector<8x256xbf16>
    %341 = vector.extract_strided_slice %2 {offsets = [3, 5, 0, 0], sizes = [1, 1, 8, 8], strides = [1, 1, 1, 1]} : vector<4x9x8x8xbf16> to vector<1x1x8x8xbf16>
    %342 = vector.shape_cast %341 : vector<1x1x8x8xbf16> to vector<8x8xbf16>
    %cst_90 = arith.constant dense<0.000000e+00> : vector<8x256xf32>
    %343 = tpu.matmul %342, %340, %cst_90 {dimension_numbers = #tpu.dot_dimension_numbers<[1], [0], [0], [1], [0, 0, 1, 1], [], []>} : vector<8x8xbf16>, vector<8x256xbf16>, vector<8x256xf32> -> vector<8x256xf32>
    %cst_91 = arith.constant 0.000000e+00 : f32
    %344 = vector.shape_cast %320 : vector<1x256xi1> to vector<1x256xi1>
    %345 = vector.broadcast %344 : vector<1x256xi1> to vector<8x256xi1>
    %346 = vector.broadcast %cst_91 : f32 to vector<8x256xf32>
    %347 = arith.select %345, %343, %346 : vector<8x256xi1>, vector<8x256xf32>
    %348 = arith.addf %339, %347 : vector<8x256xf32>
    %349 = vector.extract_strided_slice %1 {offsets = [0, 140], sizes = [8, 256], strides = [1, 1]} : vector<8x416xbf16> to vector<8x256xbf16>
    %350 = vector.extract_strided_slice %2 {offsets = [3, 6, 0, 0], sizes = [1, 1, 8, 8], strides = [1, 1, 1, 1]} : vector<4x9x8x8xbf16> to vector<1x1x8x8xbf16>
    %351 = vector.shape_cast %350 : vector<1x1x8x8xbf16> to vector<8x8xbf16>
    %cst_92 = arith.constant dense<0.000000e+00> : vector<8x256xf32>
    %352 = tpu.matmul %351, %349, %cst_92 {dimension_numbers = #tpu.dot_dimension_numbers<[1], [0], [0], [1], [0, 0, 1, 1], [], []>} : vector<8x8xbf16>, vector<8x256xbf16>, vector<8x256xf32> -> vector<8x256xf32>
    %cst_93 = arith.constant 0.000000e+00 : f32
    %353 = vector.shape_cast %297 : vector<1x256xi1> to vector<1x256xi1>
    %354 = vector.broadcast %353 : vector<1x256xi1> to vector<8x256xi1>
    %355 = vector.broadcast %cst_93 : f32 to vector<8x256xf32>
    %356 = arith.select %354, %352, %355 : vector<8x256xi1>, vector<8x256xf32>
    %357 = arith.addf %348, %356 : vector<8x256xf32>
    %358 = vector.extract_strided_slice %1 {offsets = [0, 144], sizes = [8, 256], strides = [1, 1]} : vector<8x416xbf16> to vector<8x256xbf16>
    %359 = vector.extract_strided_slice %2 {offsets = [3, 7, 0, 0], sizes = [1, 1, 8, 8], strides = [1, 1, 1, 1]} : vector<4x9x8x8xbf16> to vector<1x1x8x8xbf16>
    %360 = vector.shape_cast %359 : vector<1x1x8x8xbf16> to vector<8x8xbf16>
    %cst_94 = arith.constant dense<0.000000e+00> : vector<8x256xf32>
    %361 = tpu.matmul %360, %358, %cst_94 {dimension_numbers = #tpu.dot_dimension_numbers<[1], [0], [0], [1], [0, 0, 1, 1], [], []>} : vector<8x8xbf16>, vector<8x256xbf16>, vector<8x256xf32> -> vector<8x256xf32>
    %362 = arith.addf %357, %361 : vector<8x256xf32>
    %363 = vector.extract_strided_slice %1 {offsets = [0, 148], sizes = [8, 256], strides = [1, 1]} : vector<8x416xbf16> to vector<8x256xbf16>
    %364 = vector.extract_strided_slice %2 {offsets = [3, 8, 0, 0], sizes = [1, 1, 8, 8], strides = [1, 1, 1, 1]} : vector<4x9x8x8xbf16> to vector<1x1x8x8xbf16>
    %365 = vector.shape_cast %364 : vector<1x1x8x8xbf16> to vector<8x8xbf16>
    %cst_95 = arith.constant dense<0.000000e+00> : vector<8x256xf32>
    %366 = tpu.matmul %365, %363, %cst_95 {dimension_numbers = #tpu.dot_dimension_numbers<[1], [0], [0], [1], [0, 0, 1, 1], [], []>} : vector<8x8xbf16>, vector<8x256xbf16>, vector<8x256xf32> -> vector<8x256xf32>
    %cst_96 = arith.constant 0.000000e+00 : f32
    %367 = vector.shape_cast %320 : vector<1x256xi1> to vector<1x256xi1>
    %368 = vector.broadcast %367 : vector<1x256xi1> to vector<8x256xi1>
    %369 = vector.broadcast %cst_96 : f32 to vector<8x256xf32>
    %370 = arith.select %368, %366, %369 : vector<8x256xi1>, vector<8x256xf32>
    %371 = arith.addf %362, %370 : vector<8x256xf32>
    %cst_97 = arith.constant dense<0xFF800000> : vector<8xf32>
    %372 = vector.multi_reduction <maximumf>, %107, %cst_97 [1] : vector<8x256xf32> to vector<8xf32>
    %373 = vector.shape_cast %372 : vector<8xf32> to vector<8x1xf32>
    %cst_98 = arith.constant dense<0xFF800000> : vector<8xf32>
    %374 = vector.multi_reduction <maximumf>, %195, %cst_98 [1] : vector<8x256xf32> to vector<8xf32>
    %375 = vector.shape_cast %374 : vector<8xf32> to vector<8x1xf32>
    %cst_99 = arith.constant dense<0xFF800000> : vector<8xf32>
    %376 = vector.multi_reduction <maximumf>, %283, %cst_99 [1] : vector<8x256xf32> to vector<8xf32>
    %377 = vector.shape_cast %376 : vector<8xf32> to vector<8x1xf32>
    %cst_100 = arith.constant dense<0xFF800000> : vector<8xf32>
    %378 = vector.multi_reduction <maximumf>, %371, %cst_100 [1] : vector<8x256xf32> to vector<8xf32>
    %379 = vector.shape_cast %378 : vector<8xf32> to vector<8x1xf32>
    %380 = tpu.concatenate %373, %375, %377, %379 in 1 : vector<8x1xf32>, vector<8x1xf32>, vector<8x1xf32>, vector<8x1xf32> -> vector<8x4xf32>
    %cst_101 = arith.constant dense<0.000000e+00> : vector<8xf32>
    %381 = vector.multi_reduction <add>, %107, %cst_101 [1] : vector<8x256xf32> to vector<8xf32>
    %382 = vector.shape_cast %381 : vector<8xf32> to vector<8x1xf32>
    %cst_102 = arith.constant dense<0.000000e+00> : vector<8xf32>
    %383 = vector.multi_reduction <add>, %195, %cst_102 [1] : vector<8x256xf32> to vector<8xf32>
    %384 = vector.shape_cast %383 : vector<8xf32> to vector<8x1xf32>
    %cst_103 = arith.constant dense<0.000000e+00> : vector<8xf32>
    %385 = vector.multi_reduction <add>, %283, %cst_103 [1] : vector<8x256xf32> to vector<8xf32>
    %386 = vector.shape_cast %385 : vector<8xf32> to vector<8x1xf32>
    %cst_104 = arith.constant dense<0.000000e+00> : vector<8xf32>
    %387 = vector.multi_reduction <add>, %371, %cst_104 [1] : vector<8x256xf32> to vector<8xf32>
    %388 = vector.shape_cast %387 : vector<8xf32> to vector<8x1xf32>
    %389 = tpu.concatenate %382, %384, %386, %388 in 1 : vector<8x1xf32>, vector<8x1xf32>, vector<8x1xf32>, vector<8x1xf32> -> vector<8x4xf32>
    %cst_105 = arith.constant 3.906250e-03 : f32
    %390 = vector.broadcast %cst_105 : f32 to vector<8x4xf32>
    %391 = arith.mulf %389, %390 : vector<8x4xf32>
    %c0_106 = arith.constant 0 : index
    %c0_107 = arith.constant 0 : index
    %392 = vector.load %arg3[%c0_106, %c0_107] : memref<2x8xf32, #tpu.memory_space<vmem>>, vector<2x8xf32>
    %cst_108 = arith.constant dense<0.000000e+00> : vector<2x4xf32>
    %393 = tpu.matmul %392, %380, %cst_108 {dimension_numbers = #tpu.dot_dimension_numbers<[1], [0], [0], [1], [0, 0, 1, 1], [], []>} : vector<2x8xf32>, vector<8x4xf32>, vector<2x4xf32> -> vector<2x4xf32>
    %cst_109 = arith.constant 0.000000e+00 : f32
    %394 = vector.broadcast %cst_109 : f32 to vector<2x4xf32>
    %395 = arith.maximumf %393, %394 : vector<2x4xf32>
    %c0_110 = arith.constant 0 : index
    %c0_111 = arith.constant 0 : index
    %396 = vector.load %arg3[%c0_110, %c0_111] : memref<2x8xf32, #tpu.memory_space<vmem>>, vector<2x8xf32>
    %cst_112 = arith.constant dense<0.000000e+00> : vector<2x4xf32>
    %397 = tpu.matmul %396, %391, %cst_112 {dimension_numbers = #tpu.dot_dimension_numbers<[1], [0], [0], [1], [0, 0, 1, 1], [], []>} : vector<2x8xf32>, vector<8x4xf32>, vector<2x4xf32> -> vector<2x4xf32>
    %cst_113 = arith.constant 0.000000e+00 : f32
    %398 = vector.broadcast %cst_113 : f32 to vector<2x4xf32>
    %399 = arith.maximumf %397, %398 : vector<2x4xf32>
    %c0_114 = arith.constant 0 : index
    %c0_115 = arith.constant 0 : index
    %400 = vector.load %arg4[%c0_114, %c0_115] : memref<8x2xf32, #tpu.memory_space<vmem>>, vector<8x2xf32>
    %401 = arith.addf %395, %399 : vector<2x4xf32>
    %cst_116 = arith.constant dense<0.000000e+00> : vector<8x4xf32>
    %402 = tpu.matmul %400, %401, %cst_116 {dimension_numbers = #tpu.dot_dimension_numbers<[1], [0], [0], [1], [0, 0, 1, 1], [], []>} : vector<8x2xf32>, vector<2x4xf32>, vector<8x4xf32> -> vector<8x4xf32>
    %403 = arith.negf %402 : vector<8x4xf32>
    %404 = math.exp %403 : vector<8x4xf32>
    %cst_117 = arith.constant 1.000000e+00 : f32
    %405 = vector.broadcast %cst_117 : f32 to vector<8x4xf32>
    %406 = arith.addf %405, %404 : vector<8x4xf32>
    %407 = arith.divf %405, %406 : vector<8x4xf32>
    %cst_118 = arith.constant dense<0xFF800000> : vector<8xf32>
    %408 = vector.multi_reduction <maximumf>, %407, %cst_118 [1] : vector<8x4xf32> to vector<8xf32>
    %409 = vector.shape_cast %408 : vector<8xf32> to vector<8x1xf32>
    %410 = vector.broadcast %409 : vector<8x1xf32> to vector<8x4xf32>
    %411 = arith.subf %407, %410 : vector<8x4xf32>
    %412 = math.exp %411 : vector<8x4xf32>
    %cst_119 = arith.constant dense<0.000000e+00> : vector<8xf32>
    %413 = vector.multi_reduction <add>, %412, %cst_119 [1] : vector<8x4xf32> to vector<8xf32>
    %414 = vector.shape_cast %413 : vector<8xf32> to vector<8x1xf32>
    %415 = vector.broadcast %414 : vector<8x1xf32> to vector<8x4xf32>
    %416 = arith.divf %412, %415 : vector<8x4xf32>
    %417 = vector.extract_strided_slice %416 {offsets = [0, 0], sizes = [8, 1], strides = [1, 1]} : vector<8x4xf32> to vector<8x1xf32>
    %418 = vector.broadcast %417 : vector<8x1xf32> to vector<8x256xf32>
    %419 = arith.mulf %107, %418 : vector<8x256xf32>
    %c0_120 = arith.constant 0 : index
    %c24 = arith.constant 24 : index
    %c0_121 = arith.constant 0 : index
    %420 = vector.load %arg5[%c0_120, %c24, %c0_121] : memref<1x32x256xf32, #tpu.memory_space<vmem>>, vector<1x8x256xf32>
    %421 = vector.shape_cast %420 : vector<1x8x256xf32> to vector<8x256xf32>
    %422 = vector.shape_cast %419 : vector<8x256xf32> to vector<1x8x256xf32>
    tpu.vector_store %arg5[%c0_120, %c24, %c0_121], %422 {strides = array<i32>} : memref<1x32x256xf32, #tpu.memory_space<vmem>>, vector<1x8x256xf32>,
    %423 = vector.extract_strided_slice %416 {offsets = [0, 1], sizes = [8, 1], strides = [1, 1]} : vector<8x4xf32> to vector<8x1xf32>
    %424 = vector.broadcast %423 : vector<8x1xf32> to vector<8x256xf32>
    %425 = arith.mulf %195, %424 : vector<8x256xf32>
    %c0_122 = arith.constant 0 : index
    %c16 = arith.constant 16 : index
    %c0_123 = arith.constant 0 : index
    %426 = vector.load %arg5[%c0_122, %c16, %c0_123] : memref<1x32x256xf32, #tpu.memory_space<vmem>>, vector<1x8x256xf32>
    %427 = vector.shape_cast %426 : vector<1x8x256xf32> to vector<8x256xf32>
    %428 = vector.shape_cast %425 : vector<8x256xf32> to vector<1x8x256xf32>
    tpu.vector_store %arg5[%c0_122, %c16, %c0_123], %428 {strides = array<i32>} : memref<1x32x256xf32, #tpu.memory_space<vmem>>, vector<1x8x256xf32>,
    %429 = vector.extract_strided_slice %416 {offsets = [0, 2], sizes = [8, 1], strides = [1, 1]} : vector<8x4xf32> to vector<8x1xf32>
    %430 = vector.broadcast %429 : vector<8x1xf32> to vector<8x256xf32>
    %431 = arith.mulf %283, %430 : vector<8x256xf32>
    %c0_124 = arith.constant 0 : index
    %c8 = arith.constant 8 : index
    %c0_125 = arith.constant 0 : index
    %432 = vector.load %arg5[%c0_124, %c8, %c0_125] : memref<1x32x256xf32, #tpu.memory_space<vmem>>, vector<1x8x256xf32>
    %433 = vector.shape_cast %432 : vector<1x8x256xf32> to vector<8x256xf32>
    %434 = vector.shape_cast %431 : vector<8x256xf32> to vector<1x8x256xf32>
    tpu.vector_store %arg5[%c0_124, %c8, %c0_125], %434 {strides = array<i32>} : memref<1x32x256xf32, #tpu.memory_space<vmem>>, vector<1x8x256xf32>,
    %435 = vector.extract_strided_slice %416 {offsets = [0, 3], sizes = [8, 1], strides = [1, 1]} : vector<8x4xf32> to vector<8x1xf32>
    %436 = vector.broadcast %435 : vector<8x1xf32> to vector<8x256xf32>
    %437 = arith.mulf %371, %436 : vector<8x256xf32>
    %c0_126 = arith.constant 0 : index
    %c0_127 = arith.constant 0 : index
    %c0_128 = arith.constant 0 : index
    %438 = vector.load %arg5[%c0_126, %c0_127, %c0_128] : memref<1x32x256xf32, #tpu.memory_space<vmem>>, vector<1x8x256xf32>
    %439 = vector.shape_cast %438 : vector<1x8x256xf32> to vector<8x256xf32>
    %440 = vector.shape_cast %437 : vector<8x256xf32> to vector<1x8x256xf32>
    tpu.vector_store %arg5[%c0_126, %c0_127, %c0_128], %440 {strides = array<i32>} : memref<1x32x256xf32, #tpu.memory_space<vmem>>, vector<1x8x256xf32>,
    return
  }
  func.func @transform_0(%arg0: i32) -> (i32, i32, i32) {
    %c0_i32 = arith.constant 0 : i32
    %c0_i32_0 = arith.constant 0 : i32
    %c0_i32_1 = arith.constant 0 : i32
    return %arg0, %c0_i32, %c0_i32_0 : i32, i32, i32
  }
  func.func @transform_1(%arg0: i32) -> (i32, i32, i32, i32) {
    %c0_i32 = arith.constant 0 : i32
    %c0_i32_0 = arith.constant 0 : i32
    %c0_i32_1 = arith.constant 0 : i32
    %c0_i32_2 = arith.constant 0 : i32
    %c0_i32_3 = arith.constant 0 : i32
    return %c0_i32, %c0_i32_0, %c0_i32_1, %c0_i32_2 : i32, i32, i32, i32
  }
  func.func @transform_2(%arg0: i32) -> (i32, i32) {
    %c0_i32 = arith.constant 0 : i32
    %c0_i32_0 = arith.constant 0 : i32
    %c0_i32_1 = arith.constant 0 : i32
    return %c0_i32, %c0_i32_0 : i32, i32
  }
  func.func @transform_3(%arg0: i32) -> (i32, i32) {
    %c0_i32 = arith.constant 0 : i32
    %c0_i32_0 = arith.constant 0 : i32
    %c0_i32_1 = arith.constant 0 : i32
    return %c0_i32, %c0_i32_0 : i32, i32
  }
  func.func @transform_4(%arg0: i32) -> (i32, i32, i32) {
    %c0_i32 = arith.constant 0 : i32
    %c0_i32_0 = arith.constant 0 : i32
    %c0_i32_1 = arith.constant 0 : i32
    return %arg0, %c0_i32, %c0_i32_0 : i32, i32, i32
  }
}

</mosaic_0001>

<llo_original>
// kernel: tpu_custom_call.1
$region0: #{tpu_custom_call.1}
  #allocation0 [shape = 'u32[]', space=smem, size = 0x4, offset = 0x4, fixed_abs, tag = 'smem constant byte address 0x4 - core index']
  #allocation1 [shape = 'u32[144,128]{1,0:T(1,128)}', space=vmem, size = 0x12000, scoped, tag = 'internal scratch']
  %s0 = inlined_call_operand.vmem [shape: bf16[2,8,416], index: 0, kind: input, shape index: {}]
  %s1 = inlined_call_operand.vmem [shape: bf16[4,9,8,8], index: 1, kind: input, shape index: {}]
  %s2 = inlined_call_operand.vmem [shape: f32[2,8], index: 2, kind: input, shape index: {}]
  %s3 = inlined_call_operand.vmem [shape: f32[8,2], index: 3, kind: input, shape index: {}]
  %s4 = inlined_call_operand.hbm [shape: f32[2,32,256], index: 4, kind: output, shape index: {}]
  %s5 = sld [smem:[#allocation0]]
  $region49: #{tpu_custom_call.1} parent=0
    _
  %s7 = ssub.s32 1, %s5
  %s8 = scalar_select 0, %s7, %s5
  $region1: #{tpu_custom_call.1} parent=0
    #allocation2 [shape = 'u8[65536]{0}', space=vmem, size = 0x10000, scoped, tag = 'output window, operand 0']
    #allocation3 [shape = 's32[2]{0}', space=sflag, size = 0x8, scoped, tag = 'scoped memory for tpu_custom_call.1']
    %9 = vsyncpa [#allocation3], 0
    %s10 = scalar_lea.sflag [#allocation3], 1
    %11 = vsyncpa %s10, 0
    loop: start=0, step=1, limit=4
    $region2: #{tpu_custom_call.1} parent=1 // loop_pre_header
      _
    $region3: #{tpu_custom_call.1} parent=1 // loop_header
      %s13 = sphi 0, %s17
      %p14 = scmp.ge.s32.totalorder %s13, 4
      %s23 = sphi 0, %s25
      %s26 = sphi 0, %s23
      %s27 = sphi 0, %s26
      %s43 = sphi 0, %s27
      %s47 = sphi 0, %s47
      %s49 = sphi 0, %s47
      %s50 = sphi 0, %s49
      %s64 = sphi 0, %s50
      %s68 = sphi 0, %s68
      %s70 = sphi 0, %s68
      %s71 = sphi 0, %s70
      %s85 = sphi 0, %s71
      %s89 = sphi 0, %s89
      %s91 = sphi 0, %s89
      %s92 = sphi 0, %s91
      %s106 = sphi 0, %s92
      %s112 = sphi 0, %s114
      %s115 = sphi 0, %s112
      %s116 = sphi 0, %s115
      %s132 = sphi 0, %s116
    $region4: #{tpu_custom_call.1} parent=1 // loop_header_branch
      %16 = sbr.rel (%p14) target = $region8
    $region5: #{tpu_custom_call.1} parent=1 // loop_body
      %s18 = ssub.s32 %s13, 1
      %s19 = ssub.s32 %s13, 2
      %s20 = sadd.s32 %s13, 1
      %s21 = ssub.s32 %s13, %s20
      %p22 = scmp.eq.s32.totalorder %s21, 0
      %s24 = sadd.s32 %s23, 1
      %s25 = scalar_select %p22, %s23, %s24
      %p28 = pneg %p22
      %p29 = scmp.eq.s32.totalorder %s13, 1
      %p30 = por %p28, %p29
      %p31 = scmp.ne.s32.totalorder %s23, %s26
      %p32 = scmp.eq.s32.totalorder %s13, 0
      %p33 = por %p31, %p32
      %p34 = scmp.ne.s32.totalorder %s23, %s26
      %p35 = scmp.eq.s32.totalorder %s18, 1
      %p36 = por %p34, %p35
      %p37 = scmp.ne.s32.totalorder %s26, %s27
      %p38 = scmp.eq.s32.totalorder %s18, 0
      %p39 = por %p37, %p38
      %p40 = scmp.ne.s32.totalorder %s26, %s27
      %p41 = scmp.eq.s32.totalorder %s19, 1
      %p42 = por %p40, %p41
      %p44 = scmp.ne.s32.totalorder %s27, %s43
      %p45 = scmp.eq.s32.totalorder %s19, 0
      %p46 = por %p44, %p45
      %s48 = sadd.s32 %s47, 1
      %p51 = scmp.eq.s32.totalorder %s13, 1
      %p52 = scmp.ne.s32.totalorder %s47, %s49
      %p53 = scmp.eq.s32.totalorder %s13, 0
      %p54 = por %p52, %p53
      %p55 = scmp.ne.s32.totalorder %s47, %s49
      %p56 = scmp.eq.s32.totalorder %s18, 1
      %p57 = por %p55, %p56
      %p58 = scmp.ne.s32.totalorder %s49, %s50
      %p59 = scmp.eq.s32.totalorder %s18, 0
      %p60 = por %p58, %p59
      %p61 = scmp.ne.s32.totalorder %s49, %s50
      %p62 = scmp.eq.s32.totalorder %s19, 1
      %p63 = por %p61, %p62
      %p65 = scmp.ne.s32.totalorder %s50, %s64
      %p66 = scmp.eq.s32.totalorder %s19, 0
      %p67 = por %p65, %p66
      %s69 = sadd.s32 %s68, 1
      %p72 = scmp.eq.s32.totalorder %s13, 1
      %p73 = scmp.ne.s32.totalorder %s68, %s70
      %p74 = scmp.eq.s32.totalorder %s13, 0
      %p75 = por %p73, %p74
      %p76 = scmp.ne.s32.totalorder %s68, %s70
      %p77 = scmp.eq.s32.totalorder %s18, 1
      %p78 = por %p76, %p77
      %p79 = scmp.ne.s32.totalorder %s70, %s71
      %p80 = scmp.eq.s32.totalorder %s18, 0
      %p81 = por %p79, %p80
      %p82 = scmp.ne.s32.totalorder %s70, %s71
      %p83 = scmp.eq.s32.totalorder %s19, 1
      %p84 = por %p82, %p83
      %p86 = scmp.ne.s32.totalorder %s71, %s85
      %p87 = scmp.eq.s32.totalorder %s19, 0
      %p88 = por %p86, %p87
      %s90 = sadd.s32 %s89, 1
      %p93 = scmp.eq.s32.totalorder %s13, 1
      %p94 = scmp.ne.s32.totalorder %s89, %s91
      %p95 = scmp.eq.s32.totalorder %s13, 0
      %p96 = por %p94, %p95
      %p97 = scmp.ne.s32.totalorder %s89, %s91
      %p98 = scmp.eq.s32.totalorder %s18, 1
      %p99 = por %p97, %p98
      %p100 = scmp.ne.s32.totalorder %s91, %s92
      %p101 = scmp.eq.s32.totalorder %s18, 0
      %p102 = por %p100, %p101
      %p103 = scmp.ne.s32.totalorder %s91, %s92
      %p104 = scmp.eq.s32.totalorder %s19, 1
      %p105 = por %p103, %p104
      %p107 = scmp.ne.s32.totalorder %s92, %s106
      %p108 = scmp.eq.s32.totalorder %s19, 0
      %p109 = por %p107, %p108
      %s110 = ssub.s32 %s13, %s20
      %p111 = scmp.eq.s32.totalorder %s110, 0
      %s113 = sadd.s32 %s112, 1
      %s114 = scalar_select %p111, %s112, %s113
      %p117 = pneg %p111
      %p118 = scmp.eq.s32.totalorder %s13, 1
      %p119 = por %p117, %p118
      %p120 = scmp.ne.s32.totalorder %s112, %s115
      %p121 = scmp.eq.s32.totalorder %s13, 0
      %p122 = por %p120, %p121
      %p123 = scmp.ne.s32.totalorder %s112, %s115
      %p124 = scmp.eq.s32.totalorder %s18, 1
      %p125 = por %p123, %p124
      %p126 = scmp.ne.s32.totalorder %s115, %s116
      %p127 = scmp.eq.s32.totalorder %s18, 0
      %p128 = por %p126, %p127
      %p129 = scmp.ne.s32.totalorder %s115, %s116
      %p130 = scmp.eq.s32.totalorder %s19, 1
      %p131 = por %p129, %p130
      %p133 = scmp.ne.s32.totalorder %s116, %s132
      %p134 = scmp.eq.s32.totalorder %s19, 0
      %p135 = por %p133, %p134
      %p136 = scmp.le.s32.totalorder 1, %s13
      %p137 = scmp.lt.s32.totalorder %s13, 3
      %p138 = pnand %p136, %p137
      %p139 = pneg %p138
      // Predicated region
      $region9: #{tpu_custom_call.1} parent=5 // pred_check
        _
      $region10: #{tpu_custom_call.1} parent=5 // pred_check_branch
        %141 = sbr.rel (%p138) target = $region12
      $region11: #{tpu_custom_call.1} parent=5 // pred_region
        %s142 = ssub.s32 %s13, 1
        // Predicated region
        $region13: #{tpu_custom_call.1} parent=11 // pred_check
          %p143 = pneg %p60
        $region14: #{tpu_custom_call.1} parent=11 // pred_check_branch
          %145 = sbr.rel (%p143) target = $region16
        $region15: #{tpu_custom_call.1} parent=11 // pred_region
          _
        $region16: #{tpu_custom_call.1} parent=11 // pred_fallthru
          _
        // Predicated region
        $region17: #{tpu_custom_call.1} parent=11 // pred_check
          %p146 = pneg %p81
        $region18: #{tpu_custom_call.1} parent=11 // pred_check_branch
          %148 = sbr.rel (%p146) target = $region20
        $region19: #{tpu_custom_call.1} parent=11 // pred_region
          _
        $region20: #{tpu_custom_call.1} parent=11 // pred_fallthru
          _
        // Predicated region
        $region21: #{tpu_custom_call.1} parent=11 // pred_check
          %p149 = pneg %p102
        $region22: #{tpu_custom_call.1} parent=11 // pred_check_branch
          %151 = sbr.rel (%p149) target = $region24
        $region23: #{tpu_custom_call.1} parent=11 // pred_region
          _
        $region24: #{tpu_custom_call.1} parent=11 // pred_fallthru
          _
      $region12: #{tpu_custom_call.1} parent=5 // pred_fallthru
        _
      %p152 = scmp.lt.s32.totalorder %s13, 2
      // Predicated region
      $region25: #{tpu_custom_call.1} parent=5 // pred_check
        %p153 = pneg %p152
      $region26: #{tpu_custom_call.1} parent=5 // pred_check_branch
        %155 = sbr.rel (%p153) target = $region28
      $region27: #{tpu_custom_call.1} parent=5 // pred_region
        // Predicated region
        $region29: #{tpu_custom_call.1} parent=27 // pred_check
          %p156 = pneg %p33
        $region30: #{tpu_custom_call.1} parent=27 // pred_check_branch
          %158 = sbr.rel (%p156) target = $region32
        $region31: #{tpu_custom_call.1} parent=27 // pred_region
          %p159 = scmp.lt.s32.totalorder %s13, 1
          %s160 = scalar_select %p159, %s13, 1
          %s161 = smul.addr %s160, 4
          %s162 = smul.addr %s161, 4
          %s163 = scalar_lea.vmem %s0, %s162
        $region32: #{tpu_custom_call.1} parent=27 // pred_fallthru
          _
      $region28: #{tpu_custom_call.1} parent=5 // pred_fallthru
        _
      %p164 = scmp.le.s32.totalorder 1, %s13
      %p165 = scmp.lt.s32.totalorder %s13, 3
      %p166 = pnand %p164, %p165
      %p167 = pneg %p166
      // Predicated region
      $region33: #{tpu_custom_call.1} parent=5 // pred_check
        _
      $region34: #{tpu_custom_call.1} parent=5 // pred_check_branch
        %169 = sbr.rel (%p166) target = $region36
      $region35: #{tpu_custom_call.1} parent=5 // pred_region
        %s170 = ssub.s32 %s13, 1
        %p171 = scmp.lt.s32.totalorder %s18, 1
        %s172 = scalar_select %p171, %s18, 1
        %s173 = smul.addr %s172, 4
        %s174 = smul.addr %s173, 4
        %s175 = scalar_lea.vmem %s0, %s174
        %p176 = pneg %p39
        %p177 = pneg %p36
        %p178 = pneg %p60
        %p179 = pneg %p57
        %p180 = pneg %p81
        %p181 = pneg %p78
        %p182 = pneg %p102
        %p183 = pneg %p99
        %p184 = pneg %p128
        %p185 = pneg %p125
        %s186 = sand.u32 %s115, 1
        %s187 = scalar_lea.sflag [#allocation3], %s186
        %s188 = sand.u32 %s115, 1
        %s189 = smul.addr %s188, 64
        %s190 = scalar_lea.vmem [#allocation2], %s189
        %p191 = scmp.lt.s32.totalorder %s18, 1
        %s192 = scalar_select %p191, %s18, 1
        %s193 = smul.addr %s192, 4
        %s194 = smul.addr %s193, 4
        %s195 = scalar_lea.vmem %s0, %s194
        %v197 = vld [vmem:[%s195] sm:$0xff]
        %v198 = vld [vmem:[%s195 + $0x8] sm:$0xff]
        %v199 = vld [vmem:[%s1] sm:$0xf]
        %v200 = vld [vmem:[%s1 + $0x4] sm:$0xf]
        %v201 = vld [vmem:[%s1 + $0x8] sm:$0xf]
        %v202 = vld [vmem:[%s1 + $0xc] sm:$0xf]
        %v203 = vld [vmem:[%s1 + $0x10] sm:$0xf]
        %v204 = vld [vmem:[%s1 + $0x14] sm:$0xf]
        %v205 = vld [vmem:[%s1 + $0x18] sm:$0xf]
        %v206 = vld [vmem:[%s1 + $0x1c] sm:$0xf]
        %v207 = vld [vmem:[%s1 + $0x20] sm:$0xf]
        %v208 = vld [vmem:[%s1 + $0x24] sm:$0xf]
        %v209 = vld [vmem:[%s1 + $0x28] sm:$0xf]
        %v210 = vld [vmem:[%s1 + $0x2c] sm:$0xf]
        %v211 = vld [vmem:[%s1 + $0x30] sm:$0xf]
        %v212 = vld [vmem:[%s1 + $0x34] sm:$0xf]
        %v213 = vld [vmem:[%s1 + $0x38] sm:$0xf]
        %v214 = vld [vmem:[%s1 + $0x3c] sm:$0xf]
        %v215 = vld [vmem:[%s1 + $0x40] sm:$0xf]
        %v216 = vld [vmem:[%s1 + $0x44] sm:$0xf]
        %v217 = vld [vmem:[%s1 + $0x48] sm:$0xf]
        %v218 = vld [vmem:[%s1 + $0x4c] sm:$0xf]
        %v219 = vld [vmem:[%s1 + $0x50] sm:$0xf]
        %v220 = vld [vmem:[%s1 + $0x54] sm:$0xf]
        %v221 = vld [vmem:[%s1 + $0x58] sm:$0xf]
        %v222 = vld [vmem:[%s1 + $0x5c] sm:$0xf]
        %v223 = vld [vmem:[%s1 + $0x60] sm:$0xf]
        %v224 = vld [vmem:[%s1 + $0x64] sm:$0xf]
        %v225 = vld [vmem:[%s1 + $0x68] sm:$0xf]
        %v226 = vld [vmem:[%s1 + $0x6c] sm:$0xf]
        %v227 = vld [vmem:[%s1 + $0x70] sm:$0xf]
        %v228 = vld [vmem:[%s1 + $0x74] sm:$0xf]
        %v229 = vld [vmem:[%s1 + $0x78] sm:$0xf]
        %v230 = vld [vmem:[%s1 + $0x7c] sm:$0xf]
        %v231 = vld [vmem:[%s1 + $0x80] sm:$0xf]
        %v232 = vld [vmem:[%s1 + $0x84] sm:$0xf]
        %v233 = vld [vmem:[%s1 + $0x88] sm:$0xf]
        %v234 = vld [vmem:[%s1 + $0x8c] sm:$0xf]
        %v235 = vlaneseq
        %v236 = vand.u32 %v235, 127
        %v237 = vadd.s32 %v236, 128
        %vm238 = vcmp.lt.s32.totalorder %v236, 0
        %v239 = vsub.s32 0, %v236
        %v240 = vsel %vm238, %v239, %v236
        %v241 = vshrl.u32 %v240, 4
        %v242 = vand.u32 %v240, 15
        %v243 = vsub.s32 0, %v242
        %v244 = vsel %vm238, %v243, %v242
        %vm245 = vcmp.lt.s32.totalorder %v237, 0
        %v246 = vsub.s32 0, %v237
        %v247 = vsel %vm245, %v246, %v237
        %v248 = vshrl.u32 %v247, 4
        %v249 = vand.u32 %v247, 15
        %v250 = vsub.s32 0, %v249
        %v251 = vsel %vm245, %v250, %v249
        %vm252 = vcmp.ne.s32.totalorder %v244, 0
        %vm253 = vcmp.ne.s32.totalorder %v251, 0
        %vm254 = vcmp.lt.s32.totalorder %v244, 0
        %vm255 = vcmp.lt.s32.totalorder %v251, 0
        %vm256 = vmand %vm254, %vm252
        %vm257 = vmand %vm255, %vm253
        %v258 = vadd.s32 %v244, 16
        %v259 = vadd.s32 %v251, 16
        %v260 = vsel %vm256, %v258, %v244
        %v261 = vsel %vm257, %v259, %v251
        %v264 = vunpack.c.l.b16 %v197
        %v265 = vunpack.c.h.b16 %v197
        %v266 = vunpack.c.l.b16 %v198
        %v267 = vpack.c.b16 %v264, %v264
        %v268 = vpack.c.b16 %v265, %v265
        %v269 = vpack.c.b16 %v266, %v266
        %270 = vrot.lane.b32.xlu0 %v267, 65
        %v271 = vpop.permute.xlu0 %270
        %272 = vrot.lane.b32.xlu0 %v268, 65
        %v273 = vpop.permute.xlu0 %272
        %274 = vrot.lane.b32.xlu0 %v269, 65
        %v275 = vpop.permute.xlu0 %274
        %vm276 = vcmask 531456
        %v277 = vsel %vm276, %v271, %v273
        %v278 = vsel %vm276, %v273, %v275
        %vm279 = vcmask 64512
        %v281 = vsel %vm279, %v199, 0
        %vm283 = vcmask 1043456
        %v285 = vsel %vm283, %v277, 0
        %v288 = vsel %vm283, %v278, 0
        %290 = vmatprep.subr.bf16.mxu0 0
        %291 = vmatpush1.bf16.msra.mxu0 0
        %292 = vmatprep.subr.bf16.mxu0 0
        %293 = vmatpush1.bf16.msra.mxu0 0
        %294 = vmatprep.subr.bf16.mxu0 0
        %295 = vmatpush1.bf16.msra.mxu0 0
        %296 = vmatprep.subr.bf16.mxu0 0
        %297 = vmatpush1.bf16.msra.mxu0 0
        %298 = vmatprep.subr.bf16.mxu0 0
        %299 = vmatpush1.bf16.msra.mxu0 0
        %300 = vmatprep.subr.bf16.mxu0 0
        %301 = vmatpush1.bf16.msra.mxu0 0
        %302 = vmatprep.subr.bf16.mxu0 0
        %303 = vmatpush1.bf16.msra.mxu0 0
        %304 = vmatprep.subr.bf16.mxu0 %v288
        %305 = vmatpush1.bf16.msra.mxu0 %v285
        %306 = vmatprep.subr.bf16.mxu0 0
        %307 = vmatpush2.bf16.msra.mxu0 0
        %308 = vmatprep.subr.bf16.mxu0 0
        %309 = vmatpush2.bf16.msra.mxu0 0
        %310 = vmatprep.subr.bf16.mxu0 0
        %311 = vmatpush2.bf16.msra.mxu0 0
        %312 = vmatprep.subr.bf16.mxu0 0
        %313 = vmatpush2.bf16.msra.mxu0 0
        %314 = vmatprep.subr.bf16.mxu0 0
        %315 = vmatpush2.bf16.msra.mxu0 0
        %316 = vmatprep.subr.bf16.mxu0 0
        %317 = vmatpush2.bf16.msra.mxu0 0
        %318 = vmatprep.subr.bf16.mxu0 0
        %319 = vmatpush2.bf16.msra.mxu0 0
        %320 = vmatprep.subr.bf16.mxu0 0
        %321 = vmatpush2.bf16.msra.mxu0 0
        %322 = vmatprep.mubr.bf16.mxu0 0
        %323 = vmatmul.mubr.bf16.gmra.mxu0 %v281
        %v324 = vpop.f32.mrf.mxu0
        %v325 = vadd.f32 0.0, %v324
        %v326 = vpop.f32.mrf.mxu0
        %v327 = vadd.f32 0.0, %v326
        %v328 = vpop.f32.mrf.mxu0
        %v329 = vpop.f32.mrf.mxu0
        %330 = vdwg.mxu0
        %v331 = vadd.s32 %v260, 4294967295
        %v332 = vadd.s32 %v261, 4294967295
        %vm333 = vcmp.ge.s32.totalorder %v331, 0
        %vm334 = vcmp.ge.s32.totalorder %v332, 0
        %vm335 = vcmp.lt.s32.totalorder %v331, 16
        %vm336 = vcmp.lt.s32.totalorder %v332, 16
        %vm337 = vmand %vm333, %vm335
        %vm338 = vmand %vm334, %vm336
        %v339 = vsel %vm337, 1, 0
        %v340 = vsel %vm338, 1, 0
        %vm341 = vcmp.eq.s32.totalorder %v339, 1
        %vm342 = vcmp.eq.s32.totalorder %v340, 1
        %v343 = vsel %vm341, %v325, 0.0
        %v344 = vsel %vm342, %v327, 0.0
        %v345 = vadd.f32 %v343, 0.0
        %v346 = vadd.f32 %v344, 0.0
        %347 = vrot.lane.b32.xlu0 %v267, 64
        %v348 = vpop.permute.xlu0 %347
        %349 = vrot.lane.b32.xlu0 %v268, 64
        %v350 = vpop.permute.xlu0 %349
        %351 = vrot.lane.b32.xlu0 %v269, 64
        %v352 = vpop.permute.xlu0 %351
        %vm353 = vcmask 523264
        %v354 = vsel %vm353, %v348, %v350
        %v355 = vsel %vm353, %v350, %v352
        %v357 = vsel %vm279, %v200, 0
        %v360 = vsel %vm283, %v354, 0
        %v363 = vsel %vm283, %v355, 0
        %365 = vmatprep.subr.bf16.mxu0 0
        %366 = vmatpush1.bf16.msra.mxu0 0
        %367 = vmatprep.subr.bf16.mxu0 0
        %368 = vmatpush1.bf16.msra.mxu0 0
        %369 = vmatprep.subr.bf16.mxu0 0
        %370 = vmatpush1.bf16.msra.mxu0 0
        %371 = vmatprep.subr.bf16.mxu0 0
        %372 = vmatpush1.bf16.msra.mxu0 0
        %373 = vmatprep.subr.bf16.mxu0 0
        %374 = vmatpush1.bf16.msra.mxu0 0
        %375 = vmatprep.subr.bf16.mxu0 0
        %376 = vmatpush1.bf16.msra.mxu0 0
        %377 = vmatprep.subr.bf16.mxu0 0
        %378 = vmatpush1.bf16.msra.mxu0 0
        %379 = vmatprep.subr.bf16.mxu0 %v363
        %380 = vmatpush1.bf16.msra.mxu0 %v360
        %381 = vmatprep.subr.bf16.mxu0 0
        %382 = vmatpush2.bf16.msra.mxu0 0
        %383 = vmatprep.subr.bf16.mxu0 0
        %384 = vmatpush2.bf16.msra.mxu0 0
        %385 = vmatprep.subr.bf16.mxu0 0
        %386 = vmatpush2.bf16.msra.mxu0 0
        %387 = vmatprep.subr.bf16.mxu0 0
        %388 = vmatpush2.bf16.msra.mxu0 0
        %389 = vmatprep.subr.bf16.mxu0 0
        %390 = vmatpush2.bf16.msra.mxu0 0
        %391 = vmatprep.subr.bf16.mxu0 0
        %392 = vmatpush2.bf16.msra.mxu0 0
        %393 = vmatprep.subr.bf16.mxu0 0
        %394 = vmatpush2.bf16.msra.mxu0 0
        %395 = vmatprep.subr.bf16.mxu0 0
        %396 = vmatpush2.bf16.msra.mxu0 0
        %397 = vmatprep.mubr.bf16.mxu0 0
        %398 = vmatmul.mubr.bf16.gmra.mxu0 %v357
        %v399 = vpop.f32.mrf.mxu0
        %v400 = vadd.f32 0.0, %v399
        %v401 = vpop.f32.mrf.mxu0
        %v402 = vadd.f32 0.0, %v401
        %v403 = vpop.f32.mrf.mxu0
        %v404 = vpop.f32.mrf.mxu0
        %405 = vdwg.mxu0
        %v406 = vadd.f32 %v345, %v400
        %v407 = vadd.f32 %v346, %v402
        %408 = vrot.lane.b32.xlu0 %v267, 63
        %v409 = vpop.permute.xlu0 %408
        %410 = vrot.lane.b32.xlu0 %v268, 63
        %v411 = vpop.permute.xlu0 %410
        %412 = vrot.lane.b32.xlu0 %v269, 63
        %v413 = vpop.permute.xlu0 %412
        %vm414 = vcmask 515072
        %v415 = vsel %vm414, %v409, %v411
        %v416 = vsel %vm414, %v411, %v413
        %v418 = vsel %vm279, %v201, 0
        %v421 = vsel %vm283, %v415, 0
        %v424 = vsel %vm283, %v416, 0
        %426 = vmatprep.subr.bf16.mxu0 0
        %427 = vmatpush1.bf16.msra.mxu0 0
        %428 = vmatprep.subr.bf16.mxu0 0
        %429 = vmatpush1.bf16.msra.mxu0 0
        %430 = vmatprep.subr.bf16.mxu0 0
        %431 = vmatpush1.bf16.msra.mxu0 0
        %432 = vmatprep.subr.bf16.mxu0 0
        %433 = vmatpush1.bf16.msra.mxu0 0
        %434 = vmatprep.subr.bf16.mxu0 0
        %435 = vmatpush1.bf16.msra.mxu0 0
        %436 = vmatprep.subr.bf16.mxu0 0
        %437 = vmatpush1.bf16.msra.mxu0 0
        %438 = vmatprep.subr.bf16.mxu0 0
        %439 = vmatpush1.bf16.msra.mxu0 0
        %440 = vmatprep.subr.bf16.mxu0 %v424
        %441 = vmatpush1.bf16.msra.mxu0 %v421
        %442 = vmatprep.subr.bf16.mxu0 0
        %443 = vmatpush2.bf16.msra.mxu0 0
        %444 = vmatprep.subr.bf16.mxu0 0
        %445 = vmatpush2.bf16.msra.mxu0 0
        %446 = vmatprep.subr.bf16.mxu0 0
        %447 = vmatpush2.bf16.msra.mxu0 0
        %448 = vmatprep.subr.bf16.mxu0 0
        %449 = vmatpush2.bf16.msra.mxu0 0
        %450 = vmatprep.subr.bf16.mxu0 0
        %451 = vmatpush2.bf16.msra.mxu0 0
        %452 = vmatprep.subr.bf16.mxu0 0
        %453 = vmatpush2.bf16.msra.mxu0 0
        %454 = vmatprep.subr.bf16.mxu0 0
        %455 = vmatpush2.bf16.msra.mxu0 0
        %456 = vmatprep.subr.bf16.mxu0 0
        %457 = vmatpush2.bf16.msra.mxu0 0
        %458 = vmatprep.mubr.bf16.mxu0 0
        %459 = vmatmul.mubr.bf16.gmra.mxu0 %v418
        %v460 = vpop.f32.mrf.mxu0
        %v461 = vadd.f32 0.0, %v460
        %v462 = vpop.f32.mrf.mxu0
        %v463 = vadd.f32 0.0, %v462
        %v464 = vpop.f32.mrf.mxu0
        %v465 = vpop.f32.mrf.mxu0
        %466 = vdwg.mxu0
        %v467 = vadd.s32 %v260, 1
        %v468 = vadd.s32 %v261, 1
        %vm469 = vcmp.ge.s32.totalorder %v467, 0
        %vm470 = vcmp.ge.s32.totalorder %v468, 0
        %vm471 = vcmp.lt.s32.totalorder %v467, 16
        %vm472 = vcmp.lt.s32.totalorder %v468, 16
        %vm473 = vmand %vm469, %vm471
        %vm474 = vmand %vm470, %vm472
        %v475 = vsel %vm473, 1, 0
        %v476 = vsel %vm474, 1, 0
        %vm477 = vcmp.eq.s32.totalorder %v475, 1
        %vm478 = vcmp.eq.s32.totalorder %v476, 1
        %v479 = vsel %vm477, %v461, 0.0
        %v480 = vsel %vm478, %v463, 0.0
        %v481 = vadd.f32 %v406, %v479
        %v482 = vadd.f32 %v407, %v480
        %483 = vrot.lane.b32.xlu0 %v267, 49
        %v484 = vpop.permute.xlu0 %483
        %485 = vrot.lane.b32.xlu0 %v268, 49
        %v486 = vpop.permute.xlu0 %485
        %487 = vrot.lane.b32.xlu0 %v269, 49
        %v488 = vpop.permute.xlu0 %487
        %vm489 = vcmask 400384
        %v490 = vsel %vm489, %v484, %v486
        %v491 = vsel %vm489, %v486, %v488
        %v493 = vsel %vm279, %v202, 0
        %v496 = vsel %vm283, %v490, 0
        %v499 = vsel %vm283, %v491, 0
        %501 = vmatprep.subr.bf16.mxu0 0
        %502 = vmatpush1.bf16.msra.mxu0 0
        %503 = vmatprep.subr.bf16.mxu0 0
        %504 = vmatpush1.bf16.msra.mxu0 0
        %505 = vmatprep.subr.bf16.mxu0 0
        %506 = vmatpush1.bf16.msra.mxu0 0
        %507 = vmatprep.subr.bf16.mxu0 0
        %508 = vmatpush1.bf16.msra.mxu0 0
        %509 = vmatprep.subr.bf16.mxu0 0
        %510 = vmatpush1.bf16.msra.mxu0 0
        %511 = vmatprep.subr.bf16.mxu0 0
        %512 = vmatpush1.bf16.msra.mxu0 0
        %513 = vmatprep.subr.bf16.mxu0 0
        %514 = vmatpush1.bf16.msra.mxu0 0
        %515 = vmatprep.subr.bf16.mxu0 %v499
        %516 = vmatpush1.bf16.msra.mxu0 %v496
        %517 = vmatprep.subr.bf16.mxu0 0
        %518 = vmatpush2.bf16.msra.mxu0 0
        %519 = vmatprep.subr.bf16.mxu0 0
        %520 = vmatpush2.bf16.msra.mxu0 0
        %521 = vmatprep.subr.bf16.mxu0 0
        %522 = vmatpush2.bf16.msra.mxu0 0
        %523 = vmatprep.subr.bf16.mxu0 0
        %524 = vmatpush2.bf16.msra.mxu0 0
        %525 = vmatprep.subr.bf16.mxu0 0
        %526 = vmatpush2.bf16.msra.mxu0 0
        %527 = vmatprep.subr.bf16.mxu0 0
        %528 = vmatpush2.bf16.msra.mxu0 0
        %529 = vmatprep.subr.bf16.mxu0 0
        %530 = vmatpush2.bf16.msra.mxu0 0
        %531 = vmatprep.subr.bf16.mxu0 0
        %532 = vmatpush2.bf16.msra.mxu0 0
        %533 = vmatprep.mubr.bf16.mxu0 0
        %534 = vmatmul.mubr.bf16.gmra.mxu0 %v493
        %v535 = vpop.f32.mrf.mxu0
        %v536 = vadd.f32 0.0, %v535
        %v537 = vpop.f32.mrf.mxu0
        %v538 = vadd.f32 0.0, %v537
        %v539 = vpop.f32.mrf.mxu0
        %v540 = vpop.f32.mrf.mxu0
        %541 = vdwg.mxu0
        %v542 = vsel %vm341, %v536, 0.0
        %v543 = vsel %vm342, %v538, 0.0
        %v544 = vadd.f32 %v481, %v542
        %v545 = vadd.f32 %v482, %v543
        %546 = vrot.lane.b32.xlu0 %v267, 48
        %v547 = vpop.permute.xlu0 %546
        %548 = vrot.lane.b32.xlu0 %v268, 48
        %v549 = vpop.permute.xlu0 %548
        %550 = vrot.lane.b32.xlu0 %v269, 48
        %v551 = vpop.permute.xlu0 %550
        %vm552 = vcmask 392192
        %v553 = vsel %vm552, %v547, %v549
        %v554 = vsel %vm552, %v549, %v551
        %v556 = vsel %vm279, %v203, 0
        %v559 = vsel %vm283, %v553, 0
        %v562 = vsel %vm283, %v554, 0
        %564 = vmatprep.subr.bf16.mxu0 0
        %565 = vmatpush1.bf16.msra.mxu0 0
        %566 = vmatprep.subr.bf16.mxu0 0
        %567 = vmatpush1.bf16.msra.mxu0 0
        %568 = vmatprep.subr.bf16.mxu0 0
        %569 = vmatpush1.bf16.msra.mxu0 0
        %570 = vmatprep.subr.bf16.mxu0 0
        %571 = vmatpush1.bf16.msra.mxu0 0
        %572 = vmatprep.subr.bf16.mxu0 0
        %573 = vmatpush1.bf16.msra.mxu0 0
        %574 = vmatprep.subr.bf16.mxu0 0
        %575 = vmatpush1.bf16.msra.mxu0 0
        %576 = vmatprep.subr.bf16.mxu0 0
        %577 = vmatpush1.bf16.msra.mxu0 0
        %578 = vmatprep.subr.bf16.mxu0 %v562
        %579 = vmatpush1.bf16.msra.mxu0 %v559
        %580 = vmatprep.subr.bf16.mxu0 0
        %581 = vmatpush2.bf16.msra.mxu0 0
        %582 = vmatprep.subr.bf16.mxu0 0
        %583 = vmatpush2.bf16.msra.mxu0 0
        %584 = vmatprep.subr.bf16.mxu0 0
        %585 = vmatpush2.bf16.msra.mxu0 0
        %586 = vmatprep.subr.bf16.mxu0 0
        %587 = vmatpush2.bf16.msra.mxu0 0
        %588 = vmatprep.subr.bf16.mxu0 0
        %589 = vmatpush2.bf16.msra.mxu0 0
        %590 = vmatprep.subr.bf16.mxu0 0
        %591 = vmatpush2.bf16.msra.mxu0 0
        %592 = vmatprep.subr.bf16.mxu0 0
        %593 = vmatpush2.bf16.msra.mxu0 0
        %594 = vmatprep.subr.bf16.mxu0 0
        %595 = vmatpush2.bf16.msra.mxu0 0
        %596 = vmatprep.mubr.bf16.mxu0 0
        %597 = vmatmul.mubr.bf16.gmra.mxu0 %v556
        %v598 = vpop.f32.mrf.mxu0
        %v599 = vadd.f32 0.0, %v598
        %v600 = vpop.f32.mrf.mxu0
        %v601 = vadd.f32 0.0, %v600
        %v602 = vpop.f32.mrf.mxu0
        %v603 = vpop.f32.mrf.mxu0
        %604 = vdwg.mxu0
        %v605 = vadd.f32 %v544, %v599
        %v606 = vadd.f32 %v545, %v601
        %607 = vrot.lane.b32.xlu0 %v267, 47
        %v608 = vpop.permute.xlu0 %607
        %609 = vrot.lane.b32.xlu0 %v268, 47
        %v610 = vpop.permute.xlu0 %609
        %611 = vrot.lane.b32.xlu0 %v269, 47
        %v612 = vpop.permute.xlu0 %611
        %vm613 = vcmask 384000
        %v614 = vsel %vm613, %v608, %v610
        %v615 = vsel %vm613, %v610, %v612
        %v617 = vsel %vm279, %v204, 0
        %v620 = vsel %vm283, %v614, 0
        %v623 = vsel %vm283, %v615, 0
        %625 = vmatprep.subr.bf16.mxu0 0
        %626 = vmatpush1.bf16.msra.mxu0 0
        %627 = vmatprep.subr.bf16.mxu0 0
        %628 = vmatpush1.bf16.msra.mxu0 0
        %629 = vmatprep.subr.bf16.mxu0 0
        %630 = vmatpush1.bf16.msra.mxu0 0
        %631 = vmatprep.subr.bf16.mxu0 0
        %632 = vmatpush1.bf16.msra.mxu0 0
        %633 = vmatprep.subr.bf16.mxu0 0
        %634 = vmatpush1.bf16.msra.mxu0 0
        %635 = vmatprep.subr.bf16.mxu0 0
        %636 = vmatpush1.bf16.msra.mxu0 0
        %637 = vmatprep.subr.bf16.mxu0 0
        %638 = vmatpush1.bf16.msra.mxu0 0
        %639 = vmatprep.subr.bf16.mxu0 %v623
        %640 = vmatpush1.bf16.msra.mxu0 %v620
        %641 = vmatprep.subr.bf16.mxu0 0
        %642 = vmatpush2.bf16.msra.mxu0 0
        %643 = vmatprep.subr.bf16.mxu0 0
        %644 = vmatpush2.bf16.msra.mxu0 0
        %645 = vmatprep.subr.bf16.mxu0 0
        %646 = vmatpush2.bf16.msra.mxu0 0
        %647 = vmatprep.subr.bf16.mxu0 0
        %648 = vmatpush2.bf16.msra.mxu0 0
        %649 = vmatprep.subr.bf16.mxu0 0
        %650 = vmatpush2.bf16.msra.mxu0 0
        %651 = vmatprep.subr.bf16.mxu0 0
        %652 = vmatpush2.bf16.msra.mxu0 0
        %653 = vmatprep.subr.bf16.mxu0 0
        %654 = vmatpush2.bf16.msra.mxu0 0
        %655 = vmatprep.subr.bf16.mxu0 0
        %656 = vmatpush2.bf16.msra.mxu0 0
        %657 = vmatprep.mubr.bf16.mxu0 0
        %658 = vmatmul.mubr.bf16.gmra.mxu0 %v617
        %v659 = vpop.f32.mrf.mxu0
        %v660 = vadd.f32 0.0, %v659
        %v661 = vpop.f32.mrf.mxu0
        %v662 = vadd.f32 0.0, %v661
        %v663 = vpop.f32.mrf.mxu0
        %v664 = vpop.f32.mrf.mxu0
        %665 = vdwg.mxu0
        %v666 = vsel %vm477, %v660, 0.0
        %v667 = vsel %vm478, %v662, 0.0
        %v668 = vadd.f32 %v605, %v666
        %v669 = vadd.f32 %v606, %v667
        %670 = vrot.lane.b32.xlu0 %v267, 33
        %v671 = vpop.permute.xlu0 %670
        %672 = vrot.lane.b32.xlu0 %v268, 33
        %v673 = vpop.permute.xlu0 %672
        %674 = vrot.lane.b32.xlu0 %v269, 33
        %v675 = vpop.permute.xlu0 %674
        %vm676 = vcmask 269312
        %v677 = vsel %vm676, %v671, %v673
        %v678 = vsel %vm676, %v673, %v675
        %v680 = vsel %vm279, %v205, 0
        %v683 = vsel %vm283, %v677, 0
        %v686 = vsel %vm283, %v678, 0
        %688 = vmatprep.subr.bf16.mxu0 0
        %689 = vmatpush1.bf16.msra.mxu0 0
        %690 = vmatprep.subr.bf16.mxu0 0
        %691 = vmatpush1.bf16.msra.mxu0 0
        %692 = vmatprep.subr.bf16.mxu0 0
        %693 = vmatpush1.bf16.msra.mxu0 0
        %694 = vmatprep.subr.bf16.mxu0 0
        %695 = vmatpush1.bf16.msra.mxu0 0
        %696 = vmatprep.subr.bf16.mxu0 0
        %697 = vmatpush1.bf16.msra.mxu0 0
        %698 = vmatprep.subr.bf16.mxu0 0
        %699 = vmatpush1.bf16.msra.mxu0 0
        %700 = vmatprep.subr.bf16.mxu0 0
        %701 = vmatpush1.bf16.msra.mxu0 0
        %702 = vmatprep.subr.bf16.mxu0 %v686
        %703 = vmatpush1.bf16.msra.mxu0 %v683
        %704 = vmatprep.subr.bf16.mxu0 0
        %705 = vmatpush2.bf16.msra.mxu0 0
        %706 = vmatprep.subr.bf16.mxu0 0
        %707 = vmatpush2.bf16.msra.mxu0 0
        %708 = vmatprep.subr.bf16.mxu0 0
        %709 = vmatpush2.bf16.msra.mxu0 0
        %710 = vmatprep.subr.bf16.mxu0 0
        %711 = vmatpush2.bf16.msra.mxu0 0
        %712 = vmatprep.subr.bf16.mxu0 0
        %713 = vmatpush2.bf16.msra.mxu0 0
        %714 = vmatprep.subr.bf16.mxu0 0
        %715 = vmatpush2.bf16.msra.mxu0 0
        %716 = vmatprep.subr.bf16.mxu0 0
        %717 = vmatpush2.bf16.msra.mxu0 0
        %718 = vmatprep.subr.bf16.mxu0 0
        %719 = vmatpush2.bf16.msra.mxu0 0
        %720 = vmatprep.mubr.bf16.mxu0 0
        %721 = vmatmul.mubr.bf16.gmra.mxu0 %v680
        %v722 = vpop.f32.mrf.mxu0
        %v723 = vadd.f32 0.0, %v722
        %v724 = vpop.f32.mrf.mxu0
        %v725 = vadd.f32 0.0, %v724
        %v726 = vpop.f32.mrf.mxu0
        %v727 = vpop.f32.mrf.mxu0
        %728 = vdwg.mxu0
        %v729 = vsel %vm341, %v723, 0.0
        %v730 = vsel %vm342, %v725, 0.0
        %v731 = vadd.f32 %v668, %v729
        %v732 = vadd.f32 %v669, %v730
        %733 = vrot.lane.b32.xlu0 %v267, 32
        %v734 = vpop.permute.xlu0 %733
        %735 = vrot.lane.b32.xlu0 %v268, 32
        %v736 = vpop.permute.xlu0 %735
        %737 = vrot.lane.b32.xlu0 %v269, 32
        %v738 = vpop.permute.xlu0 %737
        %vm739 = vcmask 261120
        %v740 = vsel %vm739, %v734, %v736
        %v741 = vsel %vm739, %v736, %v738
        %v743 = vsel %vm279, %v206, 0
        %v746 = vsel %vm283, %v740, 0
        %v749 = vsel %vm283, %v741, 0
        %751 = vmatprep.subr.bf16.mxu0 0
        %752 = vmatpush1.bf16.msra.mxu0 0
        %753 = vmatprep.subr.bf16.mxu0 0
        %754 = vmatpush1.bf16.msra.mxu0 0
        %755 = vmatprep.subr.bf16.mxu0 0
        %756 = vmatpush1.bf16.msra.mxu0 0
        %757 = vmatprep.subr.bf16.mxu0 0
        %758 = vmatpush1.bf16.msra.mxu0 0
        %759 = vmatprep.subr.bf16.mxu0 0
        %760 = vmatpush1.bf16.msra.mxu0 0
        %761 = vmatprep.subr.bf16.mxu0 0
        %762 = vmatpush1.bf16.msra.mxu0 0
        %763 = vmatprep.subr.bf16.mxu0 0
        %764 = vmatpush1.bf16.msra.mxu0 0
        %765 = vmatprep.subr.bf16.mxu0 %v749
        %766 = vmatpush1.bf16.msra.mxu0 %v746
        %767 = vmatprep.subr.bf16.mxu0 0
        %768 = vmatpush2.bf16.msra.mxu0 0
        %769 = vmatprep.subr.bf16.mxu0 0
        %770 = vmatpush2.bf16.msra.mxu0 0
        %771 = vmatprep.subr.bf16.mxu0 0
        %772 = vmatpush2.bf16.msra.mxu0 0
        %773 = vmatprep.subr.bf16.mxu0 0
        %774 = vmatpush2.bf16.msra.mxu0 0
        %775 = vmatprep.subr.bf16.mxu0 0
        %776 = vmatpush2.bf16.msra.mxu0 0
        %777 = vmatprep.subr.bf16.mxu0 0
        %778 = vmatpush2.bf16.msra.mxu0 0
        %779 = vmatprep.subr.bf16.mxu0 0
        %780 = vmatpush2.bf16.msra.mxu0 0
        %781 = vmatprep.subr.bf16.mxu0 0
        %782 = vmatpush2.bf16.msra.mxu0 0
        %783 = vmatprep.mubr.bf16.mxu0 0
        %784 = vmatmul.mubr.bf16.gmra.mxu0 %v743
        %v785 = vpop.f32.mrf.mxu0
        %v786 = vadd.f32 0.0, %v785
        %v787 = vpop.f32.mrf.mxu0
        %v788 = vadd.f32 0.0, %v787
        %v789 = vpop.f32.mrf.mxu0
        %v790 = vpop.f32.mrf.mxu0
        %791 = vdwg.mxu0
        %v792 = vadd.f32 %v731, %v786
        %v793 = vadd.f32 %v732, %v788
        %794 = vrot.lane.b32.xlu0 %v267, 31
        %v795 = vpop.permute.xlu0 %794
        %796 = vrot.lane.b32.xlu0 %v268, 31
        %v797 = vpop.permute.xlu0 %796
        %798 = vrot.lane.b32.xlu0 %v269, 31
        %v799 = vpop.permute.xlu0 %798
        %vm800 = vcmask 252928
        %v801 = vsel %vm800, %v795, %v797
        %v802 = vsel %vm800, %v797, %v799
        %v804 = vsel %vm279, %v207, 0
        %v807 = vsel %vm283, %v801, 0
        %v810 = vsel %vm283, %v802, 0
        %812 = vmatprep.subr.bf16.mxu0 0
        %813 = vmatpush1.bf16.msra.mxu0 0
        %814 = vmatprep.subr.bf16.mxu0 0
        %815 = vmatpush1.bf16.msra.mxu0 0
        %816 = vmatprep.subr.bf16.mxu0 0
        %817 = vmatpush1.bf16.msra.mxu0 0
        %818 = vmatprep.subr.bf16.mxu0 0
        %819 = vmatpush1.bf16.msra.mxu0 0
        %820 = vmatprep.subr.bf16.mxu0 0
        %821 = vmatpush1.bf16.msra.mxu0 0
        %822 = vmatprep.subr.bf16.mxu0 0
        %823 = vmatpush1.bf16.msra.mxu0 0
        %824 = vmatprep.subr.bf16.mxu0 0
        %825 = vmatpush1.bf16.msra.mxu0 0
        %826 = vmatprep.subr.bf16.mxu0 %v810
        %827 = vmatpush1.bf16.msra.mxu0 %v807
        %828 = vmatprep.subr.bf16.mxu0 0
        %829 = vmatpush2.bf16.msra.mxu0 0
        %830 = vmatprep.subr.bf16.mxu0 0
        %831 = vmatpush2.bf16.msra.mxu0 0
        %832 = vmatprep.subr.bf16.mxu0 0
        %833 = vmatpush2.bf16.msra.mxu0 0
        %834 = vmatprep.subr.bf16.mxu0 0
        %835 = vmatpush2.bf16.msra.mxu0 0
        %836 = vmatprep.subr.bf16.mxu0 0
        %837 = vmatpush2.bf16.msra.mxu0 0
        %838 = vmatprep.subr.bf16.mxu0 0
        %839 = vmatpush2.bf16.msra.mxu0 0
        %840 = vmatprep.subr.bf16.mxu0 0
        %841 = vmatpush2.bf16.msra.mxu0 0
        %842 = vmatprep.subr.bf16.mxu0 0
        %843 = vmatpush2.bf16.msra.mxu0 0
        %844 = vmatprep.mubr.bf16.mxu0 0
        %845 = vmatmul.mubr.bf16.gmra.mxu0 %v804
        %v846 = vpop.f32.mrf.mxu0
        %v847 = vadd.f32 0.0, %v846
        %v848 = vpop.f32.mrf.mxu0
        %v849 = vadd.f32 0.0, %v848
        %v850 = vpop.f32.mrf.mxu0
        %v851 = vpop.f32.mrf.mxu0
        %852 = vdwg.mxu0
        %v853 = vsel %vm477, %v847, 0.0
        %v854 = vsel %vm478, %v849, 0.0
        %v855 = vadd.f32 %v792, %v853
        %v856 = vadd.f32 %v793, %v854
        %857 = vrot.lane.b32.xlu0 %v267, 82
        %v858 = vpop.permute.xlu0 %857
        %859 = vrot.lane.b32.xlu0 %v268, 82
        %v860 = vpop.permute.xlu0 %859
        %861 = vrot.lane.b32.xlu0 %v269, 82
        %v862 = vpop.permute.xlu0 %861
        %vm863 = vcmask 670720
        %v864 = vsel %vm863, %v858, %v860
        %v865 = vsel %vm863, %v860, %v862
        %v867 = vsel %vm279, %v208, 0
        %v870 = vsel %vm283, %v864, 0
        %v873 = vsel %vm283, %v865, 0
        %875 = vmatprep.subr.bf16.mxu0 0
        %876 = vmatpush1.bf16.msra.mxu0 0
        %877 = vmatprep.subr.bf16.mxu0 0
        %878 = vmatpush1.bf16.msra.mxu0 0
        %879 = vmatprep.subr.bf16.mxu0 0
        %880 = vmatpush1.bf16.msra.mxu0 0
        %881 = vmatprep.subr.bf16.mxu0 0
        %882 = vmatpush1.bf16.msra.mxu0 0
        %883 = vmatprep.subr.bf16.mxu0 0
        %884 = vmatpush1.bf16.msra.mxu0 0
        %885 = vmatprep.subr.bf16.mxu0 0
        %886 = vmatpush1.bf16.msra.mxu0 0
        %887 = vmatprep.subr.bf16.mxu0 0
        %888 = vmatpush1.bf16.msra.mxu0 0
        %889 = vmatprep.subr.bf16.mxu0 %v873
        %890 = vmatpush1.bf16.msra.mxu0 %v870
        %891 = vmatprep.subr.bf16.mxu0 0
        %892 = vmatpush2.bf16.msra.mxu0 0
        %893 = vmatprep.subr.bf16.mxu0 0
        %894 = vmatpush2.bf16.msra.mxu0 0
        %895 = vmatprep.subr.bf16.mxu0 0
        %896 = vmatpush2.bf16.msra.mxu0 0
        %897 = vmatprep.subr.bf16.mxu0 0
        %898 = vmatpush2.bf16.msra.mxu0 0
        %899 = vmatprep.subr.bf16.mxu0 0
        %900 = vmatpush2.bf16.msra.mxu0 0
        %901 = vmatprep.subr.bf16.mxu0 0
        %902 = vmatpush2.bf16.msra.mxu0 0
        %903 = vmatprep.subr.bf16.mxu0 0
        %904 = vmatpush2.bf16.msra.mxu0 0
        %905 = vmatprep.subr.bf16.mxu0 0
        %906 = vmatpush2.bf16.msra.mxu0 0
        %907 = vmatprep.mubr.bf16.mxu0 0
        %908 = vmatmul.mubr.bf16.gmra.mxu0 %v867
        %v909 = vpop.f32.mrf.mxu0
        %v910 = vadd.f32 0.0, %v909
        %v911 = vpop.f32.mrf.mxu0
        %v912 = vadd.f32 0.0, %v911
        %v913 = vpop.f32.mrf.mxu0
        %v914 = vpop.f32.mrf.mxu0
        %915 = vdwg.mxu0
        %v916 = vadd.s32 %v260, 4294967294
        %v917 = vadd.s32 %v261, 4294967294
        %vm918 = vcmp.ge.s32.totalorder %v916, 0
        %vm919 = vcmp.ge.s32.totalorder %v917, 0
        %vm920 = vcmp.lt.s32.totalorder %v916, 16
        %vm921 = vcmp.lt.s32.totalorder %v917, 16
        %vm922 = vmand %vm918, %vm920
        %vm923 = vmand %vm919, %vm921
        %v924 = vsel %vm922, 1, 0
        %v925 = vsel %vm923, 1, 0
        %vm926 = vcmp.eq.s32.totalorder %v924, 1
        %vm927 = vcmp.eq.s32.totalorder %v925, 1
        %v928 = vsel %vm926, %v910, 0.0
        %v929 = vsel %vm927, %v912, 0.0
        %v930 = vadd.f32 %v928, 0.0
        %v931 = vadd.f32 %v929, 0.0
        %932 = vrot.lane.b32.xlu0 %v267, 80
        %v933 = vpop.permute.xlu0 %932
        %934 = vrot.lane.b32.xlu0 %v268, 80
        %v935 = vpop.permute.xlu0 %934
        %936 = vrot.lane.b32.xlu0 %v269, 80
        %v937 = vpop.permute.xlu0 %936
        %vm938 = vcmask 654336
        %v939 = vsel %vm938, %v933, %v935
        %v940 = vsel %vm938, %v935, %v937
        %v942 = vsel %vm279, %v209, 0
        %v945 = vsel %vm283, %v939, 0
        %v948 = vsel %vm283, %v940, 0
        %950 = vmatprep.subr.bf16.mxu0 0
        %951 = vmatpush1.bf16.msra.mxu0 0
        %952 = vmatprep.subr.bf16.mxu0 0
        %953 = vmatpush1.bf16.msra.mxu0 0
        %954 = vmatprep.subr.bf16.mxu0 0
        %955 = vmatpush1.bf16.msra.mxu0 0
        %956 = vmatprep.subr.bf16.mxu0 0
        %957 = vmatpush1.bf16.msra.mxu0 0
        %958 = vmatprep.subr.bf16.mxu0 0
        %959 = vmatpush1.bf16.msra.mxu0 0
        %960 = vmatprep.subr.bf16.mxu0 0
        %961 = vmatpush1.bf16.msra.mxu0 0
        %962 = vmatprep.subr.bf16.mxu0 0
        %963 = vmatpush1.bf16.msra.mxu0 0
        %964 = vmatprep.subr.bf16.mxu0 %v948
        %965 = vmatpush1.bf16.msra.mxu0 %v945
        %966 = vmatprep.subr.bf16.mxu0 0
        %967 = vmatpush2.bf16.msra.mxu0 0
        %968 = vmatprep.subr.bf16.mxu0 0
        %969 = vmatpush2.bf16.msra.mxu0 0
        %970 = vmatprep.subr.bf16.mxu0 0
        %971 = vmatpush2.bf16.msra.mxu0 0
        %972 = vmatprep.subr.bf16.mxu0 0
        %973 = vmatpush2.bf16.msra.mxu0 0
        %974 = vmatprep.subr.bf16.mxu0 0
        %975 = vmatpush2.bf16.msra.mxu0 0
        %976 = vmatprep.subr.bf16.mxu0 0
        %977 = vmatpush2.bf16.msra.mxu0 0
        %978 = vmatprep.subr.bf16.mxu0 0
        %979 = vmatpush2.bf16.msra.mxu0 0
        %980 = vmatprep.subr.bf16.mxu0 0
        %981 = vmatpush2.bf16.msra.mxu0 0
        %982 = vmatprep.mubr.bf16.mxu0 0
        %983 = vmatmul.mubr.bf16.gmra.mxu0 %v942
        %v984 = vpop.f32.mrf.mxu0
        %v985 = vadd.f32 0.0, %v984
        %v986 = vpop.f32.mrf.mxu0
        %v987 = vadd.f32 0.0, %v986
        %v988 = vpop.f32.mrf.mxu0
        %v989 = vpop.f32.mrf.mxu0
        %990 = vdwg.mxu0
        %v991 = vadd.f32 %v930, %v985
        %v992 = vadd.f32 %v931, %v987
        %993 = vrot.lane.b32.xlu0 %v267, 78
        %v994 = vpop.permute.xlu0 %993
        %995 = vrot.lane.b32.xlu0 %v268, 78
        %v996 = vpop.permute.xlu0 %995
        %997 = vrot.lane.b32.xlu0 %v269, 78
        %v998 = vpop.permute.xlu0 %997
        %vm999 = vcmask 637952
        %v1000 = vsel %vm999, %v994, %v996
        %v1001 = vsel %vm999, %v996, %v998
        %v1003 = vsel %vm279, %v210, 0
        %v1006 = vsel %vm283, %v1000, 0
        %v1009 = vsel %vm283, %v1001, 0
        %1011 = vmatprep.subr.bf16.mxu0 0
        %1012 = vmatpush1.bf16.msra.mxu0 0
        %1013 = vmatprep.subr.bf16.mxu0 0
        %1014 = vmatpush1.bf16.msra.mxu0 0
        %1015 = vmatprep.subr.bf16.mxu0 0
        %1016 = vmatpush1.bf16.msra.mxu0 0
        %1017 = vmatprep.subr.bf16.mxu0 0
        %1018 = vmatpush1.bf16.msra.mxu0 0
        %1019 = vmatprep.subr.bf16.mxu0 0
        %1020 = vmatpush1.bf16.msra.mxu0 0
        %1021 = vmatprep.subr.bf16.mxu0 0
        %1022 = vmatpush1.bf16.msra.mxu0 0
        %1023 = vmatprep.subr.bf16.mxu0 0
        %1024 = vmatpush1.bf16.msra.mxu0 0
        %1025 = vmatprep.subr.bf16.mxu0 %v1009
        %1026 = vmatpush1.bf16.msra.mxu0 %v1006
        %1027 = vmatprep.subr.bf16.mxu0 0
        %1028 = vmatpush2.bf16.msra.mxu0 0
        %1029 = vmatprep.subr.bf16.mxu0 0
        %1030 = vmatpush2.bf16.msra.mxu0 0
        %1031 = vmatprep.subr.bf16.mxu0 0
        %1032 = vmatpush2.bf16.msra.mxu0 0
        %1033 = vmatprep.subr.bf16.mxu0 0
        %1034 = vmatpush2.bf16.msra.mxu0 0
        %1035 = vmatprep.subr.bf16.mxu0 0
        %1036 = vmatpush2.bf16.msra.mxu0 0
        %1037 = vmatprep.subr.bf16.mxu0 0
        %1038 = vmatpush2.bf16.msra.mxu0 0
        %1039 = vmatprep.subr.bf16.mxu0 0
        %1040 = vmatpush2.bf16.msra.mxu0 0
        %1041 = vmatprep.subr.bf16.mxu0 0
        %1042 = vmatpush2.bf16.msra.mxu0 0
        %1043 = vmatprep.mubr.bf16.mxu0 0
        %1044 = vmatmul.mubr.bf16.gmra.mxu0 %v1003
        %v1045 = vpop.f32.mrf.mxu0
        %v1046 = vadd.f32 0.0, %v1045
        %v1047 = vpop.f32.mrf.mxu0
        %v1048 = vadd.f32 0.0, %v1047
        %v1049 = vpop.f32.mrf.mxu0
        %v1050 = vpop.f32.mrf.mxu0
        %1051 = vdwg.mxu0
        %v1052 = vadd.s32 %v260, 2
        %v1053 = vadd.s32 %v261, 2
        %vm1054 = vcmp.ge.s32.totalorder %v1052, 0
        %vm1055 = vcmp.ge.s32.totalorder %v1053, 0
        %vm1056 = vcmp.lt.s32.totalorder %v1052, 16
        %vm1057 = vcmp.lt.s32.totalorder %v1053, 16
        %vm1058 = vmand %vm1054, %vm1056
        %vm1059 = vmand %vm1055, %vm1057
        %v1060 = vsel %vm1058, 1, 0
        %v1061 = vsel %vm1059, 1, 0
        %vm1062 = vcmp.eq.s32.totalorder %v1060, 1
        %vm1063 = vcmp.eq.s32.totalorder %v1061, 1
        %v1064 = vsel %vm1062, %v1046, 0.0
        %v1065 = vsel %vm1063, %v1048, 0.0
        %v1066 = vadd.f32 %v991, %v1064
        %v1067 = vadd.f32 %v992, %v1065
        %1068 = vrot.lane.b32.xlu0 %v267, 50
        %v1069 = vpop.permute.xlu0 %1068
        %1070 = vrot.lane.b32.xlu0 %v268, 50
        %v1071 = vpop.permute.xlu0 %1070
        %1072 = vrot.lane.b32.xlu0 %v269, 50
        %v1073 = vpop.permute.xlu0 %1072
        %vm1074 = vcmask 408576
        %v1075 = vsel %vm1074, %v1069, %v1071
        %v1076 = vsel %vm1074, %v1071, %v1073
        %v1078 = vsel %vm279, %v211, 0
        %v1081 = vsel %vm283, %v1075, 0
        %v1084 = vsel %vm283, %v1076, 0
        %1086 = vmatprep.subr.bf16.mxu0 0
        %1087 = vmatpush1.bf16.msra.mxu0 0
        %1088 = vmatprep.subr.bf16.mxu0 0
        %1089 = vmatpush1.bf16.msra.mxu0 0
        %1090 = vmatprep.subr.bf16.mxu0 0
        %1091 = vmatpush1.bf16.msra.mxu0 0
        %1092 = vmatprep.subr.bf16.mxu0 0
        %1093 = vmatpush1.bf16.msra.mxu0 0
        %1094 = vmatprep.subr.bf16.mxu0 0
        %1095 = vmatpush1.bf16.msra.mxu0 0
        %1096 = vmatprep.subr.bf16.mxu0 0
        %1097 = vmatpush1.bf16.msra.mxu0 0
        %1098 = vmatprep.subr.bf16.mxu0 0
        %1099 = vmatpush1.bf16.msra.mxu0 0
        %1100 = vmatprep.subr.bf16.mxu0 %v1084
        %1101 = vmatpush1.bf16.msra.mxu0 %v1081
        %1102 = vmatprep.subr.bf16.mxu0 0
        %1103 = vmatpush2.bf16.msra.mxu0 0
        %1104 = vmatprep.subr.bf16.mxu0 0
        %1105 = vmatpush2.bf16.msra.mxu0 0
        %1106 = vmatprep.subr.bf16.mxu0 0
        %1107 = vmatpush2.bf16.msra.mxu0 0
        %1108 = vmatprep.subr.bf16.mxu0 0
        %1109 = vmatpush2.bf16.msra.mxu0 0
        %1110 = vmatprep.subr.bf16.mxu0 0
        %1111 = vmatpush2.bf16.msra.mxu0 0
        %1112 = vmatprep.subr.bf16.mxu0 0
        %1113 = vmatpush2.bf16.msra.mxu0 0
        %1114 = vmatprep.subr.bf16.mxu0 0
        %1115 = vmatpush2.bf16.msra.mxu0 0
        %1116 = vmatprep.subr.bf16.mxu0 0
        %1117 = vmatpush2.bf16.msra.mxu0 0
        %1118 = vmatprep.mubr.bf16.mxu0 0
        %1119 = vmatmul.mubr.bf16.gmra.mxu0 %v1078
        %v1120 = vpop.f32.mrf.mxu0
        %v1121 = vadd.f32 0.0, %v1120
        %v1122 = vpop.f32.mrf.mxu0
        %v1123 = vadd.f32 0.0, %v1122
        %v1124 = vpop.f32.mrf.mxu0
        %v1125 = vpop.f32.mrf.mxu0
        %1126 = vdwg.mxu0
        %v1127 = vsel %vm926, %v1121, 0.0
        %v1128 = vsel %vm927, %v1123, 0.0
        %v1129 = vadd.f32 %v1066, %v1127
        %v1130 = vadd.f32 %v1067, %v1128
        %v1132 = vsel %vm279, %v212, 0
        %1134 = vmatprep.subr.bf16.mxu0 0
        %1135 = vmatpush1.bf16.msra.mxu0 0
        %1136 = vmatprep.subr.bf16.mxu0 0
        %1137 = vmatpush1.bf16.msra.mxu0 0
        %1138 = vmatprep.subr.bf16.mxu0 0
        %1139 = vmatpush1.bf16.msra.mxu0 0
        %1140 = vmatprep.subr.bf16.mxu0 0
        %1141 = vmatpush1.bf16.msra.mxu0 0
        %1142 = vmatprep.subr.bf16.mxu0 0
        %1143 = vmatpush1.bf16.msra.mxu0 0
        %1144 = vmatprep.subr.bf16.mxu0 0
        %1145 = vmatpush1.bf16.msra.mxu0 0
        %1146 = vmatprep.subr.bf16.mxu0 0
        %1147 = vmatpush1.bf16.msra.mxu0 0
        %1148 = vmatprep.subr.bf16.mxu0 %v562
        %1149 = vmatpush1.bf16.msra.mxu0 %v559
        %1150 = vmatprep.subr.bf16.mxu0 0
        %1151 = vmatpush2.bf16.msra.mxu0 0
        %1152 = vmatprep.subr.bf16.mxu0 0
        %1153 = vmatpush2.bf16.msra.mxu0 0
        %1154 = vmatprep.subr.bf16.mxu0 0
        %1155 = vmatpush2.bf16.msra.mxu0 0
        %1156 = vmatprep.subr.bf16.mxu0 0
        %1157 = vmatpush2.bf16.msra.mxu0 0
        %1158 = vmatprep.subr.bf16.mxu0 0
        %1159 = vmatpush2.bf16.msra.mxu0 0
        %1160 = vmatprep.subr.bf16.mxu0 0
        %1161 = vmatpush2.bf16.msra.mxu0 0
        %1162 = vmatprep.subr.bf16.mxu0 0
        %1163 = vmatpush2.bf16.msra.mxu0 0
        %1164 = vmatprep.subr.bf16.mxu0 0
        %1165 = vmatpush2.bf16.msra.mxu0 0
        %1166 = vmatprep.mubr.bf16.mxu0 0
        %1167 = vmatmul.mubr.bf16.gmra.mxu0 %v1132
        %v1168 = vpop.f32.mrf.mxu0
        %v1169 = vadd.f32 0.0, %v1168
        %v1170 = vpop.f32.mrf.mxu0
        %v1171 = vadd.f32 0.0, %v1170
        %v1172 = vpop.f32.mrf.mxu0
        %v1173 = vpop.f32.mrf.mxu0
        %1174 = vdwg.mxu0
        %v1175 = vadd.f32 %v1129, %v1169
        %v1176 = vadd.f32 %v1130, %v1171
        %1177 = vrot.lane.b32.xlu0 %v267, 46
        %v1178 = vpop.permute.xlu0 %1177
        %1179 = vrot.lane.b32.xlu0 %v268, 46
        %v1180 = vpop.permute.xlu0 %1179
        %1181 = vrot.lane.b32.xlu0 %v269, 46
        %v1182 = vpop.permute.xlu0 %1181
        %vm1183 = vcmask 375808
        %v1184 = vsel %vm1183, %v1178, %v1180
        %v1185 = vsel %vm1183, %v1180, %v1182
        %v1187 = vsel %vm279, %v213, 0
        %v1190 = vsel %vm283, %v1184, 0
        %v1193 = vsel %vm283, %v1185, 0
        %1195 = vmatprep.subr.bf16.mxu0 0
        %1196 = vmatpush1.bf16.msra.mxu0 0
        %1197 = vmatprep.subr.bf16.mxu0 0
        %1198 = vmatpush1.bf16.msra.mxu0 0
        %1199 = vmatprep.subr.bf16.mxu0 0
        %1200 = vmatpush1.bf16.msra.mxu0 0
        %1201 = vmatprep.subr.bf16.mxu0 0
        %1202 = vmatpush1.bf16.msra.mxu0 0
        %1203 = vmatprep.subr.bf16.mxu0 0
        %1204 = vmatpush1.bf16.msra.mxu0 0
        %1205 = vmatprep.subr.bf16.mxu0 0
        %1206 = vmatpush1.bf16.msra.mxu0 0
        %1207 = vmatprep.subr.bf16.mxu0 0
        %1208 = vmatpush1.bf16.msra.mxu0 0
        %1209 = vmatprep.subr.bf16.mxu0 %v1193
        %1210 = vmatpush1.bf16.msra.mxu0 %v1190
        %1211 = vmatprep.subr.bf16.mxu0 0
        %1212 = vmatpush2.bf16.msra.mxu0 0
        %1213 = vmatprep.subr.bf16.mxu0 0
        %1214 = vmatpush2.bf16.msra.mxu0 0
        %1215 = vmatprep.subr.bf16.mxu0 0
        %1216 = vmatpush2.bf16.msra.mxu0 0
        %1217 = vmatprep.subr.bf16.mxu0 0
        %1218 = vmatpush2.bf16.msra.mxu0 0
        %1219 = vmatprep.subr.bf16.mxu0 0
        %1220 = vmatpush2.bf16.msra.mxu0 0
        %1221 = vmatprep.subr.bf16.mxu0 0
        %1222 = vmatpush2.bf16.msra.mxu0 0
        %1223 = vmatprep.subr.bf16.mxu0 0
        %1224 = vmatpush2.bf16.msra.mxu0 0
        %1225 = vmatprep.subr.bf16.mxu0 0
        %1226 = vmatpush2.bf16.msra.mxu0 0
        %1227 = vmatprep.mubr.bf16.mxu0 0
        %1228 = vmatmul.mubr.bf16.gmra.mxu0 %v1187
        %v1229 = vpop.f32.mrf.mxu0
        %v1230 = vadd.f32 0.0, %v1229
        %v1231 = vpop.f32.mrf.mxu0
        %v1232 = vadd.f32 0.0, %v1231
        %v1233 = vpop.f32.mrf.mxu0
        %v1234 = vpop.f32.mrf.mxu0
        %1235 = vdwg.mxu0
        %v1236 = vsel %vm1062, %v1230, 0.0
        %v1237 = vsel %vm1063, %v1232, 0.0
        %v1238 = vadd.f32 %v1175, %v1236
        %v1239 = vadd.f32 %v1176, %v1237
        %1240 = vrot.lane.b32.xlu0 %v267, 18
        %v1241 = vpop.permute.xlu0 %1240
        %1242 = vrot.lane.b32.xlu0 %v268, 18
        %v1243 = vpop.permute.xlu0 %1242
        %1244 = vrot.lane.b32.xlu0 %v269, 18
        %v1245 = vpop.permute.xlu0 %1244
        %vm1246 = vcmask 146432
        %v1247 = vsel %vm1246, %v1241, %v1243
        %v1248 = vsel %vm1246, %v1243, %v1245
        %v1250 = vsel %vm279, %v214, 0
        %v1253 = vsel %vm283, %v1247, 0
        %v1256 = vsel %vm283, %v1248, 0
        %1258 = vmatprep.subr.bf16.mxu0 0
        %1259 = vmatpush1.bf16.msra.mxu0 0
        %1260 = vmatprep.subr.bf16.mxu0 0
        %1261 = vmatpush1.bf16.msra.mxu0 0
        %1262 = vmatprep.subr.bf16.mxu0 0
        %1263 = vmatpush1.bf16.msra.mxu0 0
        %1264 = vmatprep.subr.bf16.mxu0 0
        %1265 = vmatpush1.bf16.msra.mxu0 0
        %1266 = vmatprep.subr.bf16.mxu0 0
        %1267 = vmatpush1.bf16.msra.mxu0 0
        %1268 = vmatprep.subr.bf16.mxu0 0
        %1269 = vmatpush1.bf16.msra.mxu0 0
        %1270 = vmatprep.subr.bf16.mxu0 0
        %1271 = vmatpush1.bf16.msra.mxu0 0
        %1272 = vmatprep.subr.bf16.mxu0 %v1256
        %1273 = vmatpush1.bf16.msra.mxu0 %v1253
        %1274 = vmatprep.subr.bf16.mxu0 0
        %1275 = vmatpush2.bf16.msra.mxu0 0
        %1276 = vmatprep.subr.bf16.mxu0 0
        %1277 = vmatpush2.bf16.msra.mxu0 0
        %1278 = vmatprep.subr.bf16.mxu0 0
        %1279 = vmatpush2.bf16.msra.mxu0 0
        %1280 = vmatprep.subr.bf16.mxu0 0
        %1281 = vmatpush2.bf16.msra.mxu0 0
        %1282 = vmatprep.subr.bf16.mxu0 0
        %1283 = vmatpush2.bf16.msra.mxu0 0
        %1284 = vmatprep.subr.bf16.mxu0 0
        %1285 = vmatpush2.bf16.msra.mxu0 0
        %1286 = vmatprep.subr.bf16.mxu0 0
        %1287 = vmatpush2.bf16.msra.mxu0 0
        %1288 = vmatprep.subr.bf16.mxu0 0
        %1289 = vmatpush2.bf16.msra.mxu0 0
        %1290 = vmatprep.mubr.bf16.mxu0 0
        %1291 = vmatmul.mubr.bf16.gmra.mxu0 %v1250
        %v1292 = vpop.f32.mrf.mxu0
        %v1293 = vadd.f32 0.0, %v1292
        %v1294 = vpop.f32.mrf.mxu0
        %v1295 = vadd.f32 0.0, %v1294
        %v1296 = vpop.f32.mrf.mxu0
        %v1297 = vpop.f32.mrf.mxu0
        %1298 = vdwg.mxu0
        %v1299 = vsel %vm926, %v1293, 0.0
        %v1300 = vsel %vm927, %v1295, 0.0
        %v1301 = vadd.f32 %v1238, %v1299
        %v1302 = vadd.f32 %v1239, %v1300
        %1303 = vrot.lane.b32.xlu0 %v267, 16
        %v1304 = vpop.permute.xlu0 %1303
        %1305 = vrot.lane.b32.xlu0 %v268, 16
        %v1306 = vpop.permute.xlu0 %1305
        %1307 = vrot.lane.b32.xlu0 %v269, 16
        %v1308 = vpop.permute.xlu0 %1307
        %vm1309 = vcmask 130048
        %v1310 = vsel %vm1309, %v1304, %v1306
        %v1311 = vsel %vm1309, %v1306, %v1308
        %v1313 = vsel %vm279, %v215, 0
        %v1316 = vsel %vm283, %v1310, 0
        %v1319 = vsel %vm283, %v1311, 0
        %1321 = vmatprep.subr.bf16.mxu0 0
        %1322 = vmatpush1.bf16.msra.mxu0 0
        %1323 = vmatprep.subr.bf16.mxu0 0
        %1324 = vmatpush1.bf16.msra.mxu0 0
        %1325 = vmatprep.subr.bf16.mxu0 0
        %1326 = vmatpush1.bf16.msra.mxu0 0
        %1327 = vmatprep.subr.bf16.mxu0 0
        %1328 = vmatpush1.bf16.msra.mxu0 0
        %1329 = vmatprep.subr.bf16.mxu0 0
        %1330 = vmatpush1.bf16.msra.mxu0 0
        %1331 = vmatprep.subr.bf16.mxu0 0
        %1332 = vmatpush1.bf16.msra.mxu0 0
        %1333 = vmatprep.subr.bf16.mxu0 0
        %1334 = vmatpush1.bf16.msra.mxu0 0
        %1335 = vmatprep.subr.bf16.mxu0 %v1319
        %1336 = vmatpush1.bf16.msra.mxu0 %v1316
        %1337 = vmatprep.subr.bf16.mxu0 0
        %1338 = vmatpush2.bf16.msra.mxu0 0
        %1339 = vmatprep.subr.bf16.mxu0 0
        %1340 = vmatpush2.bf16.msra.mxu0 0
        %1341 = vmatprep.subr.bf16.mxu0 0
        %1342 = vmatpush2.bf16.msra.mxu0 0
        %1343 = vmatprep.subr.bf16.mxu0 0
        %1344 = vmatpush2.bf16.msra.mxu0 0
        %1345 = vmatprep.subr.bf16.mxu0 0
        %1346 = vmatpush2.bf16.msra.mxu0 0
        %1347 = vmatprep.subr.bf16.mxu0 0
        %1348 = vmatpush2.bf16.msra.mxu0 0
        %1349 = vmatprep.subr.bf16.mxu0 0
        %1350 = vmatpush2.bf16.msra.mxu0 0
        %1351 = vmatprep.subr.bf16.mxu0 0
        %1352 = vmatpush2.bf16.msra.mxu0 0
        %1353 = vmatprep.mubr.bf16.mxu0 0
        %1354 = vmatmul.mubr.bf16.gmra.mxu0 %v1313
        %v1355 = vpop.f32.mrf.mxu0
        %v1356 = vadd.f32 0.0, %v1355
        %v1357 = vpop.f32.mrf.mxu0
        %v1358 = vadd.f32 0.0, %v1357
        %v1359 = vpop.f32.mrf.mxu0
        %v1360 = vpop.f32.mrf.mxu0
        %1361 = vdwg.mxu0
        %v1362 = vadd.f32 %v1301, %v1356
        %v1363 = vadd.f32 %v1302, %v1358
        %1364 = vrot.lane.b32.xlu0 %v267, 14
        %v1365 = vpop.permute.xlu0 %1364
        %1366 = vrot.lane.b32.xlu0 %v268, 14
        %v1367 = vpop.permute.xlu0 %1366
        %1368 = vrot.lane.b32.xlu0 %v269, 14
        %v1369 = vpop.permute.xlu0 %1368
        %vm1370 = vcmask 113664
        %v1371 = vsel %vm1370, %v1365, %v1367
        %v1372 = vsel %vm1370, %v1367, %v1369
        %v1374 = vsel %vm279, %v216, 0
        %v1377 = vsel %vm283, %v1371, 0
        %v1380 = vsel %vm283, %v1372, 0
        %1382 = vmatprep.subr.bf16.mxu0 0
        %1383 = vmatpush1.bf16.msra.mxu0 0
        %1384 = vmatprep.subr.bf16.mxu0 0
        %1385 = vmatpush1.bf16.msra.mxu0 0
        %1386 = vmatprep.subr.bf16.mxu0 0
        %1387 = vmatpush1.bf16.msra.mxu0 0
        %1388 = vmatprep.subr.bf16.mxu0 0
        %1389 = vmatpush1.bf16.msra.mxu0 0
        %1390 = vmatprep.subr.bf16.mxu0 0
        %1391 = vmatpush1.bf16.msra.mxu0 0
        %1392 = vmatprep.subr.bf16.mxu0 0
        %1393 = vmatpush1.bf16.msra.mxu0 0
        %1394 = vmatprep.subr.bf16.mxu0 0
        %1395 = vmatpush1.bf16.msra.mxu0 0
        %1396 = vmatprep.subr.bf16.mxu0 %v1380
        %1397 = vmatpush1.bf16.msra.mxu0 %v1377
        %1398 = vmatprep.subr.bf16.mxu0 0
        %1399 = vmatpush2.bf16.msra.mxu0 0
        %1400 = vmatprep.subr.bf16.mxu0 0
        %1401 = vmatpush2.bf16.msra.mxu0 0
        %1402 = vmatprep.subr.bf16.mxu0 0
        %1403 = vmatpush2.bf16.msra.mxu0 0
        %1404 = vmatprep.subr.bf16.mxu0 0
        %1405 = vmatpush2.bf16.msra.mxu0 0
        %1406 = vmatprep.subr.bf16.mxu0 0
        %1407 = vmatpush2.bf16.msra.mxu0 0
        %1408 = vmatprep.subr.bf16.mxu0 0
        %1409 = vmatpush2.bf16.msra.mxu0 0
        %1410 = vmatprep.subr.bf16.mxu0 0
        %1411 = vmatpush2.bf16.msra.mxu0 0
        %1412 = vmatprep.subr.bf16.mxu0 0
        %1413 = vmatpush2.bf16.msra.mxu0 0
        %1414 = vmatprep.mubr.bf16.mxu0 0
        %1415 = vmatmul.mubr.bf16.gmra.mxu0 %v1374
        %v1416 = vpop.f32.mrf.mxu0
        %v1417 = vadd.f32 0.0, %v1416
        %v1418 = vpop.f32.mrf.mxu0
        %v1419 = vadd.f32 0.0, %v1418
        %v1420 = vpop.f32.mrf.mxu0
        %v1421 = vpop.f32.mrf.mxu0
        %1422 = vdwg.mxu0
        %v1423 = vsel %vm1062, %v1417, 0.0
        %v1424 = vsel %vm1063, %v1419, 0.0
        %v1425 = vadd.f32 %v1362, %v1423
        %v1426 = vadd.f32 %v1363, %v1424
        %1427 = vrot.lane.b32.xlu0 %v267, 99
        %v1428 = vpop.permute.xlu0 %1427
        %1429 = vrot.lane.b32.xlu0 %v268, 99
        %v1430 = vpop.permute.xlu0 %1429
        %1431 = vrot.lane.b32.xlu0 %v269, 99
        %v1432 = vpop.permute.xlu0 %1431
        %vm1433 = vcmask 809984
        %v1434 = vsel %vm1433, %v1428, %v1430
        %v1435 = vsel %vm1433, %v1430, %v1432
        %v1437 = vsel %vm279, %v217, 0
        %v1440 = vsel %vm283, %v1434, 0
        %v1443 = vsel %vm283, %v1435, 0
        %1445 = vmatprep.subr.bf16.mxu0 0
        %1446 = vmatpush1.bf16.msra.mxu0 0
        %1447 = vmatprep.subr.bf16.mxu0 0
        %1448 = vmatpush1.bf16.msra.mxu0 0
        %1449 = vmatprep.subr.bf16.mxu0 0
        %1450 = vmatpush1.bf16.msra.mxu0 0
        %1451 = vmatprep.subr.bf16.mxu0 0
        %1452 = vmatpush1.bf16.msra.mxu0 0
        %1453 = vmatprep.subr.bf16.mxu0 0
        %1454 = vmatpush1.bf16.msra.mxu0 0
        %1455 = vmatprep.subr.bf16.mxu0 0
        %1456 = vmatpush1.bf16.msra.mxu0 0
        %1457 = vmatprep.subr.bf16.mxu0 0
        %1458 = vmatpush1.bf16.msra.mxu0 0
        %1459 = vmatprep.subr.bf16.mxu0 %v1443
        %1460 = vmatpush1.bf16.msra.mxu0 %v1440
        %1461 = vmatprep.subr.bf16.mxu0 0
        %1462 = vmatpush2.bf16.msra.mxu0 0
        %1463 = vmatprep.subr.bf16.mxu0 0
        %1464 = vmatpush2.bf16.msra.mxu0 0
        %1465 = vmatprep.subr.bf16.mxu0 0
        %1466 = vmatpush2.bf16.msra.mxu0 0
        %1467 = vmatprep.subr.bf16.mxu0 0
        %1468 = vmatpush2.bf16.msra.mxu0 0
        %1469 = vmatprep.subr.bf16.mxu0 0
        %1470 = vmatpush2.bf16.msra.mxu0 0
        %1471 = vmatprep.subr.bf16.mxu0 0
        %1472 = vmatpush2.bf16.msra.mxu0 0
        %1473 = vmatprep.subr.bf16.mxu0 0
        %1474 = vmatpush2.bf16.msra.mxu0 0
        %1475 = vmatprep.subr.bf16.mxu0 0
        %1476 = vmatpush2.bf16.msra.mxu0 0
        %1477 = vmatprep.mubr.bf16.mxu0 0
        %1478 = vmatmul.mubr.bf16.gmra.mxu0 %v1437
        %v1479 = vpop.f32.mrf.mxu0
        %v1480 = vadd.f32 0.0, %v1479
        %v1481 = vpop.f32.mrf.mxu0
        %v1482 = vadd.f32 0.0, %v1481
        %v1483 = vpop.f32.mrf.mxu0
        %v1484 = vpop.f32.mrf.mxu0
        %1485 = vdwg.mxu0
        %v1486 = vadd.s32 %v260, 4294967293
        %v1487 = vadd.s32 %v261, 4294967293
        %vm1488 = vcmp.ge.s32.totalorder %v1486, 0
        %vm1489 = vcmp.ge.s32.totalorder %v1487, 0
        %vm1490 = vcmp.lt.s32.totalorder %v1486, 16
        %vm1491 = vcmp.lt.s32.totalorder %v1487, 16
        %vm1492 = vmand %vm1488, %vm1490
        %vm1493 = vmand %vm1489, %vm1491
        %v1494 = vsel %vm1492, 1, 0
        %v1495 = vsel %vm1493, 1, 0
        %vm1496 = vcmp.eq.s32.totalorder %v1494, 1
        %vm1497 = vcmp.eq.s32.totalorder %v1495, 1
        %v1498 = vsel %vm1496, %v1480, 0.0
        %v1499 = vsel %vm1497, %v1482, 0.0
        %v1500 = vadd.f32 %v1498, 0.0
        %v1501 = vadd.f32 %v1499, 0.0
        %1502 = vrot.lane.b32.xlu0 %v267, 96
        %v1503 = vpop.permute.xlu0 %1502
        %1504 = vrot.lane.b32.xlu0 %v268, 96
        %v1505 = vpop.permute.xlu0 %1504
        %1506 = vrot.lane.b32.xlu0 %v269, 96
        %v1507 = vpop.permute.xlu0 %1506
        %vm1508 = vcmask 785408
        %v1509 = vsel %vm1508, %v1503, %v1505
        %v1510 = vsel %vm1508, %v1505, %v1507
        %v1512 = vsel %vm279, %v218, 0
        %v1515 = vsel %vm283, %v1509, 0
        %v1518 = vsel %vm283, %v1510, 0
        %1520 = vmatprep.subr.bf16.mxu0 0
        %1521 = vmatpush1.bf16.msra.mxu0 0
        %1522 = vmatprep.subr.bf16.mxu0 0
        %1523 = vmatpush1.bf16.msra.mxu0 0
        %1524 = vmatprep.subr.bf16.mxu0 0
        %1525 = vmatpush1.bf16.msra.mxu0 0
        %1526 = vmatprep.subr.bf16.mxu0 0
        %1527 = vmatpush1.bf16.msra.mxu0 0
        %1528 = vmatprep.subr.bf16.mxu0 0
        %1529 = vmatpush1.bf16.msra.mxu0 0
        %1530 = vmatprep.subr.bf16.mxu0 0
        %1531 = vmatpush1.bf16.msra.mxu0 0
        %1532 = vmatprep.subr.bf16.mxu0 0
        %1533 = vmatpush1.bf16.msra.mxu0 0
        %1534 = vmatprep.subr.bf16.mxu0 %v1518
        %1535 = vmatpush1.bf16.msra.mxu0 %v1515
        %1536 = vmatprep.subr.bf16.mxu0 0
        %1537 = vmatpush2.bf16.msra.mxu0 0
        %1538 = vmatprep.subr.bf16.mxu0 0
        %1539 = vmatpush2.bf16.msra.mxu0 0
        %1540 = vmatprep.subr.bf16.mxu0 0
        %1541 = vmatpush2.bf16.msra.mxu0 0
        %1542 = vmatprep.subr.bf16.mxu0 0
        %1543 = vmatpush2.bf16.msra.mxu0 0
        %1544 = vmatprep.subr.bf16.mxu0 0
        %1545 = vmatpush2.bf16.msra.mxu0 0
        %1546 = vmatprep.subr.bf16.mxu0 0
        %1547 = vmatpush2.bf16.msra.mxu0 0
        %1548 = vmatprep.subr.bf16.mxu0 0
        %1549 = vmatpush2.bf16.msra.mxu0 0
        %1550 = vmatprep.subr.bf16.mxu0 0
        %1551 = vmatpush2.bf16.msra.mxu0 0
        %1552 = vmatprep.mubr.bf16.mxu0 0
        %1553 = vmatmul.mubr.bf16.gmra.mxu0 %v1512
        %v1554 = vpop.f32.mrf.mxu0
        %v1555 = vadd.f32 0.0, %v1554
        %v1556 = vpop.f32.mrf.mxu0
        %v1557 = vadd.f32 0.0, %v1556
        %v1558 = vpop.f32.mrf.mxu0
        %v1559 = vpop.f32.mrf.mxu0
        %1560 = vdwg.mxu0
        %v1561 = vadd.f32 %v1500, %v1555
        %v1562 = vadd.f32 %v1501, %v1557
        %1563 = vrot.lane.b32.xlu0 %v267, 93
        %v1564 = vpop.permute.xlu0 %1563
        %1565 = vrot.lane.b32.xlu0 %v268, 93
        %v1566 = vpop.permute.xlu0 %1565
        %1567 = vrot.lane.b32.xlu0 %v269, 93
        %v1568 = vpop.permute.xlu0 %1567
        %vm1569 = vcmask 760832
        %v1570 = vsel %vm1569, %v1564, %v1566
        %v1571 = vsel %vm1569, %v1566, %v1568
        %v1573 = vsel %vm279, %v219, 0
        %v1576 = vsel %vm283, %v1570, 0
        %v1579 = vsel %vm283, %v1571, 0
        %1581 = vmatprep.subr.bf16.mxu0 0
        %1582 = vmatpush1.bf16.msra.mxu0 0
        %1583 = vmatprep.subr.bf16.mxu0 0
        %1584 = vmatpush1.bf16.msra.mxu0 0
        %1585 = vmatprep.subr.bf16.mxu0 0
        %1586 = vmatpush1.bf16.msra.mxu0 0
        %1587 = vmatprep.subr.bf16.mxu0 0
        %1588 = vmatpush1.bf16.msra.mxu0 0
        %1589 = vmatprep.subr.bf16.mxu0 0
        %1590 = vmatpush1.bf16.msra.mxu0 0
        %1591 = vmatprep.subr.bf16.mxu0 0
        %1592 = vmatpush1.bf16.msra.mxu0 0
        %1593 = vmatprep.subr.bf16.mxu0 0
        %1594 = vmatpush1.bf16.msra.mxu0 0
        %1595 = vmatprep.subr.bf16.mxu0 %v1579
        %1596 = vmatpush1.bf16.msra.mxu0 %v1576
        %1597 = vmatprep.subr.bf16.mxu0 0
        %1598 = vmatpush2.bf16.msra.mxu0 0
        %1599 = vmatprep.subr.bf16.mxu0 0
        %1600 = vmatpush2.bf16.msra.mxu0 0
        %1601 = vmatprep.subr.bf16.mxu0 0
        %1602 = vmatpush2.bf16.msra.mxu0 0
        %1603 = vmatprep.subr.bf16.mxu0 0
        %1604 = vmatpush2.bf16.msra.mxu0 0
        %1605 = vmatprep.subr.bf16.mxu0 0
        %1606 = vmatpush2.bf16.msra.mxu0 0
        %1607 = vmatprep.subr.bf16.mxu0 0
        %1608 = vmatpush2.bf16.msra.mxu0 0
        %1609 = vmatprep.subr.bf16.mxu0 0
        %1610 = vmatpush2.bf16.msra.mxu0 0
        %1611 = vmatprep.subr.bf16.mxu0 0
        %1612 = vmatpush2.bf16.msra.mxu0 0
        %1613 = vmatprep.mubr.bf16.mxu0 0
        %1614 = vmatmul.mubr.bf16.gmra.mxu0 %v1573
        %v1615 = vpop.f32.mrf.mxu0
        %v1616 = vadd.f32 0.0, %v1615
        %v1617 = vpop.f32.mrf.mxu0
        %v1618 = vadd.f32 0.0, %v1617
        %v1619 = vpop.f32.mrf.mxu0
        %v1620 = vpop.f32.mrf.mxu0
        %1621 = vdwg.mxu0
        %v1622 = vadd.s32 %v260, 3
        %v1623 = vadd.s32 %v261, 3
        %vm1624 = vcmp.ge.s32.totalorder %v1622, 0
        %vm1625 = vcmp.ge.s32.totalorder %v1623, 0
        %vm1626 = vcmp.lt.s32.totalorder %v1622, 16
        %vm1627 = vcmp.lt.s32.totalorder %v1623, 16
        %vm1628 = vmand %vm1624, %vm1626
        %vm1629 = vmand %vm1625, %vm1627
        %v1630 = vsel %vm1628, 1, 0
        %v1631 = vsel %vm1629, 1, 0
        %vm1632 = vcmp.eq.s32.totalorder %v1630, 1
        %vm1633 = vcmp.eq.s32.totalorder %v1631, 1
        %v1634 = vsel %vm1632, %v1616, 0.0
        %v1635 = vsel %vm1633, %v1618, 0.0
        %v1636 = vadd.f32 %v1561, %v1634
        %v1637 = vadd.f32 %v1562, %v1635
        %1638 = vrot.lane.b32.xlu0 %v267, 51
        %v1639 = vpop.permute.xlu0 %1638
        %1640 = vrot.lane.b32.xlu0 %v268, 51
        %v1641 = vpop.permute.xlu0 %1640
        %1642 = vrot.lane.b32.xlu0 %v269, 51
        %v1643 = vpop.permute.xlu0 %1642
        %vm1644 = vcmask 416768
        %v1645 = vsel %vm1644, %v1639, %v1641
        %v1646 = vsel %vm1644, %v1641, %v1643
        %v1648 = vsel %vm279, %v220, 0
        %v1651 = vsel %vm283, %v1645, 0
        %v1654 = vsel %vm283, %v1646, 0
        %1656 = vmatprep.subr.bf16.mxu0 0
        %1657 = vmatpush1.bf16.msra.mxu0 0
        %1658 = vmatprep.subr.bf16.mxu0 0
        %1659 = vmatpush1.bf16.msra.mxu0 0
        %1660 = vmatprep.subr.bf16.mxu0 0
        %1661 = vmatpush1.bf16.msra.mxu0 0
        %1662 = vmatprep.subr.bf16.mxu0 0
        %1663 = vmatpush1.bf16.msra.mxu0 0
        %1664 = vmatprep.subr.bf16.mxu0 0
        %1665 = vmatpush1.bf16.msra.mxu0 0
        %1666 = vmatprep.subr.bf16.mxu0 0
        %1667 = vmatpush1.bf16.msra.mxu0 0
        %1668 = vmatprep.subr.bf16.mxu0 0
        %1669 = vmatpush1.bf16.msra.mxu0 0
        %1670 = vmatprep.subr.bf16.mxu0 %v1654
        %1671 = vmatpush1.bf16.msra.mxu0 %v1651
        %1672 = vmatprep.subr.bf16.mxu0 0
        %1673 = vmatpush2.bf16.msra.mxu0 0
        %1674 = vmatprep.subr.bf16.mxu0 0
        %1675 = vmatpush2.bf16.msra.mxu0 0
        %1676 = vmatprep.subr.bf16.mxu0 0
        %1677 = vmatpush2.bf16.msra.mxu0 0
        %1678 = vmatprep.subr.bf16.mxu0 0
        %1679 = vmatpush2.bf16.msra.mxu0 0
        %1680 = vmatprep.subr.bf16.mxu0 0
        %1681 = vmatpush2.bf16.msra.mxu0 0
        %1682 = vmatprep.subr.bf16.mxu0 0
        %1683 = vmatpush2.bf16.msra.mxu0 0
        %1684 = vmatprep.subr.bf16.mxu0 0
        %1685 = vmatpush2.bf16.msra.mxu0 0
        %1686 = vmatprep.subr.bf16.mxu0 0
        %1687 = vmatpush2.bf16.msra.mxu0 0
        %1688 = vmatprep.mubr.bf16.mxu0 0
        %1689 = vmatmul.mubr.bf16.gmra.mxu0 %v1648
        %v1690 = vpop.f32.mrf.mxu0
        %v1691 = vadd.f32 0.0, %v1690
        %v1692 = vpop.f32.mrf.mxu0
        %v1693 = vadd.f32 0.0, %v1692
        %v1694 = vpop.f32.mrf.mxu0
        %v1695 = vpop.f32.mrf.mxu0
        %1696 = vdwg.mxu0
        %v1697 = vsel %vm1496, %v1691, 0.0
        %v1698 = vsel %vm1497, %v1693, 0.0
        %v1699 = vadd.f32 %v1636, %v1697
        %v1700 = vadd.f32 %v1637, %v1698
        %v1702 = vsel %vm279, %v221, 0
        %1704 = vmatprep.subr.bf16.mxu0 0
        %1705 = vmatpush1.bf16.msra.mxu0 0
        %1706 = vmatprep.subr.bf16.mxu0 0
        %1707 = vmatpush1.bf16.msra.mxu0 0
        %1708 = vmatprep.subr.bf16.mxu0 0
        %1709 = vmatpush1.bf16.msra.mxu0 0
        %1710 = vmatprep.subr.bf16.mxu0 0
        %1711 = vmatpush1.bf16.msra.mxu0 0
        %1712 = vmatprep.subr.bf16.mxu0 0
        %1713 = vmatpush1.bf16.msra.mxu0 0
        %1714 = vmatprep.subr.bf16.mxu0 0
        %1715 = vmatpush1.bf16.msra.mxu0 0
        %1716 = vmatprep.subr.bf16.mxu0 0
        %1717 = vmatpush1.bf16.msra.mxu0 0
        %1718 = vmatprep.subr.bf16.mxu0 %v562
        %1719 = vmatpush1.bf16.msra.mxu0 %v559
        %1720 = vmatprep.subr.bf16.mxu0 0
        %1721 = vmatpush2.bf16.msra.mxu0 0
        %1722 = vmatprep.subr.bf16.mxu0 0
        %1723 = vmatpush2.bf16.msra.mxu0 0
        %1724 = vmatprep.subr.bf16.mxu0 0
        %1725 = vmatpush2.bf16.msra.mxu0 0
        %1726 = vmatprep.subr.bf16.mxu0 0
        %1727 = vmatpush2.bf16.msra.mxu0 0
        %1728 = vmatprep.subr.bf16.mxu0 0
        %1729 = vmatpush2.bf16.msra.mxu0 0
        %1730 = vmatprep.subr.bf16.mxu0 0
        %1731 = vmatpush2.bf16.msra.mxu0 0
        %1732 = vmatprep.subr.bf16.mxu0 0
        %1733 = vmatpush2.bf16.msra.mxu0 0
        %1734 = vmatprep.subr.bf16.mxu0 0
        %1735 = vmatpush2.bf16.msra.mxu0 0
        %1736 = vmatprep.mubr.bf16.mxu0 0
        %1737 = vmatmul.mubr.bf16.gmra.mxu0 %v1702
        %v1738 = vpop.f32.mrf.mxu0
        %v1739 = vadd.f32 0.0, %v1738
        %v1740 = vpop.f32.mrf.mxu0
        %v1741 = vadd.f32 0.0, %v1740
        %v1742 = vpop.f32.mrf.mxu0
        %v1743 = vpop.f32.mrf.mxu0
        %1744 = vdwg.mxu0
        %v1745 = vadd.f32 %v1699, %v1739
        %v1746 = vadd.f32 %v1700, %v1741
        %1747 = vrot.lane.b32.xlu0 %v267, 45
        %v1748 = vpop.permute.xlu0 %1747
        %1749 = vrot.lane.b32.xlu0 %v268, 45
        %v1750 = vpop.permute.xlu0 %1749
        %1751 = vrot.lane.b32.xlu0 %v269, 45
        %v1752 = vpop.permute.xlu0 %1751
        %vm1753 = vcmask 367616
        %v1754 = vsel %vm1753, %v1748, %v1750
        %v1755 = vsel %vm1753, %v1750, %v1752
        %v1757 = vsel %vm279, %v222, 0
        %v1760 = vsel %vm283, %v1754, 0
        %v1763 = vsel %vm283, %v1755, 0
        %1765 = vmatprep.subr.bf16.mxu0 0
        %1766 = vmatpush1.bf16.msra.mxu0 0
        %1767 = vmatprep.subr.bf16.mxu0 0
        %1768 = vmatpush1.bf16.msra.mxu0 0
        %1769 = vmatprep.subr.bf16.mxu0 0
        %1770 = vmatpush1.bf16.msra.mxu0 0
        %1771 = vmatprep.subr.bf16.mxu0 0
        %1772 = vmatpush1.bf16.msra.mxu0 0
        %1773 = vmatprep.subr.bf16.mxu0 0
        %1774 = vmatpush1.bf16.msra.mxu0 0
        %1775 = vmatprep.subr.bf16.mxu0 0
        %1776 = vmatpush1.bf16.msra.mxu0 0
        %1777 = vmatprep.subr.bf16.mxu0 0
        %1778 = vmatpush1.bf16.msra.mxu0 0
        %1779 = vmatprep.subr.bf16.mxu0 %v1763
        %1780 = vmatpush1.bf16.msra.mxu0 %v1760
        %1781 = vmatprep.subr.bf16.mxu0 0
        %1782 = vmatpush2.bf16.msra.mxu0 0
        %1783 = vmatprep.subr.bf16.mxu0 0
        %1784 = vmatpush2.bf16.msra.mxu0 0
        %1785 = vmatprep.subr.bf16.mxu0 0
        %1786 = vmatpush2.bf16.msra.mxu0 0
        %1787 = vmatprep.subr.bf16.mxu0 0
        %1788 = vmatpush2.bf16.msra.mxu0 0
        %1789 = vmatprep.subr.bf16.mxu0 0
        %1790 = vmatpush2.bf16.msra.mxu0 0
        %1791 = vmatprep.subr.bf16.mxu0 0
        %1792 = vmatpush2.bf16.msra.mxu0 0
        %1793 = vmatprep.subr.bf16.mxu0 0
        %1794 = vmatpush2.bf16.msra.mxu0 0
        %1795 = vmatprep.subr.bf16.mxu0 0
        %1796 = vmatpush2.bf16.msra.mxu0 0
        %1797 = vmatprep.mubr.bf16.mxu0 0
        %1798 = vmatmul.mubr.bf16.gmra.mxu0 %v1757
        %v1799 = vpop.f32.mrf.mxu0
        %v1800 = vadd.f32 0.0, %v1799
        %v1801 = vpop.f32.mrf.mxu0
        %v1802 = vadd.f32 0.0, %v1801
        %v1803 = vpop.f32.mrf.mxu0
        %v1804 = vpop.f32.mrf.mxu0
        %1805 = vdwg.mxu0
        %v1806 = vsel %vm1632, %v1800, 0.0
        %v1807 = vsel %vm1633, %v1802, 0.0
        %v1808 = vadd.f32 %v1745, %v1806
        %v1809 = vadd.f32 %v1746, %v1807
        %1810 = vrot.lane.b32.xlu0 %v267, 3
        %v1811 = vpop.permute.xlu0 %1810
        %1812 = vrot.lane.b32.xlu0 %v268, 3
        %v1813 = vpop.permute.xlu0 %1812
        %1814 = vrot.lane.b32.xlu0 %v269, 3
        %v1815 = vpop.permute.xlu0 %1814
        %vm1816 = vcmask 23552
        %v1817 = vsel %vm1816, %v1811, %v1813
        %v1818 = vsel %vm1816, %v1813, %v1815
        %v1820 = vsel %vm279, %v223, 0
        %v1823 = vsel %vm283, %v1817, 0
        %v1826 = vsel %vm283, %v1818, 0
        %1828 = vmatprep.subr.bf16.mxu0 0
        %1829 = vmatpush1.bf16.msra.mxu0 0
        %1830 = vmatprep.subr.bf16.mxu0 0
        %1831 = vmatpush1.bf16.msra.mxu0 0
        %1832 = vmatprep.subr.bf16.mxu0 0
        %1833 = vmatpush1.bf16.msra.mxu0 0
        %1834 = vmatprep.subr.bf16.mxu0 0
        %1835 = vmatpush1.bf16.msra.mxu0 0
        %1836 = vmatprep.subr.bf16.mxu0 0
        %1837 = vmatpush1.bf16.msra.mxu0 0
        %1838 = vmatprep.subr.bf16.mxu0 0
        %1839 = vmatpush1.bf16.msra.mxu0 0
        %1840 = vmatprep.subr.bf16.mxu0 0
        %1841 = vmatpush1.bf16.msra.mxu0 0
        %1842 = vmatprep.subr.bf16.mxu0 %v1826
        %1843 = vmatpush1.bf16.msra.mxu0 %v1823
        %1844 = vmatprep.subr.bf16.mxu0 0
        %1845 = vmatpush2.bf16.msra.mxu0 0
        %1846 = vmatprep.subr.bf16.mxu0 0
        %1847 = vmatpush2.bf16.msra.mxu0 0
        %1848 = vmatprep.subr.bf16.mxu0 0
        %1849 = vmatpush2.bf16.msra.mxu0 0
        %1850 = vmatprep.subr.bf16.mxu0 0
        %1851 = vmatpush2.bf16.msra.mxu0 0
        %1852 = vmatprep.subr.bf16.mxu0 0
        %1853 = vmatpush2.bf16.msra.mxu0 0
        %1854 = vmatprep.subr.bf16.mxu0 0
        %1855 = vmatpush2.bf16.msra.mxu0 0
        %1856 = vmatprep.subr.bf16.mxu0 0
        %1857 = vmatpush2.bf16.msra.mxu0 0
        %1858 = vmatprep.subr.bf16.mxu0 0
        %1859 = vmatpush2.bf16.msra.mxu0 0
        %1860 = vmatprep.mubr.bf16.mxu0 0
        %1861 = vmatmul.mubr.bf16.gmra.mxu0 %v1820
        %v1862 = vpop.f32.mrf.mxu0
        %v1863 = vadd.f32 0.0, %v1862
        %v1864 = vpop.f32.mrf.mxu0
        %v1865 = vadd.f32 0.0, %v1864
        %v1866 = vpop.f32.mrf.mxu0
        %v1867 = vpop.f32.mrf.mxu0
        %1868 = vdwg.mxu0
        %v1869 = vsel %vm1496, %v1863, 0.0
        %v1870 = vsel %vm1497, %v1865, 0.0
        %v1871 = vadd.f32 %v1808, %v1869
        %v1872 = vadd.f32 %v1809, %v1870
        %v1874 = vsel %vm279, %v224, 0
        %v1877 = vsel %vm283, %v268, 0
        %v1880 = vsel %vm283, %v269, 0
        %1882 = vmatprep.subr.bf16.mxu0 0
        %1883 = vmatpush1.bf16.msra.mxu0 0
        %1884 = vmatprep.subr.bf16.mxu0 0
        %1885 = vmatpush1.bf16.msra.mxu0 0
        %1886 = vmatprep.subr.bf16.mxu0 0
        %1887 = vmatpush1.bf16.msra.mxu0 0
        %1888 = vmatprep.subr.bf16.mxu0 0
        %1889 = vmatpush1.bf16.msra.mxu0 0
        %1890 = vmatprep.subr.bf16.mxu0 0
        %1891 = vmatpush1.bf16.msra.mxu0 0
        %1892 = vmatprep.subr.bf16.mxu0 0
        %1893 = vmatpush1.bf16.msra.mxu0 0
        %1894 = vmatprep.subr.bf16.mxu0 0
        %1895 = vmatpush1.bf16.msra.mxu0 0
        %1896 = vmatprep.subr.bf16.mxu0 %v1880
        %1897 = vmatpush1.bf16.msra.mxu0 %v1877
        %1898 = vmatprep.subr.bf16.mxu0 0
        %1899 = vmatpush2.bf16.msra.mxu0 0
        %1900 = vmatprep.subr.bf16.mxu0 0
        %1901 = vmatpush2.bf16.msra.mxu0 0
        %1902 = vmatprep.subr.bf16.mxu0 0
        %1903 = vmatpush2.bf16.msra.mxu0 0
        %1904 = vmatprep.subr.bf16.mxu0 0
        %1905 = vmatpush2.bf16.msra.mxu0 0
        %1906 = vmatprep.subr.bf16.mxu0 0
        %1907 = vmatpush2.bf16.msra.mxu0 0
        %1908 = vmatprep.subr.bf16.mxu0 0
        %1909 = vmatpush2.bf16.msra.mxu0 0
        %1910 = vmatprep.subr.bf16.mxu0 0
        %1911 = vmatpush2.bf16.msra.mxu0 0
        %1912 = vmatprep.subr.bf16.mxu0 0
        %1913 = vmatpush2.bf16.msra.mxu0 0
        %1914 = vmatprep.mubr.bf16.mxu0 0
        %1915 = vmatmul.mubr.bf16.gmra.mxu0 %v1874
        %v1916 = vpop.f32.mrf.mxu0
        %v1917 = vadd.f32 0.0, %v1916
        %v1918 = vpop.f32.mrf.mxu0
        %v1919 = vadd.f32 0.0, %v1918
        %v1920 = vpop.f32.mrf.mxu0
        %v1921 = vpop.f32.mrf.mxu0
        %1922 = vdwg.mxu0
        %v1923 = vadd.f32 %v1871, %v1917
        %v1924 = vadd.f32 %v1872, %v1919
        %v1925 = vunpack.c.h.b16 %v198
        %v1926 = vpack.c.b16 %v1925, %v1925
        %1927 = vrot.lane.b32.xlu0 %v268, 125
        %v1928 = vpop.permute.xlu0 %1927
        %1929 = vrot.lane.b32.xlu0 %v269, 125
        %v1930 = vpop.permute.xlu0 %1929
        %1931 = vrot.lane.b32.xlu0 %v1926, 125
        %v1932 = vpop.permute.xlu0 %1931
        %vm1933 = vcmask 1022976
        %v1934 = vsel %vm1933, %v1928, %v1930
        %v1935 = vsel %vm1933, %v1930, %v1932
        %v1937 = vsel %vm279, %v225, 0
        %v1940 = vsel %vm283, %v1934, 0
        %v1943 = vsel %vm283, %v1935, 0
        %1945 = vmatprep.subr.bf16.mxu0 0
        %1946 = vmatpush1.bf16.msra.mxu0 0
        %1947 = vmatprep.subr.bf16.mxu0 0
        %1948 = vmatpush1.bf16.msra.mxu0 0
        %1949 = vmatprep.subr.bf16.mxu0 0
        %1950 = vmatpush1.bf16.msra.mxu0 0
        %1951 = vmatprep.subr.bf16.mxu0 0
        %1952 = vmatpush1.bf16.msra.mxu0 0
        %1953 = vmatprep.subr.bf16.mxu0 0
        %1954 = vmatpush1.bf16.msra.mxu0 0
        %1955 = vmatprep.subr.bf16.mxu0 0
        %1956 = vmatpush1.bf16.msra.mxu0 0
        %1957 = vmatprep.subr.bf16.mxu0 0
        %1958 = vmatpush1.bf16.msra.mxu0 0
        %1959 = vmatprep.subr.bf16.mxu0 %v1943
        %1960 = vmatpush1.bf16.msra.mxu0 %v1940
        %1961 = vmatprep.subr.bf16.mxu0 0
        %1962 = vmatpush2.bf16.msra.mxu0 0
        %1963 = vmatprep.subr.bf16.mxu0 0
        %1964 = vmatpush2.bf16.msra.mxu0 0
        %1965 = vmatprep.subr.bf16.mxu0 0
        %1966 = vmatpush2.bf16.msra.mxu0 0
        %1967 = vmatprep.subr.bf16.mxu0 0
        %1968 = vmatpush2.bf16.msra.mxu0 0
        %1969 = vmatprep.subr.bf16.mxu0 0
        %1970 = vmatpush2.bf16.msra.mxu0 0
        %1971 = vmatprep.subr.bf16.mxu0 0
        %1972 = vmatpush2.bf16.msra.mxu0 0
        %1973 = vmatprep.subr.bf16.mxu0 0
        %1974 = vmatpush2.bf16.msra.mxu0 0
        %1975 = vmatprep.subr.bf16.mxu0 0
        %1976 = vmatpush2.bf16.msra.mxu0 0
        %1977 = vmatprep.mubr.bf16.mxu0 0
        %1978 = vmatmul.mubr.bf16.gmra.mxu0 %v1937
        %v1979 = vpop.f32.mrf.mxu0
        %v1980 = vadd.f32 0.0, %v1979
        %v1981 = vpop.f32.mrf.mxu0
        %v1982 = vadd.f32 0.0, %v1981
        %v1983 = vpop.f32.mrf.mxu0
        %v1984 = vpop.f32.mrf.mxu0
        %1985 = vdwg.mxu0
        %v1986 = vsel %vm1632, %v1980, 0.0
        %v1987 = vsel %vm1633, %v1982, 0.0
        %v1988 = vadd.f32 %v1923, %v1986
        %v1989 = vadd.f32 %v1924, %v1987
        %1990 = vrot.lane.b32.xlu0 %v267, 116
        %v1991 = vpop.permute.xlu0 %1990
        %1992 = vrot.lane.b32.xlu0 %v268, 116
        %v1993 = vpop.permute.xlu0 %1992
        %1994 = vrot.lane.b32.xlu0 %v269, 116
        %v1995 = vpop.permute.xlu0 %1994
        %vm1996 = vcmask 949248
        %v1997 = vsel %vm1996, %v1991, %v1993
        %v1998 = vsel %vm1996, %v1993, %v1995
        %v2000 = vsel %vm279, %v226, 0
        %v2003 = vsel %vm283, %v1997, 0
        %v2006 = vsel %vm283, %v1998, 0
        %2008 = vmatprep.subr.bf16.mxu0 0
        %2009 = vmatpush1.bf16.msra.mxu0 0
        %2010 = vmatprep.subr.bf16.mxu0 0
        %2011 = vmatpush1.bf16.msra.mxu0 0
        %2012 = vmatprep.subr.bf16.mxu0 0
        %2013 = vmatpush1.bf16.msra.mxu0 0
        %2014 = vmatprep.subr.bf16.mxu0 0
        %2015 = vmatpush1.bf16.msra.mxu0 0
        %2016 = vmatprep.subr.bf16.mxu0 0
        %2017 = vmatpush1.bf16.msra.mxu0 0
        %2018 = vmatprep.subr.bf16.mxu0 0
        %2019 = vmatpush1.bf16.msra.mxu0 0
        %2020 = vmatprep.subr.bf16.mxu0 0
        %2021 = vmatpush1.bf16.msra.mxu0 0
        %2022 = vmatprep.subr.bf16.mxu0 %v2006
        %2023 = vmatpush1.bf16.msra.mxu0 %v2003
        %2024 = vmatprep.subr.bf16.mxu0 0
        %2025 = vmatpush2.bf16.msra.mxu0 0
        %2026 = vmatprep.subr.bf16.mxu0 0
        %2027 = vmatpush2.bf16.msra.mxu0 0
        %2028 = vmatprep.subr.bf16.mxu0 0
        %2029 = vmatpush2.bf16.msra.mxu0 0
        %2030 = vmatprep.subr.bf16.mxu0 0
        %2031 = vmatpush2.bf16.msra.mxu0 0
        %2032 = vmatprep.subr.bf16.mxu0 0
        %2033 = vmatpush2.bf16.msra.mxu0 0
        %2034 = vmatprep.subr.bf16.mxu0 0
        %2035 = vmatpush2.bf16.msra.mxu0 0
        %2036 = vmatprep.subr.bf16.mxu0 0
        %2037 = vmatpush2.bf16.msra.mxu0 0
        %2038 = vmatprep.subr.bf16.mxu0 0
        %2039 = vmatpush2.bf16.msra.mxu0 0
        %2040 = vmatprep.mubr.bf16.mxu0 0
        %2041 = vmatmul.mubr.bf16.gmra.mxu0 %v2000
        %v2042 = vpop.f32.mrf.mxu0
        %v2043 = vadd.f32 0.0, %v2042
        %v2044 = vpop.f32.mrf.mxu0
        %v2045 = vadd.f32 0.0, %v2044
        %v2046 = vpop.f32.mrf.mxu0
        %v2047 = vpop.f32.mrf.mxu0
        %2048 = vdwg.mxu0
        %v2049 = vadd.s32 %v260, 4294967292
        %v2050 = vadd.s32 %v261, 4294967292
        %vm2051 = vcmp.ge.s32.totalorder %v2049, 0
        %vm2052 = vcmp.ge.s32.totalorder %v2050, 0
        %vm2053 = vcmp.lt.s32.totalorder %v2049, 16
        %vm2054 = vcmp.lt.s32.totalorder %v2050, 16
        %vm2055 = vmand %vm2051, %vm2053
        %vm2056 = vmand %vm2052, %vm2054
        %v2057 = vsel %vm2055, 1, 0
        %v2058 = vsel %vm2056, 1, 0
        %vm2059 = vcmp.eq.s32.totalorder %v2057, 1
        %vm2060 = vcmp.eq.s32.totalorder %v2058, 1
        %v2061 = vsel %vm2059, %v2043, 0.0
        %v2062 = vsel %vm2060, %v2045, 0.0
        %v2063 = vadd.f32 %v2061, 0.0
        %v2064 = vadd.f32 %v2062, 0.0
        %2065 = vrot.lane.b32.xlu0 %v267, 112
        %v2066 = vpop.permute.xlu0 %2065
        %2067 = vrot.lane.b32.xlu0 %v268, 112
        %v2068 = vpop.permute.xlu0 %2067
        %2069 = vrot.lane.b32.xlu0 %v269, 112
        %v2070 = vpop.permute.xlu0 %2069
        %vm2071 = vcmask 916480
        %v2072 = vsel %vm2071, %v2066, %v2068
        %v2073 = vsel %vm2071, %v2068, %v2070
        %v2075 = vsel %vm279, %v227, 0
        %v2078 = vsel %vm283, %v2072, 0
        %v2081 = vsel %vm283, %v2073, 0
        %2083 = vmatprep.subr.bf16.mxu0 0
        %2084 = vmatpush1.bf16.msra.mxu0 0
        %2085 = vmatprep.subr.bf16.mxu0 0
        %2086 = vmatpush1.bf16.msra.mxu0 0
        %2087 = vmatprep.subr.bf16.mxu0 0
        %2088 = vmatpush1.bf16.msra.mxu0 0
        %2089 = vmatprep.subr.bf16.mxu0 0
        %2090 = vmatpush1.bf16.msra.mxu0 0
        %2091 = vmatprep.subr.bf16.mxu0 0
        %2092 = vmatpush1.bf16.msra.mxu0 0
        %2093 = vmatprep.subr.bf16.mxu0 0
        %2094 = vmatpush1.bf16.msra.mxu0 0
        %2095 = vmatprep.subr.bf16.mxu0 0
        %2096 = vmatpush1.bf16.msra.mxu0 0
        %2097 = vmatprep.subr.bf16.mxu0 %v2081
        %2098 = vmatpush1.bf16.msra.mxu0 %v2078
        %2099 = vmatprep.subr.bf16.mxu0 0
        %2100 = vmatpush2.bf16.msra.mxu0 0
        %2101 = vmatprep.subr.bf16.mxu0 0
        %2102 = vmatpush2.bf16.msra.mxu0 0
        %2103 = vmatprep.subr.bf16.mxu0 0
        %2104 = vmatpush2.bf16.msra.mxu0 0
        %2105 = vmatprep.subr.bf16.mxu0 0
        %2106 = vmatpush2.bf16.msra.mxu0 0
        %2107 = vmatprep.subr.bf16.mxu0 0
        %2108 = vmatpush2.bf16.msra.mxu0 0
        %2109 = vmatprep.subr.bf16.mxu0 0
        %2110 = vmatpush2.bf16.msra.mxu0 0
        %2111 = vmatprep.subr.bf16.mxu0 0
        %2112 = vmatpush2.bf16.msra.mxu0 0
        %2113 = vmatprep.subr.bf16.mxu0 0
        %2114 = vmatpush2.bf16.msra.mxu0 0
        %2115 = vmatprep.mubr.bf16.mxu0 0
        %2116 = vmatmul.mubr.bf16.gmra.mxu0 %v2075
        %v2117 = vpop.f32.mrf.mxu0
        %v2118 = vadd.f32 0.0, %v2117
        %v2119 = vpop.f32.mrf.mxu0
        %v2120 = vadd.f32 0.0, %v2119
        %v2121 = vpop.f32.mrf.mxu0
        %v2122 = vpop.f32.mrf.mxu0
        %2123 = vdwg.mxu0
        %v2124 = vadd.f32 %v2063, %v2118
        %v2125 = vadd.f32 %v2064, %v2120
        %2126 = vrot.lane.b32.xlu0 %v267, 108
        %v2127 = vpop.permute.xlu0 %2126
        %2128 = vrot.lane.b32.xlu0 %v268, 108
        %v2129 = vpop.permute.xlu0 %2128
        %2130 = vrot.lane.b32.xlu0 %v269, 108
        %v2131 = vpop.permute.xlu0 %2130
        %vm2132 = vcmask 883712
        %v2133 = vsel %vm2132, %v2127, %v2129
        %v2134 = vsel %vm2132, %v2129, %v2131
        %v2136 = vsel %vm279, %v228, 0
        %v2139 = vsel %vm283, %v2133, 0
        %v2142 = vsel %vm283, %v2134, 0
        %2144 = vmatprep.subr.bf16.mxu0 0
        %2145 = vmatpush1.bf16.msra.mxu0 0
        %2146 = vmatprep.subr.bf16.mxu0 0
        %2147 = vmatpush1.bf16.msra.mxu0 0
        %2148 = vmatprep.subr.bf16.mxu0 0
        %2149 = vmatpush1.bf16.msra.mxu0 0
        %2150 = vmatprep.subr.bf16.mxu0 0
        %2151 = vmatpush1.bf16.msra.mxu0 0
        %2152 = vmatprep.subr.bf16.mxu0 0
        %2153 = vmatpush1.bf16.msra.mxu0 0
        %2154 = vmatprep.subr.bf16.mxu0 0
        %2155 = vmatpush1.bf16.msra.mxu0 0
        %2156 = vmatprep.subr.bf16.mxu0 0
        %2157 = vmatpush1.bf16.msra.mxu0 0
        %2158 = vmatprep.subr.bf16.mxu0 %v2142
        %2159 = vmatpush1.bf16.msra.mxu0 %v2139
        %2160 = vmatprep.subr.bf16.mxu0 0
        %2161 = vmatpush2.bf16.msra.mxu0 0
        %2162 = vmatprep.subr.bf16.mxu0 0
        %2163 = vmatpush2.bf16.msra.mxu0 0
        %2164 = vmatprep.subr.bf16.mxu0 0
        %2165 = vmatpush2.bf16.msra.mxu0 0
        %2166 = vmatprep.subr.bf16.mxu0 0
        %2167 = vmatpush2.bf16.msra.mxu0 0
        %2168 = vmatprep.subr.bf16.mxu0 0
        %2169 = vmatpush2.bf16.msra.mxu0 0
        %2170 = vmatprep.subr.bf16.mxu0 0
        %2171 = vmatpush2.bf16.msra.mxu0 0
        %2172 = vmatprep.subr.bf16.mxu0 0
        %2173 = vmatpush2.bf16.msra.mxu0 0
        %2174 = vmatprep.subr.bf16.mxu0 0
        %2175 = vmatpush2.bf16.msra.mxu0 0
        %2176 = vmatprep.mubr.bf16.mxu0 0
        %2177 = vmatmul.mubr.bf16.gmra.mxu0 %v2136
        %v2178 = vpop.f32.mrf.mxu0
        %v2179 = vadd.f32 0.0, %v2178
        %v2180 = vpop.f32.mrf.mxu0
        %v2181 = vadd.f32 0.0, %v2180
        %v2182 = vpop.f32.mrf.mxu0
        %v2183 = vpop.f32.mrf.mxu0
        %2184 = vdwg.mxu0
        %v2185 = vadd.s32 %v260, 4
        %v2186 = vadd.s32 %v261, 4
        %vm2187 = vcmp.ge.s32.totalorder %v2185, 0
        %vm2188 = vcmp.ge.s32.totalorder %v2186, 0
        %vm2189 = vcmp.lt.s32.totalorder %v2185, 16
        %vm2190 = vcmp.lt.s32.totalorder %v2186, 16
        %vm2191 = vmand %vm2187, %vm2189
        %vm2192 = vmand %vm2188, %vm2190
        %v2193 = vsel %vm2191, 1, 0
        %v2194 = vsel %vm2192, 1, 0
        %vm2195 = vcmp.eq.s32.totalorder %v2193, 1
        %vm2196 = vcmp.eq.s32.totalorder %v2194, 1
        %v2197 = vsel %vm2195, %v2179, 0.0
        %v2198 = vsel %vm2196, %v2181, 0.0
        %v2199 = vadd.f32 %v2124, %v2197
        %v2200 = vadd.f32 %v2125, %v2198
        %2201 = vrot.lane.b32.xlu0 %v267, 52
        %v2202 = vpop.permute.xlu0 %2201
        %2203 = vrot.lane.b32.xlu0 %v268, 52
        %v2204 = vpop.permute.xlu0 %2203
        %2205 = vrot.lane.b32.xlu0 %v269, 52
        %v2206 = vpop.permute.xlu0 %2205
        %vm2207 = vcmask 424960
        %v2208 = vsel %vm2207, %v2202, %v2204
        %v2209 = vsel %vm2207, %v2204, %v2206
        %v2211 = vsel %vm279, %v229, 0
        %v2214 = vsel %vm283, %v2208, 0
        %v2217 = vsel %vm283, %v2209, 0
        %2219 = vmatprep.subr.bf16.mxu0 0
        %2220 = vmatpush1.bf16.msra.mxu0 0
        %2221 = vmatprep.subr.bf16.mxu0 0
        %2222 = vmatpush1.bf16.msra.mxu0 0
        %2223 = vmatprep.subr.bf16.mxu0 0
        %2224 = vmatpush1.bf16.msra.mxu0 0
        %2225 = vmatprep.subr.bf16.mxu0 0
        %2226 = vmatpush1.bf16.msra.mxu0 0
        %2227 = vmatprep.subr.bf16.mxu0 0
        %2228 = vmatpush1.bf16.msra.mxu0 0
        %2229 = vmatprep.subr.bf16.mxu0 0
        %2230 = vmatpush1.bf16.msra.mxu0 0
        %2231 = vmatprep.subr.bf16.mxu0 0
        %2232 = vmatpush1.bf16.msra.mxu0 0
        %2233 = vmatprep.subr.bf16.mxu0 %v2217
        %2234 = vmatpush1.bf16.msra.mxu0 %v2214
        %2235 = vmatprep.subr.bf16.mxu0 0
        %2236 = vmatpush2.bf16.msra.mxu0 0
        %2237 = vmatprep.subr.bf16.mxu0 0
        %2238 = vmatpush2.bf16.msra.mxu0 0
        %2239 = vmatprep.subr.bf16.mxu0 0
        %2240 = vmatpush2.bf16.msra.mxu0 0
        %2241 = vmatprep.subr.bf16.mxu0 0
        %2242 = vmatpush2.bf16.msra.mxu0 0
        %2243 = vmatprep.subr.bf16.mxu0 0
        %2244 = vmatpush2.bf16.msra.mxu0 0
        %2245 = vmatprep.subr.bf16.mxu0 0
        %2246 = vmatpush2.bf16.msra.mxu0 0
        %2247 = vmatprep.subr.bf16.mxu0 0
        %2248 = vmatpush2.bf16.msra.mxu0 0
        %2249 = vmatprep.subr.bf16.mxu0 0
        %2250 = vmatpush2.bf16.msra.mxu0 0
        %2251 = vmatprep.mubr.bf16.mxu0 0
        %2252 = vmatmul.mubr.bf16.gmra.mxu0 %v2211
        %v2253 = vpop.f32.mrf.mxu0
        %v2254 = vadd.f32 0.0, %v2253
        %v2255 = vpop.f32.mrf.mxu0
        %v2256 = vadd.f32 0.0, %v2255
        %v2257 = vpop.f32.mrf.mxu0
        %v2258 = vpop.f32.mrf.mxu0
        %2259 = vdwg.mxu0
        %v2260 = vsel %vm2059, %v2254, 0.0
        %v2261 = vsel %vm2060, %v2256, 0.0
        %v2262 = vadd.f32 %v2199, %v2260
        %v2263 = vadd.f32 %v2200, %v2261
        %v2265 = vsel %vm279, %v230, 0
        %2267 = vmatprep.subr.bf16.mxu0 0
        %2268 = vmatpush1.bf16.msra.mxu0 0
        %2269 = vmatprep.subr.bf16.mxu0 0
        %2270 = vmatpush1.bf16.msra.mxu0 0
        %2271 = vmatprep.subr.bf16.mxu0 0
        %2272 = vmatpush1.bf16.msra.mxu0 0
        %2273 = vmatprep.subr.bf16.mxu0 0
        %2274 = vmatpush1.bf16.msra.mxu0 0
        %2275 = vmatprep.subr.bf16.mxu0 0
        %2276 = vmatpush1.bf16.msra.mxu0 0
        %2277 = vmatprep.subr.bf16.mxu0 0
        %2278 = vmatpush1.bf16.msra.mxu0 0
        %2279 = vmatprep.subr.bf16.mxu0 0
        %2280 = vmatpush1.bf16.msra.mxu0 0
        %2281 = vmatprep.subr.bf16.mxu0 %v562
        %2282 = vmatpush1.bf16.msra.mxu0 %v559
        %2283 = vmatprep.subr.bf16.mxu0 0
        %2284 = vmatpush2.bf16.msra.mxu0 0
        %2285 = vmatprep.subr.bf16.mxu0 0
        %2286 = vmatpush2.bf16.msra.mxu0 0
        %2287 = vmatprep.subr.bf16.mxu0 0
        %2288 = vmatpush2.bf16.msra.mxu0 0
        %2289 = vmatprep.subr.bf16.mxu0 0
        %2290 = vmatpush2.bf16.msra.mxu0 0
        %2291 = vmatprep.subr.bf16.mxu0 0
        %2292 = vmatpush2.bf16.msra.mxu0 0
        %2293 = vmatprep.subr.bf16.mxu0 0
        %2294 = vmatpush2.bf16.msra.mxu0 0
        %2295 = vmatprep.subr.bf16.mxu0 0
        %2296 = vmatpush2.bf16.msra.mxu0 0
        %2297 = vmatprep.subr.bf16.mxu0 0
        %2298 = vmatpush2.bf16.msra.mxu0 0
        %2299 = vmatprep.mubr.bf16.mxu0 0
        %2300 = vmatmul.mubr.bf16.gmra.mxu0 %v2265
        %v2301 = vpop.f32.mrf.mxu0
        %v2302 = vadd.f32 0.0, %v2301
        %v2303 = vpop.f32.mrf.mxu0
        %v2304 = vadd.f32 0.0, %v2303
        %v2305 = vpop.f32.mrf.mxu0
        %v2306 = vpop.f32.mrf.mxu0
        %2307 = vdwg.mxu0
        %v2308 = vadd.f32 %v2262, %v2302
        %v2309 = vadd.f32 %v2263, %v2304
        %2310 = vrot.lane.b32.xlu0 %v267, 44
        %v2311 = vpop.permute.xlu0 %2310
        %2312 = vrot.lane.b32.xlu0 %v268, 44
        %v2313 = vpop.permute.xlu0 %2312
        %2314 = vrot.lane.b32.xlu0 %v269, 44
        %v2315 = vpop.permute.xlu0 %2314
        %vm2316 = vcmask 359424
        %v2317 = vsel %vm2316, %v2311, %v2313
        %v2318 = vsel %vm2316, %v2313, %v2315
        %v2320 = vsel %vm279, %v231, 0
        %v2323 = vsel %vm283, %v2317, 0
        %v2326 = vsel %vm283, %v2318, 0
        %2328 = vmatprep.subr.bf16.mxu0 0
        %2329 = vmatpush1.bf16.msra.mxu0 0
        %2330 = vmatprep.subr.bf16.mxu0 0
        %2331 = vmatpush1.bf16.msra.mxu0 0
        %2332 = vmatprep.subr.bf16.mxu0 0
        %2333 = vmatpush1.bf16.msra.mxu0 0
        %2334 = vmatprep.subr.bf16.mxu0 0
        %2335 = vmatpush1.bf16.msra.mxu0 0
        %2336 = vmatprep.subr.bf16.mxu0 0
        %2337 = vmatpush1.bf16.msra.mxu0 0
        %2338 = vmatprep.subr.bf16.mxu0 0
        %2339 = vmatpush1.bf16.msra.mxu0 0
        %2340 = vmatprep.subr.bf16.mxu0 0
        %2341 = vmatpush1.bf16.msra.mxu0 0
        %2342 = vmatprep.subr.bf16.mxu0 %v2326
        %2343 = vmatpush1.bf16.msra.mxu0 %v2323
        %2344 = vmatprep.subr.bf16.mxu0 0
        %2345 = vmatpush2.bf16.msra.mxu0 0
        %2346 = vmatprep.subr.bf16.mxu0 0
        %2347 = vmatpush2.bf16.msra.mxu0 0
        %2348 = vmatprep.subr.bf16.mxu0 0
        %2349 = vmatpush2.bf16.msra.mxu0 0
        %2350 = vmatprep.subr.bf16.mxu0 0
        %2351 = vmatpush2.bf16.msra.mxu0 0
        %2352 = vmatprep.subr.bf16.mxu0 0
        %2353 = vmatpush2.bf16.msra.mxu0 0
        %2354 = vmatprep.subr.bf16.mxu0 0
        %2355 = vmatpush2.bf16.msra.mxu0 0
        %2356 = vmatprep.subr.bf16.mxu0 0
        %2357 = vmatpush2.bf16.msra.mxu0 0
        %2358 = vmatprep.subr.bf16.mxu0 0
        %2359 = vmatpush2.bf16.msra.mxu0 0
        %2360 = vmatprep.mubr.bf16.mxu0 0
        %2361 = vmatmul.mubr.bf16.gmra.mxu0 %v2320
        %v2362 = vpop.f32.mrf.mxu0
        %v2363 = vadd.f32 0.0, %v2362
        %v2364 = vpop.f32.mrf.mxu0
        %v2365 = vadd.f32 0.0, %v2364
        %v2366 = vpop.f32.mrf.mxu0
        %v2367 = vpop.f32.mrf.mxu0
        %2368 = vdwg.mxu0
        %v2369 = vsel %vm2195, %v2363, 0.0
        %v2370 = vsel %vm2196, %v2365, 0.0
        %v2371 = vadd.f32 %v2308, %v2369
        %v2372 = vadd.f32 %v2309, %v2370
        %2373 = vrot.lane.b32.xlu0 %v1926, 116
        %v2374 = vpop.permute.xlu0 %2373
        %v2375 = vsel %vm1996, %v1995, %v2374
        %v2377 = vsel %vm279, %v232, 0
        %v2380 = vsel %vm283, %v2375, 0
        %2382 = vmatprep.subr.bf16.mxu0 0
        %2383 = vmatpush1.bf16.msra.mxu0 0
        %2384 = vmatprep.subr.bf16.mxu0 0
        %2385 = vmatpush1.bf16.msra.mxu0 0
        %2386 = vmatprep.subr.bf16.mxu0 0
        %2387 = vmatpush1.bf16.msra.mxu0 0
        %2388 = vmatprep.subr.bf16.mxu0 0
        %2389 = vmatpush1.bf16.msra.mxu0 0
        %2390 = vmatprep.subr.bf16.mxu0 0
        %2391 = vmatpush1.bf16.msra.mxu0 0
        %2392 = vmatprep.subr.bf16.mxu0 0
        %2393 = vmatpush1.bf16.msra.mxu0 0
        %2394 = vmatprep.subr.bf16.mxu0 0
        %2395 = vmatpush1.bf16.msra.mxu0 0
        %2396 = vmatprep.subr.bf16.mxu0 %v2380
        %2397 = vmatpush1.bf16.msra.mxu0 %v2006
        %2398 = vmatprep.subr.bf16.mxu0 0
        %2399 = vmatpush2.bf16.msra.mxu0 0
        %2400 = vmatprep.subr.bf16.mxu0 0
        %2401 = vmatpush2.bf16.msra.mxu0 0
        %2402 = vmatprep.subr.bf16.mxu0 0
        %2403 = vmatpush2.bf16.msra.mxu0 0
        %2404 = vmatprep.subr.bf16.mxu0 0
        %2405 = vmatpush2.bf16.msra.mxu0 0
        %2406 = vmatprep.subr.bf16.mxu0 0
        %2407 = vmatpush2.bf16.msra.mxu0 0
        %2408 = vmatprep.subr.bf16.mxu0 0
        %2409 = vmatpush2.bf16.msra.mxu0 0
        %2410 = vmatprep.subr.bf16.mxu0 0
        %2411 = vmatpush2.bf16.msra.mxu0 0
        %2412 = vmatprep.subr.bf16.mxu0 0
        %2413 = vmatpush2.bf16.msra.mxu0 0
        %2414 = vmatprep.mubr.bf16.mxu0 0
        %2415 = vmatmul.mubr.bf16.gmra.mxu0 %v2377
        %v2416 = vpop.f32.mrf.mxu0
        %v2417 = vadd.f32 0.0, %v2416
        %v2418 = vpop.f32.mrf.mxu0
        %v2419 = vadd.f32 0.0, %v2418
        %v2420 = vpop.f32.mrf.mxu0
        %v2421 = vpop.f32.mrf.mxu0
        %2422 = vdwg.mxu0
        %v2423 = vsel %vm2059, %v2417, 0.0
        %v2424 = vsel %vm2060, %v2419, 0.0
        %v2425 = vadd.f32 %v2371, %v2423
        %v2426 = vadd.f32 %v2372, %v2424
        %2427 = vrot.lane.b32.xlu0 %v1926, 112
        %v2428 = vpop.permute.xlu0 %2427
        %v2429 = vsel %vm2071, %v2070, %v2428
        %v2431 = vsel %vm279, %v233, 0
        %v2434 = vsel %vm283, %v2429, 0
        %2436 = vmatprep.subr.bf16.mxu0 0
        %2437 = vmatpush1.bf16.msra.mxu0 0
        %2438 = vmatprep.subr.bf16.mxu0 0
        %2439 = vmatpush1.bf16.msra.mxu0 0
        %2440 = vmatprep.subr.bf16.mxu0 0
        %2441 = vmatpush1.bf16.msra.mxu0 0
        %2442 = vmatprep.subr.bf16.mxu0 0
        %2443 = vmatpush1.bf16.msra.mxu0 0
        %2444 = vmatprep.subr.bf16.mxu0 0
        %2445 = vmatpush1.bf16.msra.mxu0 0
        %2446 = vmatprep.subr.bf16.mxu0 0
        %2447 = vmatpush1.bf16.msra.mxu0 0
        %2448 = vmatprep.subr.bf16.mxu0 0
        %2449 = vmatpush1.bf16.msra.mxu0 0
        %2450 = vmatprep.subr.bf16.mxu0 %v2434
        %2451 = vmatpush1.bf16.msra.mxu0 %v2081
        %2452 = vmatprep.subr.bf16.mxu0 0
        %2453 = vmatpush2.bf16.msra.mxu0 0
        %2454 = vmatprep.subr.bf16.mxu0 0
        %2455 = vmatpush2.bf16.msra.mxu0 0
        %2456 = vmatprep.subr.bf16.mxu0 0
        %2457 = vmatpush2.bf16.msra.mxu0 0
        %2458 = vmatprep.subr.bf16.mxu0 0
        %2459 = vmatpush2.bf16.msra.mxu0 0
        %2460 = vmatprep.subr.bf16.mxu0 0
        %2461 = vmatpush2.bf16.msra.mxu0 0
        %2462 = vmatprep.subr.bf16.mxu0 0
        %2463 = vmatpush2.bf16.msra.mxu0 0
        %2464 = vmatprep.subr.bf16.mxu0 0
        %2465 = vmatpush2.bf16.msra.mxu0 0
        %2466 = vmatprep.subr.bf16.mxu0 0
        %2467 = vmatpush2.bf16.msra.mxu0 0
        %2468 = vmatprep.mubr.bf16.mxu0 0
        %2469 = vmatmul.mubr.bf16.gmra.mxu0 %v2431
        %v2470 = vpop.f32.mrf.mxu0
        %v2471 = vadd.f32 0.0, %v2470
        %v2472 = vpop.f32.mrf.mxu0
        %v2473 = vadd.f32 0.0, %v2472
        %v2474 = vpop.f32.mrf.mxu0
        %v2475 = vpop.f32.mrf.mxu0
        %2476 = vdwg.mxu0
        %v2477 = vadd.f32 %v2425, %v2471
        %v2478 = vadd.f32 %v2426, %v2473
        %2479 = vrot.lane.b32.xlu0 %v1926, 108
        %v2480 = vpop.permute.xlu0 %2479
        %v2481 = vsel %vm2132, %v2131, %v2480
        %v2483 = vsel %vm279, %v234, 0
        %v2486 = vsel %vm283, %v2481, 0
        %2488 = vmatprep.subr.bf16.mxu0 0
        %2489 = vmatpush1.bf16.msra.mxu0 0
        %2490 = vmatprep.subr.bf16.mxu0 0
        %2491 = vmatpush1.bf16.msra.mxu0 0
        %2492 = vmatprep.subr.bf16.mxu0 0
        %2493 = vmatpush1.bf16.msra.mxu0 0
        %2494 = vmatprep.subr.bf16.mxu0 0
        %2495 = vmatpush1.bf16.msra.mxu0 0
        %2496 = vmatprep.subr.bf16.mxu0 0
        %2497 = vmatpush1.bf16.msra.mxu0 0
        %2498 = vmatprep.subr.bf16.mxu0 0
        %2499 = vmatpush1.bf16.msra.mxu0 0
        %2500 = vmatprep.subr.bf16.mxu0 0
        %2501 = vmatpush1.bf16.msra.mxu0 0
        %2502 = vmatprep.subr.bf16.mxu0 %v2486
        %2503 = vmatpush1.bf16.msra.mxu0 %v2142
        %2504 = vmatprep.subr.bf16.mxu0 0
        %2505 = vmatpush2.bf16.msra.mxu0 0
        %2506 = vmatprep.subr.bf16.mxu0 0
        %2507 = vmatpush2.bf16.msra.mxu0 0
        %2508 = vmatprep.subr.bf16.mxu0 0
        %2509 = vmatpush2.bf16.msra.mxu0 0
        %2510 = vmatprep.subr.bf16.mxu0 0
        %2511 = vmatpush2.bf16.msra.mxu0 0
        %2512 = vmatprep.subr.bf16.mxu0 0
        %2513 = vmatpush2.bf16.msra.mxu0 0
        %2514 = vmatprep.subr.bf16.mxu0 0
        %2515 = vmatpush2.bf16.msra.mxu0 0
        %2516 = vmatprep.subr.bf16.mxu0 0
        %2517 = vmatpush2.bf16.msra.mxu0 0
        %2518 = vmatprep.subr.bf16.mxu0 0
        %2519 = vmatpush2.bf16.msra.mxu0 0
        %2520 = vmatprep.mubr.bf16.mxu0 0
        %2521 = vmatmul.mubr.bf16.gmra.mxu0 %v2483
        %v2522 = vpop.f32.mrf.mxu0
        %v2523 = vadd.f32 0.0, %v2522
        %v2524 = vpop.f32.mrf.mxu0
        %v2525 = vadd.f32 0.0, %v2524
        %v2526 = vpop.f32.mrf.mxu0
        %v2527 = vpop.f32.mrf.mxu0
        %2528 = vdwg.mxu0
        %v2529 = vsel %vm2195, %v2523, 0.0
        %v2530 = vsel %vm2196, %v2525, 0.0
        %v2531 = vadd.f32 %v2477, %v2529
        %v2532 = vadd.f32 %v2478, %v2530
        %v2533 = vmax.f32 %v855, %v856
        %2534 = vmax.xlane.f32.xlu0 %v2533
        %v2535 = vpop.xlane.xlu0 %2534
        %v2536 = vmax.f32 %v1425, %v1426
        %2537 = vmax.xlane.f32.xlu0 %v2536
        %v2538 = vpop.xlane.xlu0 %2537
        %v2539 = vmax.f32 %v1988, %v1989
        %2540 = vmax.xlane.f32.xlu0 %v2539
        %v2541 = vpop.xlane.xlu0 %2540
        %v2542 = vmax.f32 %v2531, %v2532
        %2543 = vmax.xlane.f32.xlu0 %v2542
        %v2544 = vpop.xlane.xlu0 %2543
        %vm2545 = vcmask 7168
        %v2546 = vsel %vm2545, %v2535, %v2538
        %vm2547 = vcmask 15360
        %v2548 = vsel %vm2547, %v2546, %v2541
        %vm2549 = vcmask 23552
        %v2550 = vsel %vm2549, %v2548, %v2544
        %v2551 = vadd.f32 %v855, %v856
        %2552 = vadd.xlane.f32.xlu0 %v2551
        %v2553 = vpop.xlane.xlu0 %2552
        %v2554 = vadd.f32 %v1425, %v1426
        %2555 = vadd.xlane.f32.xlu0 %v2554
        %v2556 = vpop.xlane.xlu0 %2555
        %v2557 = vadd.f32 %v1988, %v1989
        %2558 = vadd.xlane.f32.xlu0 %v2557
        %v2559 = vpop.xlane.xlu0 %2558
        %v2560 = vadd.f32 %v2531, %v2532
        %2561 = vadd.xlane.f32.xlu0 %v2560
        %v2562 = vpop.xlane.xlu0 %2561
        %v2563 = vsel %vm2545, %v2553, %v2556
        %v2564 = vsel %vm2547, %v2563, %v2559
        %v2565 = vsel %vm2549, %v2564, %v2562
        %v2566 = vmul.f32 %v2565, 0.00390625
        %v2567 = vld [vmem:[%s2] sm:$0x3]
        %v2569 = vsel %vm279, %v2567, 0
        %2571 = vmatprep.subr.mxu0 0.0
        %2572 = vmatpush1.msra.mxu0 0.0
        %2573 = vmatprep.subr.mxu0 0.0
        %2574 = vmatpush1.msra.mxu0 0.0
        %2575 = vmatprep.subr.mxu0 0.0
        %2576 = vmatpush1.msra.mxu0 0.0
        %2577 = vmatprep.subr.mxu0 0.0
        %2578 = vmatpush1.msra.mxu0 0.0
        %2579 = vmatprep.subr.mxu0 0.0
        %2580 = vmatpush1.msra.mxu0 0.0
        %2581 = vmatprep.subr.mxu0 0.0
        %2582 = vmatpush1.msra.mxu0 0.0
        %2583 = vmatprep.subr.mxu0 0.0
        %2584 = vmatpush1.msra.mxu0 0.0
        %2585 = vmatprep.subr.mxu0 0.0
        %2586 = vmatpush1.msra.mxu0 0.0
        %2587 = vmatprep.subr.mxu0 0.0
        %2588 = vmatpush1.msra.mxu0 0.0
        %2589 = vmatprep.subr.mxu0 0.0
        %2590 = vmatpush1.msra.mxu0 0.0
        %2591 = vmatprep.subr.mxu0 0.0
        %2592 = vmatpush1.msra.mxu0 0.0
        %2593 = vmatprep.subr.mxu0 0.0
        %2594 = vmatpush1.msra.mxu0 0.0
        %2595 = vmatprep.subr.mxu0 0.0
        %2596 = vmatpush1.msra.mxu0 0.0
        %2597 = vmatprep.subr.mxu0 0.0
        %2598 = vmatpush1.msra.mxu0 0.0
        %2599 = vmatprep.subr.mxu0 0.0
        %2600 = vmatpush1.msra.mxu0 0.0
        %2601 = vmatprep.subr.mxu0 0.0
        %2602 = vmatpush1.msra.mxu0 %v2550
        %2603 = vmatprep.subr.mxu0 0.0
        %2604 = vmatpush2.msra.mxu0 0.0
        %2605 = vmatprep.subr.mxu0 0.0
        %2606 = vmatpush2.msra.mxu0 0.0
        %2607 = vmatprep.subr.mxu0 0.0
        %2608 = vmatpush2.msra.mxu0 0.0
        %2609 = vmatprep.subr.mxu0 0.0
        %2610 = vmatpush2.msra.mxu0 0.0
        %2611 = vmatprep.subr.mxu0 0.0
        %2612 = vmatpush2.msra.mxu0 0.0
        %2613 = vmatprep.subr.mxu0 0.0
        %2614 = vmatpush2.msra.mxu0 0.0
        %2615 = vmatprep.subr.mxu0 0.0
        %2616 = vmatpush2.msra.mxu0 0.0
        %2617 = vmatprep.subr.mxu0 0.0
        %2618 = vmatpush2.msra.mxu0 0.0
        %2619 = vmatprep.subr.mxu0 0.0
        %2620 = vmatpush2.msra.mxu0 0.0
        %2621 = vmatprep.subr.mxu0 0.0
        %2622 = vmatpush2.msra.mxu0 0.0
        %2623 = vmatprep.subr.mxu0 0.0
        %2624 = vmatpush2.msra.mxu0 0.0
        %2625 = vmatprep.subr.mxu0 0.0
        %2626 = vmatpush2.msra.mxu0 0.0
        %2627 = vmatprep.subr.mxu0 0.0
        %2628 = vmatpush2.msra.mxu0 0.0
        %2629 = vmatprep.subr.mxu0 0.0
        %2630 = vmatpush2.msra.mxu0 0.0
        %2631 = vmatprep.subr.mxu0 0.0
        %2632 = vmatpush2.msra.mxu0 0.0
        %2633 = vmatprep.subr.mxu0 0.0
        %2634 = vmatpush2.msra.mxu0 0.0
        %2635 = vmatprep.mubr.f32.mxu0 0.0
        %2636 = vmatmul.mubr.f32.gmra.mxu0 %v2569
        %v2637 = vpop.f32.mrf.mxu0
        %v2638 = vadd.f32 0.0, %v2637
        %v2639 = vpop.f32.mrf.mxu0
        %2640 = vdwg.mxu0
        %v2641 = vmax.f32 %v2638, 0.0
        %2642 = vmatprep.subr.mxu0 0.0
        %2643 = vmatpush1.msra.mxu0 0.0
        %2644 = vmatprep.subr.mxu0 0.0
        %2645 = vmatpush1.msra.mxu0 0.0
        %2646 = vmatprep.subr.mxu0 0.0
        %2647 = vmatpush1.msra.mxu0 0.0
        %2648 = vmatprep.subr.mxu0 0.0
        %2649 = vmatpush1.msra.mxu0 0.0
        %2650 = vmatprep.subr.mxu0 0.0
        %2651 = vmatpush1.msra.mxu0 0.0
        %2652 = vmatprep.subr.mxu0 0.0
        %2653 = vmatpush1.msra.mxu0 0.0
        %2654 = vmatprep.subr.mxu0 0.0
        %2655 = vmatpush1.msra.mxu0 0.0
        %2656 = vmatprep.subr.mxu0 0.0
        %2657 = vmatpush1.msra.mxu0 0.0
        %2658 = vmatprep.subr.mxu0 0.0
        %2659 = vmatpush1.msra.mxu0 0.0
        %2660 = vmatprep.subr.mxu0 0.0
        %2661 = vmatpush1.msra.mxu0 0.0
        %2662 = vmatprep.subr.mxu0 0.0
        %2663 = vmatpush1.msra.mxu0 0.0
        %2664 = vmatprep.subr.mxu0 0.0
        %2665 = vmatpush1.msra.mxu0 0.0
        %2666 = vmatprep.subr.mxu0 0.0
        %2667 = vmatpush1.msra.mxu0 0.0
        %2668 = vmatprep.subr.mxu0 0.0
        %2669 = vmatpush1.msra.mxu0 0.0
        %2670 = vmatprep.subr.mxu0 0.0
        %2671 = vmatpush1.msra.mxu0 0.0
        %2672 = vmatprep.subr.mxu0 0.0
        %2673 = vmatpush1.msra.mxu0 %v2566
        %2674 = vmatprep.subr.mxu0 0.0
        %2675 = vmatpush2.msra.mxu0 0.0
        %2676 = vmatprep.subr.mxu0 0.0
        %2677 = vmatpush2.msra.mxu0 0.0
        %2678 = vmatprep.subr.mxu0 0.0
        %2679 = vmatpush2.msra.mxu0 0.0
        %2680 = vmatprep.subr.mxu0 0.0
        %2681 = vmatpush2.msra.mxu0 0.0
        %2682 = vmatprep.subr.mxu0 0.0
        %2683 = vmatpush2.msra.mxu0 0.0
        %2684 = vmatprep.subr.mxu0 0.0
        %2685 = vmatpush2.msra.mxu0 0.0
        %2686 = vmatprep.subr.mxu0 0.0
        %2687 = vmatpush2.msra.mxu0 0.0
        %2688 = vmatprep.subr.mxu0 0.0
        %2689 = vmatpush2.msra.mxu0 0.0
        %2690 = vmatprep.subr.mxu0 0.0
        %2691 = vmatpush2.msra.mxu0 0.0
        %2692 = vmatprep.subr.mxu0 0.0
        %2693 = vmatpush2.msra.mxu0 0.0
        %2694 = vmatprep.subr.mxu0 0.0
        %2695 = vmatpush2.msra.mxu0 0.0
        %2696 = vmatprep.subr.mxu0 0.0
        %2697 = vmatpush2.msra.mxu0 0.0
        %2698 = vmatprep.subr.mxu0 0.0
        %2699 = vmatpush2.msra.mxu0 0.0
        %2700 = vmatprep.subr.mxu0 0.0
        %2701 = vmatpush2.msra.mxu0 0.0
        %2702 = vmatprep.subr.mxu0 0.0
        %2703 = vmatpush2.msra.mxu0 0.0
        %2704 = vmatprep.subr.mxu0 0.0
        %2705 = vmatpush2.msra.mxu0 0.0
        %2706 = vmatprep.mubr.f32.mxu0 0.0
        %2707 = vmatmul.mubr.f32.gmra.mxu0 %v2569
        %v2708 = vpop.f32.mrf.mxu0
        %v2709 = vadd.f32 0.0, %v2708
        %v2710 = vpop.f32.mrf.mxu0
        %2711 = vdwg.mxu0
        %v2712 = vmax.f32 %v2709, 0.0
        %v2713 = vld [vmem:[%s3] sm:$0xff]
        %v2714 = vadd.f32 %v2641, %v2712
        %v2716 = vsel %vm2547, %v2713, 0
        %vm2718 = vcmask 1041408
        %v2720 = vsel %vm2718, %v2714, 0
        %2722 = vmatprep.subr.mxu0 0.0
        %2723 = vmatpush1.msra.mxu0 0.0
        %2724 = vmatprep.subr.mxu0 0.0
        %2725 = vmatpush1.msra.mxu0 0.0
        %2726 = vmatprep.subr.mxu0 0.0
        %2727 = vmatpush1.msra.mxu0 0.0
        %2728 = vmatprep.subr.mxu0 0.0
        %2729 = vmatpush1.msra.mxu0 0.0
        %2730 = vmatprep.subr.mxu0 0.0
        %2731 = vmatpush1.msra.mxu0 0.0
        %2732 = vmatprep.subr.mxu0 0.0
        %2733 = vmatpush1.msra.mxu0 0.0
        %2734 = vmatprep.subr.mxu0 0.0
        %2735 = vmatpush1.msra.mxu0 0.0
        %2736 = vmatprep.subr.mxu0 0.0
        %2737 = vmatpush1.msra.mxu0 0.0
        %2738 = vmatprep.subr.mxu0 0.0
        %2739 = vmatpush1.msra.mxu0 0.0
        %2740 = vmatprep.subr.mxu0 0.0
        %2741 = vmatpush1.msra.mxu0 0.0
        %2742 = vmatprep.subr.mxu0 0.0
        %2743 = vmatpush1.msra.mxu0 0.0
        %2744 = vmatprep.subr.mxu0 0.0
        %2745 = vmatpush1.msra.mxu0 0.0
        %2746 = vmatprep.subr.mxu0 0.0
        %2747 = vmatpush1.msra.mxu0 0.0
        %2748 = vmatprep.subr.mxu0 0.0
        %2749 = vmatpush1.msra.mxu0 0.0
        %2750 = vmatprep.subr.mxu0 0.0
        %2751 = vmatpush1.msra.mxu0 0.0
        %2752 = vmatprep.subr.mxu0 0.0
        %2753 = vmatpush1.msra.mxu0 %v2720
        %2754 = vmatprep.subr.mxu0 0.0
        %2755 = vmatpush2.msra.mxu0 0.0
        %2756 = vmatprep.subr.mxu0 0.0
        %2757 = vmatpush2.msra.mxu0 0.0
        %2758 = vmatprep.subr.mxu0 0.0
        %2759 = vmatpush2.msra.mxu0 0.0
        %2760 = vmatprep.subr.mxu0 0.0
        %2761 = vmatpush2.msra.mxu0 0.0
        %2762 = vmatprep.subr.mxu0 0.0
        %2763 = vmatpush2.msra.mxu0 0.0
        %2764 = vmatprep.subr.mxu0 0.0
        %2765 = vmatpush2.msra.mxu0 0.0
        %2766 = vmatprep.subr.mxu0 0.0
        %2767 = vmatpush2.msra.mxu0 0.0
        %2768 = vmatprep.subr.mxu0 0.0
        %2769 = vmatpush2.msra.mxu0 0.0
        %2770 = vmatprep.subr.mxu0 0.0
        %2771 = vmatpush2.msra.mxu0 0.0
        %2772 = vmatprep.subr.mxu0 0.0
        %2773 = vmatpush2.msra.mxu0 0.0
        %2774 = vmatprep.subr.mxu0 0.0
        %2775 = vmatpush2.msra.mxu0 0.0
        %2776 = vmatprep.subr.mxu0 0.0
        %2777 = vmatpush2.msra.mxu0 0.0
        %2778 = vmatprep.subr.mxu0 0.0
        %2779 = vmatpush2.msra.mxu0 0.0
        %2780 = vmatprep.subr.mxu0 0.0
        %2781 = vmatpush2.msra.mxu0 0.0
        %2782 = vmatprep.subr.mxu0 0.0
        %2783 = vmatpush2.msra.mxu0 0.0
        %2784 = vmatprep.subr.mxu0 0.0
        %2785 = vmatpush2.msra.mxu0 0.0
        %2786 = vmatprep.mubr.f32.mxu0 0.0
        %2787 = vmatmul.mubr.f32.gmra.mxu0 %v2716
        %v2788 = vpop.f32.mrf.mxu0
        %v2789 = vadd.f32 0.0, %v2788
        %v2790 = vpop.f32.mrf.mxu0
        %2791 = vdwg.mxu0
        %v2792 = vxor.u32 %v2789, 2147483648
        %v2793 = vmul.f32 %v2792, 1.442695
        %v2794 = vpow.pop %v2793
        %v2795 = vadd.f32 %v2794, 1.0
        %v2796 = vrcp.pop %v2795
        %v2797 = vmul.f32 1.0, %v2796
        %vm2798 = vcmask 31744
        %v2799 = vsel %vm2798, %v2797, -inf
        %2800 = vmax.xlane.f32.xlu0 %v2799
        %v2801 = vpop.xlane.xlu0 %2800
        %v2802 = vsub.f32 %v2797, %v2801
        %v2803 = vmul.f32 %v2802, 1.442695
        %v2804 = vpow.pop %v2803
        %v2805 = vsel %vm2798, %v2804, 0.0
        %2806 = vadd.xlane.f32.xlu0 %v2805
        %v2807 = vpop.xlane.xlu0 %2806
        %v2808 = vrcp.pop %v2807
        %v2809 = vmul.f32 %v2804, %v2808
        %2811 = vset.pattern.permute.xlu0 0
        %2812 = vperm.xlu0 %2811, %v2809
        %v2813 = vpop.permute.xlu0 %2812
        %v2815 = vmul.f32 %v855, %v2813
        %v2816 = vmul.f32 %v856, %v2813
        %2817 = vst [vmem:[%s190 + $0x30] sm:$0xff] %v2815
        %2818 = vst [vmem:[%s190 + $0x38] sm:$0xff] %v2816
        %2819 = vset.pattern.permute.xlu0 1
        %2820 = vperm.xlu0 %2819, %v2809
        %v2821 = vpop.permute.xlu0 %2820
        %v2823 = vmul.f32 %v1425, %v2821
        %v2824 = vmul.f32 %v1426, %v2821
        %2825 = vst [vmem:[%s190 + $0x20] sm:$0xff] %v2823
        %2826 = vst [vmem:[%s190 + $0x28] sm:$0xff] %v2824
        %2827 = vset.pattern.permute.xlu0 2
        %2828 = vperm.xlu0 %2827, %v2809
        %v2829 = vpop.permute.xlu0 %2828
        %v2831 = vmul.f32 %v1988, %v2829
        %v2832 = vmul.f32 %v1989, %v2829
        %2833 = vst [vmem:[%s190 + $0x10] sm:$0xff] %v2831
        %2834 = vst [vmem:[%s190 + $0x18] sm:$0xff] %v2832
        %2835 = vset.pattern.permute.xlu0 3
        %2836 = vperm.xlu0 %2835, %v2809
        %v2837 = vpop.permute.xlu0 %2836
        %v2839 = vmul.f32 %v2531, %v2837
        %v2840 = vmul.f32 %v2532, %v2837
        %2841 = vst [vmem:[%s190] sm:$0xff] %v2839
        %2842 = vst [vmem:[%s190 + $0x8] sm:$0xff] %v2840
        %s2843 = sand.u32 %s115, 1
        %s2844 = scalar_lea.sflag [#allocation3], %s2843
        %s2845 = sand.u32 %s115, 1
        %s2846 = smul.addr %s2845, 64
        %s2847 = scalar_lea.vmem [#allocation2], %s2846
        // Predicated region
        $region37: #{tpu_custom_call.1} parent=35 // pred_check
          %p2848 = pneg %p125
        $region38: #{tpu_custom_call.1} parent=35 // pred_check_branch
          %2850 = sbr.rel (%p2848) target = $region40
        $region39: #{tpu_custom_call.1} parent=35 // pred_region
          %s2852 = ssub.s32 1024, 1024
          %2853 = vsyncadd %s2844, %s2852
          %s2854 = smul.addr %s18, 8
          %s2855 = smul.addr %s2854, 128
          %s2856 = scalar_lea.hbm %s4, %s2855
          %s2857 = sshll.u32 %s2847, 4
          %s2858 = int_to_ptr.vmem [resolvable:$true] %s2857
          %2863 = dma.vmem_to_hbm [thread:$0]  %s2858, 1024, %s2856, %s2844, 256, 256, 16
        $region40: #{tpu_custom_call.1} parent=35 // pred_fallthru
          _
      $region36: #{tpu_custom_call.1} parent=5 // pred_fallthru
        _
      %p2864 = scmp.le.s32.totalorder 2, %s13
      // Predicated region
      $region41: #{tpu_custom_call.1} parent=5 // pred_check
        %p2865 = pneg %p2864
      $region42: #{tpu_custom_call.1} parent=5 // pred_check_branch
        %2867 = sbr.rel (%p2865) target = $region44
      $region43: #{tpu_custom_call.1} parent=5 // pred_region
        %s2868 = ssub.s32 %s13, 2
        // Predicated region
        $region45: #{tpu_custom_call.1} parent=43 // pred_check
          %p2869 = pneg %p131
        $region46: #{tpu_custom_call.1} parent=43 // pred_check_branch
          %2871 = sbr.rel (%p2869) target = $region48
        $region47: #{tpu_custom_call.1} parent=43 // pred_region
          %s2872 = sand.u32 %s116, 1
          %s2873 = scalar_lea.sflag [#allocation3], %s2872
          %s2874 = sand.u32 %s116, 1
          %s2875 = smul.addr %s2874, 64
          %s2876 = scalar_lea.vmem [#allocation2], %s2875
          %2877 = dma.done %s2873, 1024
        $region48: #{tpu_custom_call.1} parent=43 // pred_fallthru
          _
      $region44: #{tpu_custom_call.1} parent=5 // pred_fallthru
        _
    $region6: #{tpu_custom_call.1} parent=1 // loop_footer
      %s17 = sadd.s32 1, %s13
    $region7: #{tpu_custom_call.1} parent=1 // loop_footer_branch
      %12 = sbr.rel target = $region3
    $region8: #{tpu_custom_call.1} parent=1 // loop_exit
      _
    %2878 = vsyncpa [#allocation3], 1
    %s2879 = scalar_lea.sflag [#allocation3], 1
    %2880 = vsyncpa %s2879, 1

</llo_original>
